<compile_context>
chip_gen: v5e
topology: v5e:2x2
jax: 0.10.0
libtpu: 0.0.40
codegen_flags: <defaults>
</compile_context>

<pallas_src>
import functools

import jax
import jax.numpy as jnp
from jax import lax
from jax.experimental import pallas as pl
from jax.experimental.pallas import tpu as pltpu


def _fused_kernel(px_ref, logit_ref, wnet_ref, bnet_ref, out_ref, *,
                  num_conv, out_channel):
    # Single lane-dense MXU dot: (tm, Kc_pad) x (Kc_pad, num_conv*out_channel),
    # bf16 operands, f32 accumulation.
    y = jnp.dot(px_ref[...], wnet_ref[...],
                preferred_element_type=jnp.float32) + bnet_ref[...]

    # Softmax over the tiny group axis (logits precomputed in the wrapper).
    a = logit_ref[...]                                   # (tm, num_conv) f32
    a = a - jnp.max(a, axis=-1, keepdims=True)
    e = jnp.exp(a)
    att = e * pl.reciprocal(jnp.sum(e, axis=-1, keepdims=True), approx=True)

    # Attention-weighted sum of the per-group slices of the 16-wide result.
    acc = None
    for g in range(num_conv):                            # static unroll, small
        yg = y[:, g * out_channel:(g + 1) * out_channel] * att[:, g:g + 1]
        acc = yg if acc is None else acc + yg
    out_ref[...] = acc.astype(out_ref.dtype)


def _im2col(v, K, kc_pad):
    # v: (N, C, D, H, W) -> (N*Do*Ho*Wo, kc_pad), column order (kd, kh, kw, ci)
    N, C, D, H, W = v.shape
    Do, Ho, Wo = D - K + 1, H - K + 1, W - K + 1
    v = jnp.transpose(v, (0, 2, 3, 4, 1))                # N D H W C
    cols = []
    for kd in range(K):
        for kh in range(K):
            for kw in range(K):
                cols.append(v[:, kd:kd + Do, kh:kh + Ho, kw:kw + Wo, :])
    p = jnp.concatenate(cols, axis=-1).reshape(N * Do * Ho * Wo, K * K * K * C)
    if kc_pad > K * K * K * C:
        p = jnp.pad(p, ((0, 0), (0, kc_pad - K * K * K * C)))
    return p, (Do, Ho, Wo)


def _weight_to_matrix(w):
    # PyTorch conv3d weight (Co, Ci, kD, kH, kW) -> (kD*kH*kW*Ci, Co)
    return jnp.transpose(w, (2, 3, 4, 1, 0)).reshape(-1, w.shape[0])


def _attention_logits(pos, params, num_conv):
    # Tiny attention branch (4 -> 2 channels) on raw voxels via XLA conv; the
    # softmax + weighting stay fused in the Pallas kernel.
    dn = ('NCDHW', 'OIDHW', 'NCDHW')
    f = lambda a: a.astype(jnp.float32)
    att = lax.conv_general_dilated(f(pos), f(params['w_att0']), (1, 1, 1),
                                   'VALID', dimension_numbers=dn)
    att = att + params['b_att0'].astype(jnp.float32)[None, :, None, None, None]
    alpha = params['alpha'].astype(jnp.float32)[None, :, None, None, None]
    att = jnp.where(att >= 0, att, alpha * att)          # PReLU
    att = lax.conv_general_dilated(att, f(params['w_att1']), (1, 1, 1),
                                   'VALID', dimension_numbers=dn)
    att = att + params['b_att1'].astype(jnp.float32)[None, :, None, None, None]
    # (N, num_conv, Do, Ho, Wo) -> (M, num_conv), same row order as im2col(x).
    return jnp.transpose(att, (0, 2, 3, 4, 1)).reshape(-1, num_conv)


def _choose_tm(M, Kc_pad, num_conv, out_channel, vmem_limit_bytes, tm):
    if tm is None:
        # Target an even grid of 4: keeps both v7x TensorCores busy with two
        # pipelined steps each; on v5e/v6e (1 TC) it's just 4 low-overhead steps.
        tm = (((M + 3) // 4 + 7) // 8) * 8
    # VMEM cap: double-buffered px / logits / out tiles, with ~2x headroom for
    # weights, compiler scratch, and register spills.
    per_row = 2 * (Kc_pad * 2 + num_conv * 4 + out_channel * 4)
    cap = max(8, (vmem_limit_bytes // 2 // per_row) // 8 * 8)
    tm = min(tm, cap, ((M + 7) // 8) * 8)
    return max(8, tm)


def conv3d_rt_att(x, pos, params, *, kernel_size, num_conv, out_channel, tm=None):
    """x, pos: (N, C_in, D, H, W).  pad_type='valid', stride=1."""
    N, C_in = x.shape[0], x.shape[1]
    K = kernel_size
    Kc = K * K * K * C_in
    Kc_pad = ((Kc + 127) // 128) * 128                   # lane-aligned contraction
    GOC = num_conv * out_channel

    # bf16 hot-path patch matrix (f32 accumulation happens inside the kernel).
    px, (Do, Ho, Wo) = _im2col(x.astype(jnp.bfloat16), K, Kc_pad)
    M = px.shape[0]

    # Attention logits: (M, num_conv) f32 — tiny vs. the old (M, Kc_pad) stream.
    logits = _attention_logits(pos, params, num_conv).astype(jnp.float32)

    # Main-conv weights flattened to one lane-dense RHS (Kc_pad, num_conv*oc);
    # column c = g*out_channel + oc matches the PyTorch .view() group layout.
    wnet = _weight_to_matrix(params['w_net']).astype(jnp.float32)        # (Kc, GOC)
    wnet = jnp.pad(wnet, ((0, Kc_pad - Kc), (0, 0))).astype(jnp.bfloat16)
    bnet = params['b_net'].astype(jnp.float32).reshape(1, GOC)

    vmem_limit = 32 * 1024 * 1024
    tm = _choose_tm(M, Kc_pad, num_conv, out_channel, vmem_limit, tm)
    grid = (pl.cdiv(M, tm),)

    kernel = functools.partial(_fused_kernel, num_conv=num_conv,
                               out_channel=out_channel)

    out = pl.pallas_call(
        kernel,
        out_shape=jax.ShapeDtypeStruct((M, out_channel), jnp.float32),
        grid_spec=pltpu.PrefetchScalarGridSpec(
            num_scalar_prefetch=0,
            grid=grid,
            in_specs=[
                pl.BlockSpec((tm, Kc_pad), lambda i: (i, 0)),     # im2col(x), bf16
                pl.BlockSpec((tm, num_conv), lambda i: (i, 0)),   # att logits, f32
                pl.BlockSpec((Kc_pad, GOC), lambda i: (0, 0)),    # w_net flat, bf16
                pl.BlockSpec((1, GOC), lambda i: (0, 0)),         # b_net
            ],
            out_specs=pl.BlockSpec((tm, out_channel), lambda i: (i, 0)),
        ),
        compiler_params=pltpu.CompilerParams(
            dimension_semantics=("parallel",),
            vmem_limit_bytes=vmem_limit),
    )(px, logits, wnet, bnet)

    out = out.reshape(N, Do, Ho, Wo, out_channel)
    return jnp.transpose(out, (0, 4, 1, 2, 3))                    # NCDHW


def reference(x, pos, params, num_conv, out_channel):
    # pure-JAX f32 reference of the PyTorch forward (valid padding, stride 1)
    dn = ('NCDHW', 'OIDHW', 'NCDHW')
    f = lambda a: a.astype(jnp.float32)
    att = lax.conv_general_dilated(f(pos), f(params['w_att0']), (1, 1, 1), 'VALID',
                                   dimension_numbers=dn)
    att = att + params['b_att0'][None, :, None, None, None]
    alpha = params['alpha'][None, :, None, None, None]
    att = jnp.where(att >= 0, att, alpha * att)                   # PReLU
    att = lax.conv_general_dilated(att, f(params['w_att1']), (1, 1, 1), 'VALID',
                                   dimension_numbers=dn)
    att = att + params['b_att1'][None, :, None, None, None]
    att = jax.nn.softmax(att, axis=1)

    y = lax.conv_general_dilated(f(x), f(params['w_net']), (1, 1, 1), 'VALID',
                                 dimension_numbers=dn)
    y = y + params['b_net'][None, :, None, None, None]
    N = x.shape[0]
    Do, Ho, Wo = y.shape[2], y.shape[3], y.shape[4]
    y = y.reshape(N, num_conv, out_channel, Do, Ho, Wo)
    return jnp.sum(y * att[:, :, None], axis=1)


if __name__ == "__main__":
    N, C_in, out_channel, num_conv, K = 2, 4, 8, 2, 3
    D = H = W = 16                        # M = 2*14^3 = 5488 rows -> grid of 4

    key = jax.random.PRNGKey(0)
    ks = jax.random.split(key, 8)
    x = jax.random.normal(ks[0], (N, C_in, D, H, W), jnp.float32)
    pos = jax.random.normal(ks[1], (N, C_in, D, H, W), jnp.float32)

    params = {
        'w_net': 0.1 * jax.random.normal(ks[2], (num_conv * out_channel, C_in, K, K, K), jnp.float32),
        'b_net': 0.1 * jax.random.normal(ks[3], (num_conv * out_channel,), jnp.float32),
        'w_att0': 0.1 * jax.random.normal(ks[4], (num_conv * 2, C_in, K, K, K), jnp.float32),
        'b_att0': 0.1 * jax.random.normal(ks[5], (num_conv * 2,), jnp.float32),
        'alpha': jnp.full((num_conv * 2,), 0.25, jnp.float32),   # torch PReLU default init
        'w_att1': 0.1 * jax.random.normal(ks[6], (num_conv, num_conv * 2, 1, 1, 1), jnp.float32),
        'b_att1': 0.1 * jax.random.normal(ks[7], (num_conv,), jnp.float32),
    }

    # Round the hot-path tensors to bf16 once so kernel and reference see the
    # same values; the kernel accumulates in f32 on the MXU.
    x = x.astype(jnp.bfloat16)
    params['w_net'] = params['w_net'].astype(jnp.bfloat16)

    fwd = jax.jit(functools.partial(conv3d_rt_att, kernel_size=K,
                                    num_conv=num_conv, out_channel=out_channel))
    out = fwd(x, pos, params)
    out = jax.block_until_ready(out)

    ref = reference(x, pos, params, num_conv, out_channel)
    assert out.shape == ref.shape, (out.shape, ref.shape)
    err = float(jnp.max(jnp.abs(out - ref)))
    # Gate covers bf16 MXU inputs + approx softmax reciprocal; f32 accumulation
    # and an f32 attention branch keep it well under 1e-2.
    if err < 1e-2:
        print("KERNEL_OK")
    else:
        raise SystemExit(f"mismatch: max abs err = {err}")
</pallas_src>

<mosaic_0001>
module attributes {stable_mosaic.version = 11 : i64} {
  func.func @_fused_kernel(%arg0: i32, %arg1: memref<1376x128xbf16, #tpu.memory_space<vmem>>, %arg2: memref<1376x2xf32, #tpu.memory_space<vmem>>, %arg3: memref<128x16xbf16, #tpu.memory_space<vmem>>, %arg4: memref<1x16xf32, #tpu.memory_space<vmem>>, %arg5: memref<1376x8xf32, #tpu.memory_space<vmem>>) attributes {dimension_semantics = [#tpu.dimension_semantics<parallel>], iteration_bounds = array<i64: 4>, scalar_prefetch = 0 : i64, scratch_operands = 0 : i64, tpu.core_type = #tpu.core_type<tc>, window_params = [{transform_indices = @transform_0, window_bounds = array<i64: 1376, 128>}, {transform_indices = @transform_1, window_bounds = array<i64: 1376, 2>}, {pipeline_mode = #tpu.pipeline_mode<synchronous>, transform_indices = @transform_2, window_bounds = array<i64: 128, 16>}, {pipeline_mode = #tpu.pipeline_mode<synchronous>, transform_indices = @transform_3, window_bounds = array<i64: 1, 16>}, {transform_indices = @transform_4, window_bounds = array<i64: 1376, 8>}]} {
    %c0 = arith.constant 0 : index
    %c0_0 = arith.constant 0 : index
    %0 = vector.load %arg1[%c0, %c0_0] : memref<1376x128xbf16, #tpu.memory_space<vmem>>, vector<1376x128xbf16>
    %c0_1 = arith.constant 0 : index
    %c0_2 = arith.constant 0 : index
    %1 = vector.load %arg3[%c0_1, %c0_2] : memref<128x16xbf16, #tpu.memory_space<vmem>>, vector<128x16xbf16>
    %cst = arith.constant dense<0.000000e+00> : vector<1376x16xf32>
    %2 = tpu.matmul %0, %1, %cst {dimension_numbers = #tpu.dot_dimension_numbers<[1], [0], [0], [1], [0, 0, 1, 1], [], []>} : vector<1376x128xbf16>, vector<128x16xbf16>, vector<1376x16xf32> -> vector<1376x16xf32>
    %c0_3 = arith.constant 0 : index
    %c0_4 = arith.constant 0 : index
    %3 = vector.load %arg4[%c0_3, %c0_4] : memref<1x16xf32, #tpu.memory_space<vmem>>, vector<1x16xf32>
    %4 = vector.broadcast %3 : vector<1x16xf32> to vector<1376x16xf32>
    %5 = arith.addf %2, %4 : vector<1376x16xf32>
    %c0_5 = arith.constant 0 : index
    %c0_6 = arith.constant 0 : index
    %6 = vector.load %arg2[%c0_5, %c0_6] : memref<1376x2xf32, #tpu.memory_space<vmem>>, vector<1376x2xf32>
    %cst_7 = arith.constant dense<0xFF800000> : vector<1376xf32>
    %7 = vector.multi_reduction <maximumf>, %6, %cst_7 [1] : vector<1376x2xf32> to vector<1376xf32>
    %8 = vector.shape_cast %7 : vector<1376xf32> to vector<1376x1xf32>
    %9 = vector.broadcast %8 : vector<1376x1xf32> to vector<1376x2xf32>
    %10 = arith.subf %6, %9 : vector<1376x2xf32>
    %11 = math.exp %10 : vector<1376x2xf32>
    %cst_8 = arith.constant dense<0.000000e+00> : vector<1376xf32>
    %12 = vector.multi_reduction <add>, %11, %cst_8 [1] : vector<1376x2xf32> to vector<1376xf32>
    %13 = vector.shape_cast %12 : vector<1376xf32> to vector<1376x1xf32>
    %14 = tpu.reciprocal %13 {approx = true} : vector<1376x1xf32> -> vector<1376x1xf32>
    %15 = vector.broadcast %14 : vector<1376x1xf32> to vector<1376x2xf32>
    %16 = arith.mulf %11, %15 : vector<1376x2xf32>
    %17 = vector.extract_strided_slice %5 {offsets = [0, 0], sizes = [1376, 8], strides = [1, 1]} : vector<1376x16xf32> to vector<1376x8xf32>
    %18 = vector.extract_strided_slice %16 {offsets = [0, 0], sizes = [1376, 1], strides = [1, 1]} : vector<1376x2xf32> to vector<1376x1xf32>
    %19 = vector.broadcast %18 : vector<1376x1xf32> to vector<1376x8xf32>
    %20 = arith.mulf %17, %19 : vector<1376x8xf32>
    %21 = vector.extract_strided_slice %5 {offsets = [0, 8], sizes = [1376, 8], strides = [1, 1]} : vector<1376x16xf32> to vector<1376x8xf32>
    %22 = vector.extract_strided_slice %16 {offsets = [0, 1], sizes = [1376, 1], strides = [1, 1]} : vector<1376x2xf32> to vector<1376x1xf32>
    %23 = vector.broadcast %22 : vector<1376x1xf32> to vector<1376x8xf32>
    %24 = arith.mulf %21, %23 : vector<1376x8xf32>
    %25 = arith.addf %20, %24 : vector<1376x8xf32>
    %c0_9 = arith.constant 0 : index
    %c0_10 = arith.constant 0 : index
    %26 = vector.load %arg5[%c0_9, %c0_10] : memref<1376x8xf32, #tpu.memory_space<vmem>>, vector<1376x8xf32>
    tpu.vector_store %arg5[%c0_9, %c0_10], %25 {strides = array<i32>} : memref<1376x8xf32, #tpu.memory_space<vmem>>, vector<1376x8xf32>,
    return
  }
  func.func @transform_0(%arg0: i32) -> (i32, i32) {
    %c0_i32 = arith.constant 0 : i32
    %c0_i32_0 = arith.constant 0 : i32
    return %arg0, %c0_i32 : i32, i32
  }
  func.func @transform_1(%arg0: i32) -> (i32, i32) {
    %c0_i32 = arith.constant 0 : i32
    %c0_i32_0 = arith.constant 0 : i32
    return %arg0, %c0_i32 : i32, i32
  }
  func.func @transform_2(%arg0: i32) -> (i32, i32) {
    %c0_i32 = arith.constant 0 : i32
    %c0_i32_0 = arith.constant 0 : i32
    %c0_i32_1 = arith.constant 0 : i32
    return %c0_i32, %c0_i32_0 : i32, i32
  }
  func.func @transform_3(%arg0: i32) -> (i32, i32) {
    %c0_i32 = arith.constant 0 : i32
    %c0_i32_0 = arith.constant 0 : i32
    %c0_i32_1 = arith.constant 0 : i32
    return %c0_i32, %c0_i32_0 : i32, i32
  }
  func.func @transform_4(%arg0: i32) -> (i32, i32) {
    %c0_i32 = arith.constant 0 : i32
    %c0_i32_0 = arith.constant 0 : i32
    return %arg0, %c0_i32 : i32, i32
  }
}

</mosaic_0001>

<llo_original>
// kernel: conv3d_rt_att.1
$region0: #{conv3d_rt_att.1}
  #allocation0 [shape = 'u32[]', space=smem, size = 0x4, offset = 0x4, fixed_abs, tag = 'smem constant byte address 0x4 - core index']
  #allocation1 [shape = 'u32[72,128]{1,0:T(1,128)}', space=vmem, size = 0x9000, scoped, tag = 'internal scratch']
  %s0 = inlined_call_operand.vmem [shape: bf16[5488,128], index: 0, kind: input, shape index: {}]
  %s1 = inlined_call_operand.vmem [shape: f32[5488,2], index: 1, kind: input, shape index: {}]
  %s2 = inlined_call_operand.vmem [shape: bf16[128,16], index: 2, kind: input, shape index: {}]
  %s3 = inlined_call_operand.vmem [shape: f32[1,16], index: 3, kind: input, shape index: {}]
  %s4 = inlined_call_operand.vmem [shape: f32[5488,8], index: 4, kind: output, shape index: {}]
  %s5 = sld [smem:[#allocation0]]
  $region97: #{conv3d_rt_att.1} parent=0
    _
  %s7 = ssub.s32 1, %s5
  %s8 = scalar_select 0, %s7, %s5
  $region1: #{conv3d_rt_att.1} parent=0
    #allocation2 [shape = 'u8[1409024]{0}', space=vmem, size = 0x158000, scoped, tag = 'output window, operand 0']
    loop: start=0, step=1, limit=6
    $region2: #{conv3d_rt_att.1} parent=1 // loop_pre_header
      _
    $region3: #{conv3d_rt_att.1} parent=1 // loop_header
      %s10 = sphi 0, %s14
      %p11 = scmp.ge.s32.totalorder %s10, 6
      %s20 = sphi 0, %s22
      %s23 = sphi 0, %s20
      %s24 = sphi 0, %s23
      %s40 = sphi 0, %s24
      %s46 = sphi 0, %s48
      %s49 = sphi 0, %s46
      %s50 = sphi 0, %s49
      %s66 = sphi 0, %s50
      %s70 = sphi 0, %s70
      %s72 = sphi 0, %s70
      %s73 = sphi 0, %s72
      %s87 = sphi 0, %s73
      %s91 = sphi 0, %s91
      %s93 = sphi 0, %s91
      %s94 = sphi 0, %s93
      %s108 = sphi 0, %s94
      %s114 = sphi 0, %s116
      %s117 = sphi 0, %s114
      %s118 = sphi 0, %s117
      %s134 = sphi 0, %s118
    $region4: #{conv3d_rt_att.1} parent=1 // loop_header_branch
      %13 = sbr.rel (%p11) target = $region8
    $region5: #{conv3d_rt_att.1} parent=1 // loop_body
      %s15 = ssub.s32 %s10, 1
      %s16 = ssub.s32 %s10, 2
      %s17 = sadd.s32 %s10, 1
      %s18 = ssub.s32 %s10, %s17
      %p19 = scmp.eq.s32.totalorder %s18, 0
      %s21 = sadd.s32 %s20, 1
      %s22 = scalar_select %p19, %s20, %s21
      %p25 = pneg %p19
      %p26 = scmp.eq.s32.totalorder %s10, 3
      %p27 = por %p25, %p26
      %p28 = scmp.ne.s32.totalorder %s20, %s23
      %p29 = scmp.eq.s32.totalorder %s10, 0
      %p30 = por %p28, %p29
      %p31 = scmp.ne.s32.totalorder %s20, %s23
      %p32 = scmp.eq.s32.totalorder %s15, 3
      %p33 = por %p31, %p32
      %p34 = scmp.ne.s32.totalorder %s23, %s24
      %p35 = scmp.eq.s32.totalorder %s15, 0
      %p36 = por %p34, %p35
      %p37 = scmp.ne.s32.totalorder %s23, %s24
      %p38 = scmp.eq.s32.totalorder %s16, 3
      %p39 = por %p37, %p38
      %p41 = scmp.ne.s32.totalorder %s24, %s40
      %p42 = scmp.eq.s32.totalorder %s16, 0
      %p43 = por %p41, %p42
      %s44 = ssub.s32 %s10, %s17
      %p45 = scmp.eq.s32.totalorder %s44, 0
      %s47 = sadd.s32 %s46, 1
      %s48 = scalar_select %p45, %s46, %s47
      %p51 = pneg %p45
      %p52 = scmp.eq.s32.totalorder %s10, 3
      %p53 = por %p51, %p52
      %p54 = scmp.ne.s32.totalorder %s46, %s49
      %p55 = scmp.eq.s32.totalorder %s10, 0
      %p56 = por %p54, %p55
      %p57 = scmp.ne.s32.totalorder %s46, %s49
      %p58 = scmp.eq.s32.totalorder %s15, 3
      %p59 = por %p57, %p58
      %p60 = scmp.ne.s32.totalorder %s49, %s50
      %p61 = scmp.eq.s32.totalorder %s15, 0
      %p62 = por %p60, %p61
      %p63 = scmp.ne.s32.totalorder %s49, %s50
      %p64 = scmp.eq.s32.totalorder %s16, 3
      %p65 = por %p63, %p64
      %p67 = scmp.ne.s32.totalorder %s50, %s66
      %p68 = scmp.eq.s32.totalorder %s16, 0
      %p69 = por %p67, %p68
      %s71 = sadd.s32 %s70, 1
      %p74 = scmp.eq.s32.totalorder %s10, 3
      %p75 = scmp.ne.s32.totalorder %s70, %s72
      %p76 = scmp.eq.s32.totalorder %s10, 0
      %p77 = por %p75, %p76
      %p78 = scmp.ne.s32.totalorder %s70, %s72
      %p79 = scmp.eq.s32.totalorder %s15, 3
      %p80 = por %p78, %p79
      %p81 = scmp.ne.s32.totalorder %s72, %s73
      %p82 = scmp.eq.s32.totalorder %s15, 0
      %p83 = por %p81, %p82
      %p84 = scmp.ne.s32.totalorder %s72, %s73
      %p85 = scmp.eq.s32.totalorder %s16, 3
      %p86 = por %p84, %p85
      %p88 = scmp.ne.s32.totalorder %s73, %s87
      %p89 = scmp.eq.s32.totalorder %s16, 0
      %p90 = por %p88, %p89
      %s92 = sadd.s32 %s91, 1
      %p95 = scmp.eq.s32.totalorder %s10, 3
      %p96 = scmp.ne.s32.totalorder %s91, %s93
      %p97 = scmp.eq.s32.totalorder %s10, 0
      %p98 = por %p96, %p97
      %p99 = scmp.ne.s32.totalorder %s91, %s93
      %p100 = scmp.eq.s32.totalorder %s15, 3
      %p101 = por %p99, %p100
      %p102 = scmp.ne.s32.totalorder %s93, %s94
      %p103 = scmp.eq.s32.totalorder %s15, 0
      %p104 = por %p102, %p103
      %p105 = scmp.ne.s32.totalorder %s93, %s94
      %p106 = scmp.eq.s32.totalorder %s16, 3
      %p107 = por %p105, %p106
      %p109 = scmp.ne.s32.totalorder %s94, %s108
      %p110 = scmp.eq.s32.totalorder %s16, 0
      %p111 = por %p109, %p110
      %s112 = ssub.s32 %s10, %s17
      %p113 = scmp.eq.s32.totalorder %s112, 0
      %s115 = sadd.s32 %s114, 1
      %s116 = scalar_select %p113, %s114, %s115
      %p119 = pneg %p113
      %p120 = scmp.eq.s32.totalorder %s10, 3
      %p121 = por %p119, %p120
      %p122 = scmp.ne.s32.totalorder %s114, %s117
      %p123 = scmp.eq.s32.totalorder %s10, 0
      %p124 = por %p122, %p123
      %p125 = scmp.ne.s32.totalorder %s114, %s117
      %p126 = scmp.eq.s32.totalorder %s15, 3
      %p127 = por %p125, %p126
      %p128 = scmp.ne.s32.totalorder %s117, %s118
      %p129 = scmp.eq.s32.totalorder %s15, 0
      %p130 = por %p128, %p129
      %p131 = scmp.ne.s32.totalorder %s117, %s118
      %p132 = scmp.eq.s32.totalorder %s16, 3
      %p133 = por %p131, %p132
      %p135 = scmp.ne.s32.totalorder %s118, %s134
      %p136 = scmp.eq.s32.totalorder %s16, 0
      %p137 = por %p135, %p136
      %p138 = scmp.le.s32.totalorder 1, %s10
      %p139 = scmp.lt.s32.totalorder %s10, 5
      %p140 = pnand %p138, %p139
      %p141 = pneg %p140
      // Predicated region
      $region9: #{conv3d_rt_att.1} parent=5 // pred_check
        _
      $region10: #{conv3d_rt_att.1} parent=5 // pred_check_branch
        %143 = sbr.rel (%p140) target = $region12
      $region11: #{conv3d_rt_att.1} parent=5 // pred_region
        %s144 = ssub.s32 %s10, 1
        // Predicated region
        $region13: #{conv3d_rt_att.1} parent=11 // pred_check
          %p145 = pneg %p83
        $region14: #{conv3d_rt_att.1} parent=11 // pred_check_branch
          %147 = sbr.rel (%p145) target = $region16
        $region15: #{conv3d_rt_att.1} parent=11 // pred_region
          _
        $region16: #{conv3d_rt_att.1} parent=11 // pred_fallthru
          _
        // Predicated region
        $region17: #{conv3d_rt_att.1} parent=11 // pred_check
          %p148 = pneg %p104
        $region18: #{conv3d_rt_att.1} parent=11 // pred_check_branch
          %150 = sbr.rel (%p148) target = $region20
        $region19: #{conv3d_rt_att.1} parent=11 // pred_region
          _
        $region20: #{conv3d_rt_att.1} parent=11 // pred_fallthru
          _
      $region12: #{conv3d_rt_att.1} parent=5 // pred_fallthru
        _
      %p151 = scmp.lt.s32.totalorder %s10, 4
      // Predicated region
      $region21: #{conv3d_rt_att.1} parent=5 // pred_check
        %p152 = pneg %p151
      $region22: #{conv3d_rt_att.1} parent=5 // pred_check_branch
        %154 = sbr.rel (%p152) target = $region24
      $region23: #{conv3d_rt_att.1} parent=5 // pred_region
        // Predicated region
        $region25: #{conv3d_rt_att.1} parent=23 // pred_check
          %p155 = pneg %p30
        $region26: #{conv3d_rt_att.1} parent=23 // pred_check_branch
          %157 = sbr.rel (%p155) target = $region28
        $region27: #{conv3d_rt_att.1} parent=23 // pred_region
          %s158 = smul.u32 172, %s10
          %s159 = ssub.s32 686, %s158
          %p160 = scmp.lt.s32.totalorder %s159, 172
          %s161 = scalar_select %p160, %s159, 172
          %s162 = smul.u32 4, %s161
          %p163 = scmp.lt.s32.totalorder %s158, 685
          %s164 = scalar_select %p163, %s158, 685
          %s165 = smul.addr %s164, 4
          %s166 = scalar_lea.vmem %s0, %s165
          %s167 = smul.u32 172, %s10
          %s168 = ssub.s32 686, %s167
          %p169 = scmp.lt.s32.totalorder %s168, 172
          %s170 = scalar_select %p169, %s168, 172
          %s171 = smul.u32 4, %s170
        $region28: #{conv3d_rt_att.1} parent=23 // pred_fallthru
          _
        // Predicated region
        $region29: #{conv3d_rt_att.1} parent=23 // pred_check
          %p172 = pneg %p56
        $region30: #{conv3d_rt_att.1} parent=23 // pred_check_branch
          %174 = sbr.rel (%p172) target = $region32
        $region31: #{conv3d_rt_att.1} parent=23 // pred_region
          %s175 = smul.u32 172, %s10
          %s176 = ssub.s32 686, %s175
          %p177 = scmp.lt.s32.totalorder %s176, 172
          %s178 = scalar_select %p177, %s176, 172
          %s179 = smul.u32 8, %s178
          %p180 = scmp.lt.s32.totalorder %s175, 685
          %s181 = scalar_select %p180, %s175, 685
          %s182 = smul.addr %s181, 8
          %s183 = scalar_lea.vmem %s1, %s182
          %s184 = smul.u32 172, %s10
          %s185 = ssub.s32 686, %s184
          %p186 = scmp.lt.s32.totalorder %s185, 172
          %s187 = scalar_select %p186, %s185, 172
          %s188 = smul.u32 8, %s187
        $region32: #{conv3d_rt_att.1} parent=23 // pred_fallthru
          _
      $region24: #{conv3d_rt_att.1} parent=5 // pred_fallthru
        _
      %p189 = scmp.le.s32.totalorder 1, %s10
      %p190 = scmp.lt.s32.totalorder %s10, 5
      %p191 = pnand %p189, %p190
      %p192 = pneg %p191
      // Predicated region
      $region33: #{conv3d_rt_att.1} parent=5 // pred_check
        _
      $region34: #{conv3d_rt_att.1} parent=5 // pred_check_branch
        %194 = sbr.rel (%p191) target = $region36
      $region35: #{conv3d_rt_att.1} parent=5 // pred_region
        %s195 = ssub.s32 %s10, 1
        %s196 = smul.u32 172, %s15
        %s197 = ssub.s32 686, %s196
        %p198 = scmp.lt.s32.totalorder %s197, 172
        %s199 = scalar_select %p198, %s197, 172
        %s200 = smul.u32 4, %s199
        %p201 = scmp.lt.s32.totalorder %s196, 685
        %s202 = scalar_select %p201, %s196, 685
        %s203 = smul.addr %s202, 4
        %s204 = scalar_lea.vmem %s0, %s203
        %p205 = pneg %p36
        %p206 = pneg %p33
        %s207 = smul.u32 172, %s15
        %s208 = ssub.s32 686, %s207
        %p209 = scmp.lt.s32.totalorder %s208, 172
        %s210 = scalar_select %p209, %s208, 172
        %s211 = smul.u32 8, %s210
        %p212 = scmp.lt.s32.totalorder %s207, 685
        %s213 = scalar_select %p212, %s207, 685
        %s214 = smul.addr %s213, 8
        %s215 = scalar_lea.vmem %s1, %s214
        %p216 = pneg %p62
        %p217 = pneg %p59
        %p218 = pneg %p83
        %p219 = pneg %p80
        %p220 = pneg %p104
        %p221 = pneg %p101
        %p222 = pneg %p130
        %p223 = pneg %p127
        %s224 = sand.u32 %s117, 1
        %s225 = sand.u32 %s117, 1
        %s226 = smul.addr %s225, 1376
        %s227 = scalar_lea.vmem [#allocation2], %s226
        %s228 = smul.u32 172, %s15
        %s229 = ssub.s32 686, %s228
        %p230 = scmp.lt.s32.totalorder %s229, 172
        %s231 = scalar_select %p230, %s229, 172
        %s232 = smul.u32 4, %s231
        %p233 = scmp.lt.s32.totalorder %s228, 685
        %s234 = scalar_select %p233, %s228, 685
        %s235 = smul.addr %s234, 4
        %s236 = scalar_lea.vmem %s0, %s235
        %s237 = smul.u32 172, %s15
        %s238 = ssub.s32 686, %s237
        %p239 = scmp.lt.s32.totalorder %s238, 172
        %s240 = scalar_select %p239, %s238, 172
        %s241 = smul.u32 4, %s240
        %s242 = smul.u32 172, %s15
        %s243 = ssub.s32 686, %s242
        %p244 = scmp.lt.s32.totalorder %s243, 172
        %s245 = scalar_select %p244, %s243, 172
        %s246 = smul.u32 8, %s245
        %p247 = scmp.lt.s32.totalorder %s242, 685
        %s248 = scalar_select %p247, %s242, 685
        %s249 = smul.addr %s248, 8
        %s250 = scalar_lea.vmem %s1, %s249
        %s251 = smul.u32 172, %s15
        %s252 = ssub.s32 686, %s251
        %p253 = scmp.lt.s32.totalorder %s252, 172
        %s254 = scalar_select %p253, %s252, 172
        %s255 = smul.u32 8, %s254
        %s256 = smul.u32 172, %s15
        %s257 = ssub.s32 686, %s256
        %p258 = scmp.lt.s32.totalorder %s257, 172
        %s259 = scalar_select %p258, %s257, 172
        %s260 = smul.u32 8, %s259
        %v261 = vld [vmem:[%s236] sm:$0xf]
        %v262 = vld [vmem:[%s236 + $0x4] sm:$0xf]
        %v263 = vld [vmem:[%s236 + $0x8] sm:$0xf]
        %v264 = vld [vmem:[%s236 + $0xc] sm:$0xf]
        %v265 = vld [vmem:[%s236 + $0x10] sm:$0xf]
        %v266 = vld [vmem:[%s236 + $0x14] sm:$0xf]
        %v267 = vld [vmem:[%s236 + $0x18] sm:$0xf]
        %v268 = vld [vmem:[%s236 + $0x1c] sm:$0xf]
        %v269 = vld [vmem:[%s236 + $0x20] sm:$0xf]
        %v270 = vld [vmem:[%s236 + $0x24] sm:$0xf]
        %v271 = vld [vmem:[%s236 + $0x28] sm:$0xf]
        %v272 = vld [vmem:[%s236 + $0x2c] sm:$0xf]
        %v273 = vld [vmem:[%s236 + $0x30] sm:$0xf]
        %v274 = vld [vmem:[%s236 + $0x34] sm:$0xf]
        %v275 = vld [vmem:[%s236 + $0x38] sm:$0xf]
        %v276 = vld [vmem:[%s236 + $0x3c] sm:$0xf]
        %v277 = vld [vmem:[%s236 + $0x40] sm:$0xf]
        %v278 = vld [vmem:[%s236 + $0x44] sm:$0xf]
        %v279 = vld [vmem:[%s236 + $0x48] sm:$0xf]
        %v280 = vld [vmem:[%s236 + $0x4c] sm:$0xf]
        %v281 = vld [vmem:[%s236 + $0x50] sm:$0xf]
        %v282 = vld [vmem:[%s236 + $0x54] sm:$0xf]
        %v283 = vld [vmem:[%s236 + $0x58] sm:$0xf]
        %v284 = vld [vmem:[%s236 + $0x5c] sm:$0xf]
        %v285 = vld [vmem:[%s236 + $0x60] sm:$0xf]
        %v286 = vld [vmem:[%s236 + $0x64] sm:$0xf]
        %v287 = vld [vmem:[%s236 + $0x68] sm:$0xf]
        %v288 = vld [vmem:[%s236 + $0x6c] sm:$0xf]
        %v289 = vld [vmem:[%s236 + $0x70] sm:$0xf]
        %v290 = vld [vmem:[%s236 + $0x74] sm:$0xf]
        %v291 = vld [vmem:[%s236 + $0x78] sm:$0xf]
        %v292 = vld [vmem:[%s236 + $0x7c] sm:$0xf]
        %v293 = vld [vmem:[%s236 + $0x80] sm:$0xf]
        %v294 = vld [vmem:[%s236 + $0x84] sm:$0xf]
        %v295 = vld [vmem:[%s236 + $0x88] sm:$0xf]
        %v296 = vld [vmem:[%s236 + $0x8c] sm:$0xf]
        %v297 = vld [vmem:[%s236 + $0x90] sm:$0xf]
        %v298 = vld [vmem:[%s236 + $0x94] sm:$0xf]
        %v299 = vld [vmem:[%s236 + $0x98] sm:$0xf]
        %v300 = vld [vmem:[%s236 + $0x9c] sm:$0xf]
        %v301 = vld [vmem:[%s236 + $0xa0] sm:$0xf]
        %v302 = vld [vmem:[%s236 + $0xa4] sm:$0xf]
        %v303 = vld [vmem:[%s236 + $0xa8] sm:$0xf]
        %v304 = vld [vmem:[%s236 + $0xac] sm:$0xf]
        %v305 = vld [vmem:[%s236 + $0xb0] sm:$0xf]
        %v306 = vld [vmem:[%s236 + $0xb4] sm:$0xf]
        %v307 = vld [vmem:[%s236 + $0xb8] sm:$0xf]
        %v308 = vld [vmem:[%s236 + $0xbc] sm:$0xf]
        %v309 = vld [vmem:[%s236 + $0xc0] sm:$0xf]
        %v310 = vld [vmem:[%s236 + $0xc4] sm:$0xf]
        %v311 = vld [vmem:[%s236 + $0xc8] sm:$0xf]
        %v312 = vld [vmem:[%s236 + $0xcc] sm:$0xf]
        %v313 = vld [vmem:[%s236 + $0xd0] sm:$0xf]
        %v314 = vld [vmem:[%s236 + $0xd4] sm:$0xf]
        %v315 = vld [vmem:[%s236 + $0xd8] sm:$0xf]
        %v316 = vld [vmem:[%s236 + $0xdc] sm:$0xf]
        %v317 = vld [vmem:[%s236 + $0xe0] sm:$0xf]
        %v318 = vld [vmem:[%s236 + $0xe4] sm:$0xf]
        %v319 = vld [vmem:[%s236 + $0xe8] sm:$0xf]
        %v320 = vld [vmem:[%s236 + $0xec] sm:$0xf]
        %v321 = vld [vmem:[%s236 + $0xf0] sm:$0xf]
        %v322 = vld [vmem:[%s236 + $0xf4] sm:$0xf]
        %v323 = vld [vmem:[%s236 + $0xf8] sm:$0xf]
        %v324 = vld [vmem:[%s236 + $0xfc] sm:$0xf]
        %v325 = vld [vmem:[%s236 + $0x100] sm:$0xf]
        %v326 = vld [vmem:[%s236 + $0x104] sm:$0xf]
        %v327 = vld [vmem:[%s236 + $0x108] sm:$0xf]
        %v328 = vld [vmem:[%s236 + $0x10c] sm:$0xf]
        %v329 = vld [vmem:[%s236 + $0x110] sm:$0xf]
        %v330 = vld [vmem:[%s236 + $0x114] sm:$0xf]
        %v331 = vld [vmem:[%s236 + $0x118] sm:$0xf]
        %v332 = vld [vmem:[%s236 + $0x11c] sm:$0xf]
        %v333 = vld [vmem:[%s236 + $0x120] sm:$0xf]
        %v334 = vld [vmem:[%s236 + $0x124] sm:$0xf]
        %v335 = vld [vmem:[%s236 + $0x128] sm:$0xf]
        %v336 = vld [vmem:[%s236 + $0x12c] sm:$0xf]
        %v337 = vld [vmem:[%s236 + $0x130] sm:$0xf]
        %v338 = vld [vmem:[%s236 + $0x134] sm:$0xf]
        %v339 = vld [vmem:[%s236 + $0x138] sm:$0xf]
        %v340 = vld [vmem:[%s236 + $0x13c] sm:$0xf]
        %v341 = vld [vmem:[%s236 + $0x140] sm:$0xf]
        %v342 = vld [vmem:[%s236 + $0x144] sm:$0xf]
        %v343 = vld [vmem:[%s236 + $0x148] sm:$0xf]
        %v344 = vld [vmem:[%s236 + $0x14c] sm:$0xf]
        %v345 = vld [vmem:[%s236 + $0x150] sm:$0xf]
        %v346 = vld [vmem:[%s236 + $0x154] sm:$0xf]
        %v347 = vld [vmem:[%s236 + $0x158] sm:$0xf]
        %v348 = vld [vmem:[%s236 + $0x15c] sm:$0xf]
        %v349 = vld [vmem:[%s236 + $0x160] sm:$0xf]
        %v350 = vld [vmem:[%s236 + $0x164] sm:$0xf]
        %v351 = vld [vmem:[%s236 + $0x168] sm:$0xf]
        %v352 = vld [vmem:[%s236 + $0x16c] sm:$0xf]
        %v353 = vld [vmem:[%s236 + $0x170] sm:$0xf]
        %v354 = vld [vmem:[%s236 + $0x174] sm:$0xf]
        %v355 = vld [vmem:[%s236 + $0x178] sm:$0xf]
        %v356 = vld [vmem:[%s236 + $0x17c] sm:$0xf]
        %v357 = vld [vmem:[%s236 + $0x180] sm:$0xf]
        %v358 = vld [vmem:[%s236 + $0x184] sm:$0xf]
        %v359 = vld [vmem:[%s236 + $0x188] sm:$0xf]
        %v360 = vld [vmem:[%s236 + $0x18c] sm:$0xf]
        %v361 = vld [vmem:[%s236 + $0x190] sm:$0xf]
        %v362 = vld [vmem:[%s236 + $0x194] sm:$0xf]
        %v363 = vld [vmem:[%s236 + $0x198] sm:$0xf]
        %v364 = vld [vmem:[%s236 + $0x19c] sm:$0xf]
        %v365 = vld [vmem:[%s236 + $0x1a0] sm:$0xf]
        %v366 = vld [vmem:[%s236 + $0x1a4] sm:$0xf]
        %v367 = vld [vmem:[%s236 + $0x1a8] sm:$0xf]
        %v368 = vld [vmem:[%s236 + $0x1ac] sm:$0xf]
        %v369 = vld [vmem:[%s236 + $0x1b0] sm:$0xf]
        %v370 = vld [vmem:[%s236 + $0x1b4] sm:$0xf]
        %v371 = vld [vmem:[%s236 + $0x1b8] sm:$0xf]
        %v372 = vld [vmem:[%s236 + $0x1bc] sm:$0xf]
        %v373 = vld [vmem:[%s236 + $0x1c0] sm:$0xf]
        %v374 = vld [vmem:[%s236 + $0x1c4] sm:$0xf]
        %v375 = vld [vmem:[%s236 + $0x1c8] sm:$0xf]
        %v376 = vld [vmem:[%s236 + $0x1cc] sm:$0xf]
        %v377 = vld [vmem:[%s236 + $0x1d0] sm:$0xf]
        %v378 = vld [vmem:[%s236 + $0x1d4] sm:$0xf]
        %v379 = vld [vmem:[%s236 + $0x1d8] sm:$0xf]
        %v380 = vld [vmem:[%s236 + $0x1dc] sm:$0xf]
        %v381 = vld [vmem:[%s236 + $0x1e0] sm:$0xf]
        %v382 = vld [vmem:[%s236 + $0x1e4] sm:$0xf]
        %v383 = vld [vmem:[%s236 + $0x1e8] sm:$0xf]
        %v384 = vld [vmem:[%s236 + $0x1ec] sm:$0xf]
        %v385 = vld [vmem:[%s236 + $0x1f0] sm:$0xf]
        %v386 = vld [vmem:[%s236 + $0x1f4] sm:$0xf]
        %v387 = vld [vmem:[%s236 + $0x1f8] sm:$0xf]
        %v388 = vld [vmem:[%s236 + $0x1fc] sm:$0xf]
        %v389 = vld [vmem:[%s236 + $0x200] sm:$0xf]
        %v390 = vld [vmem:[%s236 + $0x204] sm:$0xf]
        %v391 = vld [vmem:[%s236 + $0x208] sm:$0xf]
        %v392 = vld [vmem:[%s236 + $0x20c] sm:$0xf]
        %v393 = vld [vmem:[%s236 + $0x210] sm:$0xf]
        %v394 = vld [vmem:[%s236 + $0x214] sm:$0xf]
        %v395 = vld [vmem:[%s236 + $0x218] sm:$0xf]
        %v396 = vld [vmem:[%s236 + $0x21c] sm:$0xf]
        %v397 = vld [vmem:[%s236 + $0x220] sm:$0xf]
        %v398 = vld [vmem:[%s236 + $0x224] sm:$0xf]
        %v399 = vld [vmem:[%s236 + $0x228] sm:$0xf]
        %v400 = vld [vmem:[%s236 + $0x22c] sm:$0xf]
        %v401 = vld [vmem:[%s236 + $0x230] sm:$0xf]
        %v402 = vld [vmem:[%s236 + $0x234] sm:$0xf]
        %v403 = vld [vmem:[%s236 + $0x238] sm:$0xf]
        %v404 = vld [vmem:[%s236 + $0x23c] sm:$0xf]
        %v405 = vld [vmem:[%s236 + $0x240] sm:$0xf]
        %v406 = vld [vmem:[%s236 + $0x244] sm:$0xf]
        %v407 = vld [vmem:[%s236 + $0x248] sm:$0xf]
        %v408 = vld [vmem:[%s236 + $0x24c] sm:$0xf]
        %v409 = vld [vmem:[%s236 + $0x250] sm:$0xf]
        %v410 = vld [vmem:[%s236 + $0x254] sm:$0xf]
        %v411 = vld [vmem:[%s236 + $0x258] sm:$0xf]
        %v412 = vld [vmem:[%s236 + $0x25c] sm:$0xf]
        %v413 = vld [vmem:[%s236 + $0x260] sm:$0xf]
        %v414 = vld [vmem:[%s236 + $0x264] sm:$0xf]
        %v415 = vld [vmem:[%s236 + $0x268] sm:$0xf]
        %v416 = vld [vmem:[%s236 + $0x26c] sm:$0xf]
        %v417 = vld [vmem:[%s236 + $0x270] sm:$0xf]
        %v418 = vld [vmem:[%s236 + $0x274] sm:$0xf]
        %v419 = vld [vmem:[%s236 + $0x278] sm:$0xf]
        %v420 = vld [vmem:[%s236 + $0x27c] sm:$0xf]
        %v421 = vld [vmem:[%s236 + $0x280] sm:$0xf]
        %v422 = vld [vmem:[%s236 + $0x284] sm:$0xf]
        %v423 = vld [vmem:[%s236 + $0x288] sm:$0xf]
        %v424 = vld [vmem:[%s236 + $0x28c] sm:$0xf]
        %v425 = vld [vmem:[%s236 + $0x290] sm:$0xf]
        %v426 = vld [vmem:[%s236 + $0x294] sm:$0xf]
        %v427 = vld [vmem:[%s236 + $0x298] sm:$0xf]
        %v428 = vld [vmem:[%s236 + $0x29c] sm:$0xf]
        %v429 = vld [vmem:[%s236 + $0x2a0] sm:$0xf]
        %v430 = vld [vmem:[%s236 + $0x2a4] sm:$0xf]
        %v431 = vld [vmem:[%s236 + $0x2a8] sm:$0xf]
        %v432 = vld [vmem:[%s236 + $0x2ac] sm:$0xf]
        %v433 = vld [vmem:[%s2] sm:$0xf]
        %v434 = vld [vmem:[%s2 + $0x4] sm:$0xf]
        %v435 = vld [vmem:[%s2 + $0x8] sm:$0xf]
        %v436 = vld [vmem:[%s2 + $0xc] sm:$0xf]
        %v437 = vld [vmem:[%s2 + $0x10] sm:$0xf]
        %v438 = vld [vmem:[%s2 + $0x14] sm:$0xf]
        %v439 = vld [vmem:[%s2 + $0x18] sm:$0xf]
        %v440 = vld [vmem:[%s2 + $0x1c] sm:$0xf]
        %v441 = vld [vmem:[%s2 + $0x20] sm:$0xf]
        %v442 = vld [vmem:[%s2 + $0x24] sm:$0xf]
        %v443 = vld [vmem:[%s2 + $0x28] sm:$0xf]
        %v444 = vld [vmem:[%s2 + $0x2c] sm:$0xf]
        %v445 = vld [vmem:[%s2 + $0x30] sm:$0xf]
        %v446 = vld [vmem:[%s2 + $0x34] sm:$0xf]
        %v447 = vld [vmem:[%s2 + $0x38] sm:$0xf]
        %v448 = vld [vmem:[%s2 + $0x3c] sm:$0xf]
        %v449 = vld [vmem:[%s3] sm:$0x1]
        %v451 = vperm.slane %v449, 0
        %v625 = vunpack.c.l.b16 %v261
        %v626 = vunpack.c.l.b16 %v262
        %v627 = vunpack.c.l.b16 %v263
        %v628 = vunpack.c.l.b16 %v264
        %v629 = vunpack.c.l.b16 %v265
        %v630 = vunpack.c.l.b16 %v266
        %v631 = vunpack.c.l.b16 %v267
        %v632 = vunpack.c.l.b16 %v268
        %v633 = vunpack.c.l.b16 %v269
        %v634 = vunpack.c.l.b16 %v270
        %v635 = vunpack.c.l.b16 %v271
        %v636 = vunpack.c.l.b16 %v272
        %v637 = vunpack.c.l.b16 %v273
        %v638 = vunpack.c.l.b16 %v274
        %v639 = vunpack.c.l.b16 %v275
        %v640 = vunpack.c.l.b16 %v276
        %v641 = vunpack.c.l.b16 %v277
        %v642 = vunpack.c.l.b16 %v278
        %v643 = vunpack.c.l.b16 %v279
        %v644 = vunpack.c.l.b16 %v280
        %v645 = vunpack.c.l.b16 %v281
        %v646 = vunpack.c.l.b16 %v282
        %v647 = vunpack.c.l.b16 %v283
        %v648 = vunpack.c.l.b16 %v284
        %v649 = vunpack.c.l.b16 %v285
        %v650 = vunpack.c.l.b16 %v286
        %v651 = vunpack.c.l.b16 %v287
        %v652 = vunpack.c.l.b16 %v288
        %v653 = vunpack.c.l.b16 %v289
        %v654 = vunpack.c.l.b16 %v290
        %v655 = vunpack.c.l.b16 %v291
        %v656 = vunpack.c.l.b16 %v292
        %v657 = vunpack.c.l.b16 %v293
        %v658 = vunpack.c.l.b16 %v294
        %v659 = vunpack.c.l.b16 %v295
        %v660 = vunpack.c.l.b16 %v296
        %v661 = vunpack.c.l.b16 %v297
        %v662 = vunpack.c.l.b16 %v298
        %v663 = vunpack.c.l.b16 %v299
        %v664 = vunpack.c.l.b16 %v300
        %v665 = vunpack.c.l.b16 %v301
        %v666 = vunpack.c.l.b16 %v302
        %v667 = vunpack.c.l.b16 %v303
        %v668 = vunpack.c.l.b16 %v304
        %v669 = vunpack.c.l.b16 %v305
        %v670 = vunpack.c.l.b16 %v306
        %v671 = vunpack.c.l.b16 %v307
        %v672 = vunpack.c.l.b16 %v308
        %v673 = vunpack.c.l.b16 %v309
        %v674 = vunpack.c.l.b16 %v310
        %v675 = vunpack.c.l.b16 %v311
        %v676 = vunpack.c.l.b16 %v312
        %v677 = vunpack.c.l.b16 %v313
        %v678 = vunpack.c.l.b16 %v314
        %v679 = vunpack.c.l.b16 %v315
        %v680 = vunpack.c.l.b16 %v316
        %v681 = vunpack.c.l.b16 %v317
        %v682 = vunpack.c.l.b16 %v318
        %v683 = vunpack.c.l.b16 %v319
        %v684 = vunpack.c.l.b16 %v320
        %v685 = vunpack.c.l.b16 %v321
        %v686 = vunpack.c.l.b16 %v322
        %v687 = vunpack.c.l.b16 %v323
        %v688 = vunpack.c.l.b16 %v324
        %v689 = vunpack.c.l.b16 %v325
        %v690 = vunpack.c.l.b16 %v326
        %v691 = vunpack.c.l.b16 %v327
        %v692 = vunpack.c.l.b16 %v328
        %v693 = vunpack.c.l.b16 %v329
        %v694 = vunpack.c.l.b16 %v330
        %v695 = vunpack.c.l.b16 %v331
        %v696 = vunpack.c.l.b16 %v332
        %v697 = vunpack.c.l.b16 %v333
        %v698 = vunpack.c.l.b16 %v334
        %v699 = vunpack.c.l.b16 %v335
        %v700 = vunpack.c.l.b16 %v336
        %v701 = vunpack.c.l.b16 %v337
        %v702 = vunpack.c.l.b16 %v338
        %v703 = vunpack.c.l.b16 %v339
        %v704 = vunpack.c.l.b16 %v340
        %v705 = vunpack.c.l.b16 %v341
        %v706 = vunpack.c.l.b16 %v342
        %v707 = vunpack.c.l.b16 %v343
        %v708 = vunpack.c.l.b16 %v344
        %v709 = vunpack.c.l.b16 %v345
        %v710 = vunpack.c.l.b16 %v346
        %v711 = vunpack.c.l.b16 %v347
        %v712 = vunpack.c.l.b16 %v348
        %v713 = vunpack.c.l.b16 %v349
        %v714 = vunpack.c.l.b16 %v350
        %v715 = vunpack.c.l.b16 %v351
        %v716 = vunpack.c.l.b16 %v352
        %v717 = vunpack.c.l.b16 %v353
        %v718 = vunpack.c.l.b16 %v354
        %v719 = vunpack.c.l.b16 %v355
        %v720 = vunpack.c.l.b16 %v356
        %v721 = vunpack.c.l.b16 %v357
        %v722 = vunpack.c.l.b16 %v358
        %v723 = vunpack.c.l.b16 %v359
        %v724 = vunpack.c.l.b16 %v360
        %v725 = vunpack.c.l.b16 %v361
        %v726 = vunpack.c.l.b16 %v362
        %v727 = vunpack.c.l.b16 %v363
        %v728 = vunpack.c.l.b16 %v364
        %v729 = vunpack.c.l.b16 %v365
        %v730 = vunpack.c.l.b16 %v366
        %v731 = vunpack.c.l.b16 %v367
        %v732 = vunpack.c.l.b16 %v368
        %v733 = vunpack.c.l.b16 %v369
        %v734 = vunpack.c.l.b16 %v370
        %v735 = vunpack.c.l.b16 %v371
        %v736 = vunpack.c.l.b16 %v372
        %v737 = vunpack.c.l.b16 %v373
        %v738 = vunpack.c.l.b16 %v374
        %v739 = vunpack.c.l.b16 %v375
        %v740 = vunpack.c.l.b16 %v376
        %v741 = vunpack.c.l.b16 %v377
        %v742 = vunpack.c.l.b16 %v378
        %v743 = vunpack.c.l.b16 %v379
        %v744 = vunpack.c.l.b16 %v380
        %v745 = vunpack.c.l.b16 %v381
        %v746 = vunpack.c.l.b16 %v382
        %v747 = vunpack.c.l.b16 %v383
        %v748 = vunpack.c.l.b16 %v384
        %v749 = vunpack.c.l.b16 %v385
        %v750 = vunpack.c.l.b16 %v386
        %v751 = vunpack.c.l.b16 %v387
        %v752 = vunpack.c.l.b16 %v388
        %v753 = vunpack.c.l.b16 %v389
        %v754 = vunpack.c.l.b16 %v390
        %v755 = vunpack.c.l.b16 %v391
        %v756 = vunpack.c.l.b16 %v392
        %v757 = vunpack.c.l.b16 %v393
        %v758 = vunpack.c.l.b16 %v394
        %v759 = vunpack.c.l.b16 %v395
        %v760 = vunpack.c.l.b16 %v396
        %v761 = vunpack.c.l.b16 %v397
        %v762 = vunpack.c.l.b16 %v398
        %v763 = vunpack.c.l.b16 %v399
        %v764 = vunpack.c.l.b16 %v400
        %v765 = vunpack.c.l.b16 %v401
        %v766 = vunpack.c.l.b16 %v402
        %v767 = vunpack.c.l.b16 %v403
        %v768 = vunpack.c.l.b16 %v404
        %v769 = vunpack.c.l.b16 %v405
        %v770 = vunpack.c.l.b16 %v406
        %v771 = vunpack.c.l.b16 %v407
        %v772 = vunpack.c.l.b16 %v408
        %v773 = vunpack.c.l.b16 %v409
        %v774 = vunpack.c.l.b16 %v410
        %v775 = vunpack.c.l.b16 %v411
        %v776 = vunpack.c.l.b16 %v412
        %v777 = vunpack.c.l.b16 %v413
        %v778 = vunpack.c.l.b16 %v414
        %v779 = vunpack.c.l.b16 %v415
        %v780 = vunpack.c.l.b16 %v416
        %v781 = vunpack.c.l.b16 %v417
        %v782 = vunpack.c.l.b16 %v418
        %v783 = vunpack.c.l.b16 %v419
        %v784 = vunpack.c.l.b16 %v420
        %v785 = vunpack.c.l.b16 %v421
        %v786 = vunpack.c.l.b16 %v422
        %v787 = vunpack.c.l.b16 %v423
        %v788 = vunpack.c.l.b16 %v424
        %v789 = vunpack.c.l.b16 %v425
        %v790 = vunpack.c.l.b16 %v426
        %v791 = vunpack.c.l.b16 %v427
        %v792 = vunpack.c.l.b16 %v428
        %v793 = vunpack.c.l.b16 %v429
        %v794 = vunpack.c.l.b16 %v430
        %v795 = vunpack.c.l.b16 %v431
        %v796 = vunpack.c.l.b16 %v432
        %v797 = vpack.c.b16 %v626, %v625
        %v798 = vpack.c.b16 %v628, %v627
        %v799 = vpack.c.b16 %v630, %v629
        %v800 = vpack.c.b16 %v632, %v631
        %v801 = vpack.c.b16 %v634, %v633
        %v802 = vpack.c.b16 %v636, %v635
        %v803 = vpack.c.b16 %v638, %v637
        %v804 = vpack.c.b16 %v640, %v639
        %v805 = vpack.c.b16 %v642, %v641
        %v806 = vpack.c.b16 %v644, %v643
        %v807 = vpack.c.b16 %v646, %v645
        %v808 = vpack.c.b16 %v648, %v647
        %v809 = vpack.c.b16 %v650, %v649
        %v810 = vpack.c.b16 %v652, %v651
        %v811 = vpack.c.b16 %v654, %v653
        %v812 = vpack.c.b16 %v656, %v655
        %v813 = vpack.c.b16 %v658, %v657
        %v814 = vpack.c.b16 %v660, %v659
        %v815 = vpack.c.b16 %v662, %v661
        %v816 = vpack.c.b16 %v664, %v663
        %v817 = vpack.c.b16 %v666, %v665
        %v818 = vpack.c.b16 %v668, %v667
        %v819 = vpack.c.b16 %v670, %v669
        %v820 = vpack.c.b16 %v672, %v671
        %v821 = vpack.c.b16 %v674, %v673
        %v822 = vpack.c.b16 %v676, %v675
        %v823 = vpack.c.b16 %v678, %v677
        %v824 = vpack.c.b16 %v680, %v679
        %v825 = vpack.c.b16 %v682, %v681
        %v826 = vpack.c.b16 %v684, %v683
        %v827 = vpack.c.b16 %v686, %v685
        %v828 = vpack.c.b16 %v688, %v687
        %v829 = vpack.c.b16 %v690, %v689
        %v830 = vpack.c.b16 %v692, %v691
        %v831 = vpack.c.b16 %v694, %v693
        %v832 = vpack.c.b16 %v696, %v695
        %v833 = vpack.c.b16 %v698, %v697
        %v834 = vpack.c.b16 %v700, %v699
        %v835 = vpack.c.b16 %v702, %v701
        %v836 = vpack.c.b16 %v704, %v703
        %v837 = vpack.c.b16 %v706, %v705
        %v838 = vpack.c.b16 %v708, %v707
        %v839 = vpack.c.b16 %v710, %v709
        %v840 = vpack.c.b16 %v712, %v711
        %v841 = vpack.c.b16 %v714, %v713
        %v842 = vpack.c.b16 %v716, %v715
        %v843 = vpack.c.b16 %v718, %v717
        %v844 = vpack.c.b16 %v720, %v719
        %v845 = vpack.c.b16 %v722, %v721
        %v846 = vpack.c.b16 %v724, %v723
        %v847 = vpack.c.b16 %v726, %v725
        %v848 = vpack.c.b16 %v728, %v727
        %v849 = vpack.c.b16 %v730, %v729
        %v850 = vpack.c.b16 %v732, %v731
        %v851 = vpack.c.b16 %v734, %v733
        %v852 = vpack.c.b16 %v736, %v735
        %v853 = vpack.c.b16 %v738, %v737
        %v854 = vpack.c.b16 %v740, %v739
        %v855 = vpack.c.b16 %v742, %v741
        %v856 = vpack.c.b16 %v744, %v743
        %v857 = vpack.c.b16 %v746, %v745
        %v858 = vpack.c.b16 %v748, %v747
        %v859 = vpack.c.b16 %v750, %v749
        %v860 = vpack.c.b16 %v752, %v751
        %v861 = vpack.c.b16 %v754, %v753
        %v862 = vpack.c.b16 %v756, %v755
        %v863 = vpack.c.b16 %v758, %v757
        %v864 = vpack.c.b16 %v760, %v759
        %v865 = vpack.c.b16 %v762, %v761
        %v866 = vpack.c.b16 %v764, %v763
        %v867 = vpack.c.b16 %v766, %v765
        %v868 = vpack.c.b16 %v768, %v767
        %v869 = vpack.c.b16 %v770, %v769
        %v870 = vpack.c.b16 %v772, %v771
        %v871 = vpack.c.b16 %v774, %v773
        %v872 = vpack.c.b16 %v776, %v775
        %v873 = vpack.c.b16 %v778, %v777
        %v874 = vpack.c.b16 %v780, %v779
        %v875 = vpack.c.b16 %v782, %v781
        %v876 = vpack.c.b16 %v784, %v783
        %v877 = vpack.c.b16 %v786, %v785
        %v878 = vpack.c.b16 %v788, %v787
        %v879 = vpack.c.b16 %v790, %v789
        %v880 = vpack.c.b16 %v792, %v791
        %v881 = vpack.c.b16 %v794, %v793
        %v882 = vpack.c.b16 %v796, %v795
        %v985 = vunpack.c.l.b16 %v433
        %v986 = vunpack.c.l.b16 %v434
        %v987 = vunpack.c.l.b16 %v435
        %v988 = vunpack.c.l.b16 %v436
        %v989 = vunpack.c.l.b16 %v437
        %v990 = vunpack.c.l.b16 %v438
        %v991 = vunpack.c.l.b16 %v439
        %v992 = vunpack.c.l.b16 %v440
        %v993 = vunpack.c.l.b16 %v441
        %v994 = vunpack.c.l.b16 %v442
        %v995 = vunpack.c.l.b16 %v443
        %v996 = vunpack.c.l.b16 %v444
        %v997 = vunpack.c.l.b16 %v445
        %v998 = vunpack.c.l.b16 %v446
        %v999 = vunpack.c.l.b16 %v447
        %v1000 = vunpack.c.l.b16 %v448
        %v1001 = vpack.c.b16 %v986, %v985
        %v1002 = vpack.c.b16 %v988, %v987
        %v1003 = vpack.c.b16 %v990, %v989
        %v1004 = vpack.c.b16 %v992, %v991
        %v1005 = vpack.c.b16 %v994, %v993
        %v1006 = vpack.c.b16 %v996, %v995
        %v1007 = vpack.c.b16 %v998, %v997
        %v1008 = vpack.c.b16 %v1000, %v999
        %1017 = vmatpush.bf16.msra.mxu0 %v1008
        %1018 = vmatpush.bf16.msra.mxu0 %v1007
        %1019 = vmatpush.bf16.msra.mxu0 %v1006
        %1020 = vmatpush.bf16.msra.mxu0 %v1005
        %1021 = vmatpush.bf16.msra.mxu0 %v1004
        %1022 = vmatpush.bf16.msra.mxu0 %v1003
        %1023 = vmatpush.bf16.msra.mxu0 %v1002
        %1024 = vmatpush.bf16.msra.mxu0 %v1001
        %1025 = vmatmul.bf16.gmra.mxu0 %v797
        %v1026 = vpop.f32.mrf.mxu0
        %v1027 = vadd.f32 %v451, %v1026
        %v1028 = vpop.f32.mrf.mxu0
        %v1029 = vadd.f32 %v451, %v1028
        %1030 = vmatmul.bf16.gmra.mxu0 %v798
        %v1031 = vpop.f32.mrf.mxu0
        %v1032 = vadd.f32 %v451, %v1031
        %v1033 = vpop.f32.mrf.mxu0
        %v1034 = vadd.f32 %v451, %v1033
        %1035 = vmatmul.bf16.gmra.mxu0 %v799
        %v1036 = vpop.f32.mrf.mxu0
        %v1037 = vadd.f32 %v451, %v1036
        %v1038 = vpop.f32.mrf.mxu0
        %v1039 = vadd.f32 %v451, %v1038
        %1040 = vmatmul.bf16.gmra.mxu0 %v800
        %v1041 = vpop.f32.mrf.mxu0
        %v1042 = vadd.f32 %v451, %v1041
        %v1043 = vpop.f32.mrf.mxu0
        %v1044 = vadd.f32 %v451, %v1043
        %1045 = vmatmul.bf16.gmra.mxu0 %v801
        %v1046 = vpop.f32.mrf.mxu0
        %v1047 = vadd.f32 %v451, %v1046
        %v1048 = vpop.f32.mrf.mxu0
        %v1049 = vadd.f32 %v451, %v1048
        %1050 = vmatmul.bf16.gmra.mxu0 %v802
        %v1051 = vpop.f32.mrf.mxu0
        %v1052 = vadd.f32 %v451, %v1051
        %v1053 = vpop.f32.mrf.mxu0
        %v1054 = vadd.f32 %v451, %v1053
        %1055 = vmatmul.bf16.gmra.mxu0 %v803
        %v1056 = vpop.f32.mrf.mxu0
        %v1057 = vadd.f32 %v451, %v1056
        %v1058 = vpop.f32.mrf.mxu0
        %v1059 = vadd.f32 %v451, %v1058
        %1060 = vmatmul.bf16.gmra.mxu0 %v804
        %v1061 = vpop.f32.mrf.mxu0
        %v1062 = vadd.f32 %v451, %v1061
        %v1063 = vpop.f32.mrf.mxu0
        %v1064 = vadd.f32 %v451, %v1063
        %1065 = vmatmul.bf16.gmra.mxu0 %v805
        %v1066 = vpop.f32.mrf.mxu0
        %v1067 = vadd.f32 %v451, %v1066
        %v1068 = vpop.f32.mrf.mxu0
        %v1069 = vadd.f32 %v451, %v1068
        %1070 = vmatmul.bf16.gmra.mxu0 %v806
        %v1071 = vpop.f32.mrf.mxu0
        %v1072 = vadd.f32 %v451, %v1071
        %v1073 = vpop.f32.mrf.mxu0
        %v1074 = vadd.f32 %v451, %v1073
        %1075 = vmatmul.bf16.gmra.mxu0 %v807
        %v1076 = vpop.f32.mrf.mxu0
        %v1077 = vadd.f32 %v451, %v1076
        %v1078 = vpop.f32.mrf.mxu0
        %v1079 = vadd.f32 %v451, %v1078
        %1080 = vmatmul.bf16.gmra.mxu0 %v808
        %v1081 = vpop.f32.mrf.mxu0
        %v1082 = vadd.f32 %v451, %v1081
        %v1083 = vpop.f32.mrf.mxu0
        %v1084 = vadd.f32 %v451, %v1083
        %1085 = vmatmul.bf16.gmra.mxu0 %v809
        %v1086 = vpop.f32.mrf.mxu0
        %v1087 = vadd.f32 %v451, %v1086
        %v1088 = vpop.f32.mrf.mxu0
        %v1089 = vadd.f32 %v451, %v1088
        %1090 = vmatmul.bf16.gmra.mxu0 %v810
        %v1091 = vpop.f32.mrf.mxu0
        %v1092 = vadd.f32 %v451, %v1091
        %v1093 = vpop.f32.mrf.mxu0
        %v1094 = vadd.f32 %v451, %v1093
        %1095 = vmatmul.bf16.gmra.mxu0 %v811
        %v1096 = vpop.f32.mrf.mxu0
        %v1097 = vadd.f32 %v451, %v1096
        %v1098 = vpop.f32.mrf.mxu0
        %v1099 = vadd.f32 %v451, %v1098
        %1100 = vmatmul.bf16.gmra.mxu0 %v812
        %v1101 = vpop.f32.mrf.mxu0
        %v1102 = vadd.f32 %v451, %v1101
        %v1103 = vpop.f32.mrf.mxu0
        %v1104 = vadd.f32 %v451, %v1103
        %1105 = vmatmul.bf16.gmra.mxu0 %v813
        %v1106 = vpop.f32.mrf.mxu0
        %v1107 = vadd.f32 %v451, %v1106
        %v1108 = vpop.f32.mrf.mxu0
        %v1109 = vadd.f32 %v451, %v1108
        %1110 = vmatmul.bf16.gmra.mxu0 %v814
        %v1111 = vpop.f32.mrf.mxu0
        %v1112 = vadd.f32 %v451, %v1111
        %v1113 = vpop.f32.mrf.mxu0
        %v1114 = vadd.f32 %v451, %v1113
        %1115 = vmatmul.bf16.gmra.mxu0 %v815
        %v1116 = vpop.f32.mrf.mxu0
        %v1117 = vadd.f32 %v451, %v1116
        %v1118 = vpop.f32.mrf.mxu0
        %v1119 = vadd.f32 %v451, %v1118
        %1120 = vmatmul.bf16.gmra.mxu0 %v816
        %v1121 = vpop.f32.mrf.mxu0
        %v1122 = vadd.f32 %v451, %v1121
        %v1123 = vpop.f32.mrf.mxu0
        %v1124 = vadd.f32 %v451, %v1123
        %1125 = vmatmul.bf16.gmra.mxu0 %v817
        %v1126 = vpop.f32.mrf.mxu0
        %v1127 = vadd.f32 %v451, %v1126
        %v1128 = vpop.f32.mrf.mxu0
        %v1129 = vadd.f32 %v451, %v1128
        %1130 = vmatmul.bf16.gmra.mxu0 %v818
        %v1131 = vpop.f32.mrf.mxu0
        %v1132 = vadd.f32 %v451, %v1131
        %v1133 = vpop.f32.mrf.mxu0
        %v1134 = vadd.f32 %v451, %v1133
        %1135 = vmatmul.bf16.gmra.mxu0 %v819
        %v1136 = vpop.f32.mrf.mxu0
        %v1137 = vadd.f32 %v451, %v1136
        %v1138 = vpop.f32.mrf.mxu0
        %v1139 = vadd.f32 %v451, %v1138
        %1140 = vmatmul.bf16.gmra.mxu0 %v820
        %v1141 = vpop.f32.mrf.mxu0
        %v1142 = vadd.f32 %v451, %v1141
        %v1143 = vpop.f32.mrf.mxu0
        %v1144 = vadd.f32 %v451, %v1143
        %1145 = vmatmul.bf16.gmra.mxu0 %v821
        %v1146 = vpop.f32.mrf.mxu0
        %v1147 = vadd.f32 %v451, %v1146
        %v1148 = vpop.f32.mrf.mxu0
        %v1149 = vadd.f32 %v451, %v1148
        %1150 = vmatmul.bf16.gmra.mxu0 %v822
        %v1151 = vpop.f32.mrf.mxu0
        %v1152 = vadd.f32 %v451, %v1151
        %v1153 = vpop.f32.mrf.mxu0
        %v1154 = vadd.f32 %v451, %v1153
        %1155 = vmatmul.bf16.gmra.mxu0 %v823
        %v1156 = vpop.f32.mrf.mxu0
        %v1157 = vadd.f32 %v451, %v1156
        %v1158 = vpop.f32.mrf.mxu0
        %v1159 = vadd.f32 %v451, %v1158
        %1160 = vmatmul.bf16.gmra.mxu0 %v824
        %v1161 = vpop.f32.mrf.mxu0
        %v1162 = vadd.f32 %v451, %v1161
        %v1163 = vpop.f32.mrf.mxu0
        %v1164 = vadd.f32 %v451, %v1163
        %1165 = vmatmul.bf16.gmra.mxu0 %v825
        %v1166 = vpop.f32.mrf.mxu0
        %v1167 = vadd.f32 %v451, %v1166
        %v1168 = vpop.f32.mrf.mxu0
        %v1169 = vadd.f32 %v451, %v1168
        %1170 = vmatmul.bf16.gmra.mxu0 %v826
        %v1171 = vpop.f32.mrf.mxu0
        %v1172 = vadd.f32 %v451, %v1171
        %v1173 = vpop.f32.mrf.mxu0
        %v1174 = vadd.f32 %v451, %v1173
        %1175 = vmatmul.bf16.gmra.mxu0 %v827
        %v1176 = vpop.f32.mrf.mxu0
        %v1177 = vadd.f32 %v451, %v1176
        %v1178 = vpop.f32.mrf.mxu0
        %v1179 = vadd.f32 %v451, %v1178
        %1180 = vmatmul.bf16.gmra.mxu0 %v828
        %v1181 = vpop.f32.mrf.mxu0
        %v1182 = vadd.f32 %v451, %v1181
        %v1183 = vpop.f32.mrf.mxu0
        %v1184 = vadd.f32 %v451, %v1183
        %1185 = vmatmul.bf16.gmra.mxu0 %v829
        %v1186 = vpop.f32.mrf.mxu0
        %v1187 = vadd.f32 %v451, %v1186
        %v1188 = vpop.f32.mrf.mxu0
        %v1189 = vadd.f32 %v451, %v1188
        %1190 = vmatmul.bf16.gmra.mxu0 %v830
        %v1191 = vpop.f32.mrf.mxu0
        %v1192 = vadd.f32 %v451, %v1191
        %v1193 = vpop.f32.mrf.mxu0
        %v1194 = vadd.f32 %v451, %v1193
        %1195 = vmatmul.bf16.gmra.mxu0 %v831
        %v1196 = vpop.f32.mrf.mxu0
        %v1197 = vadd.f32 %v451, %v1196
        %v1198 = vpop.f32.mrf.mxu0
        %v1199 = vadd.f32 %v451, %v1198
        %1200 = vmatmul.bf16.gmra.mxu0 %v832
        %v1201 = vpop.f32.mrf.mxu0
        %v1202 = vadd.f32 %v451, %v1201
        %v1203 = vpop.f32.mrf.mxu0
        %v1204 = vadd.f32 %v451, %v1203
        %1205 = vmatmul.bf16.gmra.mxu0 %v833
        %v1206 = vpop.f32.mrf.mxu0
        %v1207 = vadd.f32 %v451, %v1206
        %v1208 = vpop.f32.mrf.mxu0
        %v1209 = vadd.f32 %v451, %v1208
        %1210 = vmatmul.bf16.gmra.mxu0 %v834
        %v1211 = vpop.f32.mrf.mxu0
        %v1212 = vadd.f32 %v451, %v1211
        %v1213 = vpop.f32.mrf.mxu0
        %v1214 = vadd.f32 %v451, %v1213
        %1215 = vmatmul.bf16.gmra.mxu0 %v835
        %v1216 = vpop.f32.mrf.mxu0
        %v1217 = vadd.f32 %v451, %v1216
        %v1218 = vpop.f32.mrf.mxu0
        %v1219 = vadd.f32 %v451, %v1218
        %1220 = vmatmul.bf16.gmra.mxu0 %v836
        %v1221 = vpop.f32.mrf.mxu0
        %v1222 = vadd.f32 %v451, %v1221
        %v1223 = vpop.f32.mrf.mxu0
        %v1224 = vadd.f32 %v451, %v1223
        %1225 = vmatmul.bf16.gmra.mxu0 %v837
        %v1226 = vpop.f32.mrf.mxu0
        %v1227 = vadd.f32 %v451, %v1226
        %v1228 = vpop.f32.mrf.mxu0
        %v1229 = vadd.f32 %v451, %v1228
        %1230 = vmatmul.bf16.gmra.mxu0 %v838
        %v1231 = vpop.f32.mrf.mxu0
        %v1232 = vadd.f32 %v451, %v1231
        %v1233 = vpop.f32.mrf.mxu0
        %v1234 = vadd.f32 %v451, %v1233
        %1235 = vmatmul.bf16.gmra.mxu0 %v839
        %v1236 = vpop.f32.mrf.mxu0
        %v1237 = vadd.f32 %v451, %v1236
        %v1238 = vpop.f32.mrf.mxu0
        %v1239 = vadd.f32 %v451, %v1238
        %1240 = vmatmul.bf16.gmra.mxu0 %v840
        %v1241 = vpop.f32.mrf.mxu0
        %v1242 = vadd.f32 %v451, %v1241
        %v1243 = vpop.f32.mrf.mxu0
        %v1244 = vadd.f32 %v451, %v1243
        %1245 = vmatmul.bf16.gmra.mxu0 %v841
        %v1246 = vpop.f32.mrf.mxu0
        %v1247 = vadd.f32 %v451, %v1246
        %v1248 = vpop.f32.mrf.mxu0
        %v1249 = vadd.f32 %v451, %v1248
        %1250 = vmatmul.bf16.gmra.mxu0 %v842
        %v1251 = vpop.f32.mrf.mxu0
        %v1252 = vadd.f32 %v451, %v1251
        %v1253 = vpop.f32.mrf.mxu0
        %v1254 = vadd.f32 %v451, %v1253
        %1255 = vmatmul.bf16.gmra.mxu0 %v843
        %v1256 = vpop.f32.mrf.mxu0
        %v1257 = vadd.f32 %v451, %v1256
        %v1258 = vpop.f32.mrf.mxu0
        %v1259 = vadd.f32 %v451, %v1258
        %1260 = vmatmul.bf16.gmra.mxu0 %v844
        %v1261 = vpop.f32.mrf.mxu0
        %v1262 = vadd.f32 %v451, %v1261
        %v1263 = vpop.f32.mrf.mxu0
        %v1264 = vadd.f32 %v451, %v1263
        %1265 = vmatmul.bf16.gmra.mxu0 %v845
        %v1266 = vpop.f32.mrf.mxu0
        %v1267 = vadd.f32 %v451, %v1266
        %v1268 = vpop.f32.mrf.mxu0
        %v1269 = vadd.f32 %v451, %v1268
        %1270 = vmatmul.bf16.gmra.mxu0 %v846
        %v1271 = vpop.f32.mrf.mxu0
        %v1272 = vadd.f32 %v451, %v1271
        %v1273 = vpop.f32.mrf.mxu0
        %v1274 = vadd.f32 %v451, %v1273
        %1275 = vmatmul.bf16.gmra.mxu0 %v847
        %v1276 = vpop.f32.mrf.mxu0
        %v1277 = vadd.f32 %v451, %v1276
        %v1278 = vpop.f32.mrf.mxu0
        %v1279 = vadd.f32 %v451, %v1278
        %1280 = vmatmul.bf16.gmra.mxu0 %v848
        %v1281 = vpop.f32.mrf.mxu0
        %v1282 = vadd.f32 %v451, %v1281
        %v1283 = vpop.f32.mrf.mxu0
        %v1284 = vadd.f32 %v451, %v1283
        %1285 = vmatmul.bf16.gmra.mxu0 %v849
        %v1286 = vpop.f32.mrf.mxu0
        %v1287 = vadd.f32 %v451, %v1286
        %v1288 = vpop.f32.mrf.mxu0
        %v1289 = vadd.f32 %v451, %v1288
        %1290 = vmatmul.bf16.gmra.mxu0 %v850
        %v1291 = vpop.f32.mrf.mxu0
        %v1292 = vadd.f32 %v451, %v1291
        %v1293 = vpop.f32.mrf.mxu0
        %v1294 = vadd.f32 %v451, %v1293
        %1295 = vmatmul.bf16.gmra.mxu0 %v851
        %v1296 = vpop.f32.mrf.mxu0
        %v1297 = vadd.f32 %v451, %v1296
        %v1298 = vpop.f32.mrf.mxu0
        %v1299 = vadd.f32 %v451, %v1298
        %1300 = vmatmul.bf16.gmra.mxu0 %v852
        %v1301 = vpop.f32.mrf.mxu0
        %v1302 = vadd.f32 %v451, %v1301
        %v1303 = vpop.f32.mrf.mxu0
        %v1304 = vadd.f32 %v451, %v1303
        %1305 = vmatmul.bf16.gmra.mxu0 %v853
        %v1306 = vpop.f32.mrf.mxu0
        %v1307 = vadd.f32 %v451, %v1306
        %v1308 = vpop.f32.mrf.mxu0
        %v1309 = vadd.f32 %v451, %v1308
        %1310 = vmatmul.bf16.gmra.mxu0 %v854
        %v1311 = vpop.f32.mrf.mxu0
        %v1312 = vadd.f32 %v451, %v1311
        %v1313 = vpop.f32.mrf.mxu0
        %v1314 = vadd.f32 %v451, %v1313
        %1315 = vmatmul.bf16.gmra.mxu0 %v855
        %v1316 = vpop.f32.mrf.mxu0
        %v1317 = vadd.f32 %v451, %v1316
        %v1318 = vpop.f32.mrf.mxu0
        %v1319 = vadd.f32 %v451, %v1318
        %1320 = vmatmul.bf16.gmra.mxu0 %v856
        %v1321 = vpop.f32.mrf.mxu0
        %v1322 = vadd.f32 %v451, %v1321
        %v1323 = vpop.f32.mrf.mxu0
        %v1324 = vadd.f32 %v451, %v1323
        %1325 = vmatmul.bf16.gmra.mxu0 %v857
        %v1326 = vpop.f32.mrf.mxu0
        %v1327 = vadd.f32 %v451, %v1326
        %v1328 = vpop.f32.mrf.mxu0
        %v1329 = vadd.f32 %v451, %v1328
        %1330 = vmatmul.bf16.gmra.mxu0 %v858
        %v1331 = vpop.f32.mrf.mxu0
        %v1332 = vadd.f32 %v451, %v1331
        %v1333 = vpop.f32.mrf.mxu0
        %v1334 = vadd.f32 %v451, %v1333
        %1335 = vmatmul.bf16.gmra.mxu0 %v859
        %v1336 = vpop.f32.mrf.mxu0
        %v1337 = vadd.f32 %v451, %v1336
        %v1338 = vpop.f32.mrf.mxu0
        %v1339 = vadd.f32 %v451, %v1338
        %1340 = vmatmul.bf16.gmra.mxu0 %v860
        %v1341 = vpop.f32.mrf.mxu0
        %v1342 = vadd.f32 %v451, %v1341
        %v1343 = vpop.f32.mrf.mxu0
        %v1344 = vadd.f32 %v451, %v1343
        %1345 = vmatmul.bf16.gmra.mxu0 %v861
        %v1346 = vpop.f32.mrf.mxu0
        %v1347 = vadd.f32 %v451, %v1346
        %v1348 = vpop.f32.mrf.mxu0
        %v1349 = vadd.f32 %v451, %v1348
        %1350 = vmatmul.bf16.gmra.mxu0 %v862
        %v1351 = vpop.f32.mrf.mxu0
        %v1352 = vadd.f32 %v451, %v1351
        %v1353 = vpop.f32.mrf.mxu0
        %v1354 = vadd.f32 %v451, %v1353
        %1355 = vmatmul.bf16.gmra.mxu0 %v863
        %v1356 = vpop.f32.mrf.mxu0
        %v1357 = vadd.f32 %v451, %v1356
        %v1358 = vpop.f32.mrf.mxu0
        %v1359 = vadd.f32 %v451, %v1358
        %1360 = vmatmul.bf16.gmra.mxu0 %v864
        %v1361 = vpop.f32.mrf.mxu0
        %v1362 = vadd.f32 %v451, %v1361
        %v1363 = vpop.f32.mrf.mxu0
        %v1364 = vadd.f32 %v451, %v1363
        %1365 = vmatmul.bf16.gmra.mxu0 %v865
        %v1366 = vpop.f32.mrf.mxu0
        %v1367 = vadd.f32 %v451, %v1366
        %v1368 = vpop.f32.mrf.mxu0
        %v1369 = vadd.f32 %v451, %v1368
        %1370 = vmatmul.bf16.gmra.mxu0 %v866
        %v1371 = vpop.f32.mrf.mxu0
        %v1372 = vadd.f32 %v451, %v1371
        %v1373 = vpop.f32.mrf.mxu0
        %v1374 = vadd.f32 %v451, %v1373
        %1375 = vmatmul.bf16.gmra.mxu0 %v867
        %v1376 = vpop.f32.mrf.mxu0
        %v1377 = vadd.f32 %v451, %v1376
        %v1378 = vpop.f32.mrf.mxu0
        %v1379 = vadd.f32 %v451, %v1378
        %1380 = vmatmul.bf16.gmra.mxu0 %v868
        %v1381 = vpop.f32.mrf.mxu0
        %v1382 = vadd.f32 %v451, %v1381
        %v1383 = vpop.f32.mrf.mxu0
        %v1384 = vadd.f32 %v451, %v1383
        %1385 = vmatmul.bf16.gmra.mxu0 %v869
        %v1386 = vpop.f32.mrf.mxu0
        %v1387 = vadd.f32 %v451, %v1386
        %v1388 = vpop.f32.mrf.mxu0
        %v1389 = vadd.f32 %v451, %v1388
        %1390 = vmatmul.bf16.gmra.mxu0 %v870
        %v1391 = vpop.f32.mrf.mxu0
        %v1392 = vadd.f32 %v451, %v1391
        %v1393 = vpop.f32.mrf.mxu0
        %v1394 = vadd.f32 %v451, %v1393
        %1395 = vmatmul.bf16.gmra.mxu0 %v871
        %v1396 = vpop.f32.mrf.mxu0
        %v1397 = vadd.f32 %v451, %v1396
        %v1398 = vpop.f32.mrf.mxu0
        %v1399 = vadd.f32 %v451, %v1398
        %1400 = vmatmul.bf16.gmra.mxu0 %v872
        %v1401 = vpop.f32.mrf.mxu0
        %v1402 = vadd.f32 %v451, %v1401
        %v1403 = vpop.f32.mrf.mxu0
        %v1404 = vadd.f32 %v451, %v1403
        %1405 = vmatmul.bf16.gmra.mxu0 %v873
        %v1406 = vpop.f32.mrf.mxu0
        %v1407 = vadd.f32 %v451, %v1406
        %v1408 = vpop.f32.mrf.mxu0
        %v1409 = vadd.f32 %v451, %v1408
        %1410 = vmatmul.bf16.gmra.mxu0 %v874
        %v1411 = vpop.f32.mrf.mxu0
        %v1412 = vadd.f32 %v451, %v1411
        %v1413 = vpop.f32.mrf.mxu0
        %v1414 = vadd.f32 %v451, %v1413
        %1415 = vmatmul.bf16.gmra.mxu0 %v875
        %v1416 = vpop.f32.mrf.mxu0
        %v1417 = vadd.f32 %v451, %v1416
        %v1418 = vpop.f32.mrf.mxu0
        %v1419 = vadd.f32 %v451, %v1418
        %1420 = vmatmul.bf16.gmra.mxu0 %v876
        %v1421 = vpop.f32.mrf.mxu0
        %v1422 = vadd.f32 %v451, %v1421
        %v1423 = vpop.f32.mrf.mxu0
        %v1424 = vadd.f32 %v451, %v1423
        %1425 = vmatmul.bf16.gmra.mxu0 %v877
        %v1426 = vpop.f32.mrf.mxu0
        %v1427 = vadd.f32 %v451, %v1426
        %v1428 = vpop.f32.mrf.mxu0
        %v1429 = vadd.f32 %v451, %v1428
        %1430 = vmatmul.bf16.gmra.mxu0 %v878
        %v1431 = vpop.f32.mrf.mxu0
        %v1432 = vadd.f32 %v451, %v1431
        %v1433 = vpop.f32.mrf.mxu0
        %v1434 = vadd.f32 %v451, %v1433
        %1435 = vmatmul.bf16.gmra.mxu0 %v879
        %v1436 = vpop.f32.mrf.mxu0
        %v1437 = vadd.f32 %v451, %v1436
        %v1438 = vpop.f32.mrf.mxu0
        %v1439 = vadd.f32 %v451, %v1438
        %1440 = vmatmul.bf16.gmra.mxu0 %v880
        %v1441 = vpop.f32.mrf.mxu0
        %v1442 = vadd.f32 %v451, %v1441
        %v1443 = vpop.f32.mrf.mxu0
        %v1444 = vadd.f32 %v451, %v1443
        %1445 = vmatmul.bf16.gmra.mxu0 %v881
        %v1446 = vpop.f32.mrf.mxu0
        %v1447 = vadd.f32 %v451, %v1446
        %v1448 = vpop.f32.mrf.mxu0
        %v1449 = vadd.f32 %v451, %v1448
        %1450 = vmatmul.bf16.gmra.mxu0 %v882
        %v1451 = vpop.f32.mrf.mxu0
        %v1452 = vadd.f32 %v451, %v1451
        %v1453 = vpop.f32.mrf.mxu0
        %v1454 = vadd.f32 %v451, %v1453
        %1455 = vdwg.mxu0
        %v1456 = vld [vmem:[%s250] sm:$0xff]
        %v1457 = vld [vmem:[%s250 + $0x8] sm:$0xff]
        %v1458 = vld [vmem:[%s250 + $0x10] sm:$0xff]
        %v1459 = vld [vmem:[%s250 + $0x18] sm:$0xff]
        %v1460 = vld [vmem:[%s250 + $0x20] sm:$0xff]
        %v1461 = vld [vmem:[%s250 + $0x28] sm:$0xff]
        %v1462 = vld [vmem:[%s250 + $0x30] sm:$0xff]
        %v1463 = vld [vmem:[%s250 + $0x38] sm:$0xff]
        %v1464 = vld [vmem:[%s250 + $0x40] sm:$0xff]
        %v1465 = vld [vmem:[%s250 + $0x48] sm:$0xff]
        %v1466 = vld [vmem:[%s250 + $0x50] sm:$0xff]
        %v1467 = vld [vmem:[%s250 + $0x58] sm:$0xff]
        %v1468 = vld [vmem:[%s250 + $0x60] sm:$0xff]
        %v1469 = vld [vmem:[%s250 + $0x68] sm:$0xff]
        %v1470 = vld [vmem:[%s250 + $0x70] sm:$0xff]
        %v1471 = vld [vmem:[%s250 + $0x78] sm:$0xff]
        %v1472 = vld [vmem:[%s250 + $0x80] sm:$0xff]
        %v1473 = vld [vmem:[%s250 + $0x88] sm:$0xff]
        %v1474 = vld [vmem:[%s250 + $0x90] sm:$0xff]
        %v1475 = vld [vmem:[%s250 + $0x98] sm:$0xff]
        %v1476 = vld [vmem:[%s250 + $0xa0] sm:$0xff]
        %v1477 = vld [vmem:[%s250 + $0xa8] sm:$0xff]
        %v1478 = vld [vmem:[%s250 + $0xb0] sm:$0xff]
        %v1479 = vld [vmem:[%s250 + $0xb8] sm:$0xff]
        %v1480 = vld [vmem:[%s250 + $0xc0] sm:$0xff]
        %v1481 = vld [vmem:[%s250 + $0xc8] sm:$0xff]
        %v1482 = vld [vmem:[%s250 + $0xd0] sm:$0xff]
        %v1483 = vld [vmem:[%s250 + $0xd8] sm:$0xff]
        %v1484 = vld [vmem:[%s250 + $0xe0] sm:$0xff]
        %v1485 = vld [vmem:[%s250 + $0xe8] sm:$0xff]
        %v1486 = vld [vmem:[%s250 + $0xf0] sm:$0xff]
        %v1487 = vld [vmem:[%s250 + $0xf8] sm:$0xff]
        %v1488 = vld [vmem:[%s250 + $0x100] sm:$0xff]
        %v1489 = vld [vmem:[%s250 + $0x108] sm:$0xff]
        %v1490 = vld [vmem:[%s250 + $0x110] sm:$0xff]
        %v1491 = vld [vmem:[%s250 + $0x118] sm:$0xff]
        %v1492 = vld [vmem:[%s250 + $0x120] sm:$0xff]
        %v1493 = vld [vmem:[%s250 + $0x128] sm:$0xff]
        %v1494 = vld [vmem:[%s250 + $0x130] sm:$0xff]
        %v1495 = vld [vmem:[%s250 + $0x138] sm:$0xff]
        %v1496 = vld [vmem:[%s250 + $0x140] sm:$0xff]
        %v1497 = vld [vmem:[%s250 + $0x148] sm:$0xff]
        %v1498 = vld [vmem:[%s250 + $0x150] sm:$0xff]
        %v1499 = vld [vmem:[%s250 + $0x158] sm:$0xff]
        %v1500 = vld [vmem:[%s250 + $0x160] sm:$0xff]
        %v1501 = vld [vmem:[%s250 + $0x168] sm:$0xff]
        %v1502 = vld [vmem:[%s250 + $0x170] sm:$0xff]
        %v1503 = vld [vmem:[%s250 + $0x178] sm:$0xff]
        %v1504 = vld [vmem:[%s250 + $0x180] sm:$0xff]
        %v1505 = vld [vmem:[%s250 + $0x188] sm:$0xff]
        %v1506 = vld [vmem:[%s250 + $0x190] sm:$0xff]
        %v1507 = vld [vmem:[%s250 + $0x198] sm:$0xff]
        %v1508 = vld [vmem:[%s250 + $0x1a0] sm:$0xff]
        %v1509 = vld [vmem:[%s250 + $0x1a8] sm:$0xff]
        %v1510 = vld [vmem:[%s250 + $0x1b0] sm:$0xff]
        %v1511 = vld [vmem:[%s250 + $0x1b8] sm:$0xff]
        %v1512 = vld [vmem:[%s250 + $0x1c0] sm:$0xff]
        %v1513 = vld [vmem:[%s250 + $0x1c8] sm:$0xff]
        %v1514 = vld [vmem:[%s250 + $0x1d0] sm:$0xff]
        %v1515 = vld [vmem:[%s250 + $0x1d8] sm:$0xff]
        %v1516 = vld [vmem:[%s250 + $0x1e0] sm:$0xff]
        %v1517 = vld [vmem:[%s250 + $0x1e8] sm:$0xff]
        %v1518 = vld [vmem:[%s250 + $0x1f0] sm:$0xff]
        %v1519 = vld [vmem:[%s250 + $0x1f8] sm:$0xff]
        %v1520 = vld [vmem:[%s250 + $0x200] sm:$0xff]
        %v1521 = vld [vmem:[%s250 + $0x208] sm:$0xff]
        %v1522 = vld [vmem:[%s250 + $0x210] sm:$0xff]
        %v1523 = vld [vmem:[%s250 + $0x218] sm:$0xff]
        %v1524 = vld [vmem:[%s250 + $0x220] sm:$0xff]
        %v1525 = vld [vmem:[%s250 + $0x228] sm:$0xff]
        %v1526 = vld [vmem:[%s250 + $0x230] sm:$0xff]
        %v1527 = vld [vmem:[%s250 + $0x238] sm:$0xff]
        %v1528 = vld [vmem:[%s250 + $0x240] sm:$0xff]
        %v1529 = vld [vmem:[%s250 + $0x248] sm:$0xff]
        %v1530 = vld [vmem:[%s250 + $0x250] sm:$0xff]
        %v1531 = vld [vmem:[%s250 + $0x258] sm:$0xff]
        %v1532 = vld [vmem:[%s250 + $0x260] sm:$0xff]
        %v1533 = vld [vmem:[%s250 + $0x268] sm:$0xff]
        %v1534 = vld [vmem:[%s250 + $0x270] sm:$0xff]
        %v1535 = vld [vmem:[%s250 + $0x278] sm:$0xff]
        %v1536 = vld [vmem:[%s250 + $0x280] sm:$0xff]
        %v1537 = vld [vmem:[%s250 + $0x288] sm:$0xff]
        %v1538 = vld [vmem:[%s250 + $0x290] sm:$0xff]
        %v1539 = vld [vmem:[%s250 + $0x298] sm:$0xff]
        %v1540 = vld [vmem:[%s250 + $0x2a0] sm:$0xff]
        %v1541 = vld [vmem:[%s250 + $0x2a8] sm:$0xff]
        %v1542 = vld [vmem:[%s250 + $0x2b0] sm:$0xff]
        %v1543 = vld [vmem:[%s250 + $0x2b8] sm:$0xff]
        %v1544 = vld [vmem:[%s250 + $0x2c0] sm:$0xff]
        %v1545 = vld [vmem:[%s250 + $0x2c8] sm:$0xff]
        %v1546 = vld [vmem:[%s250 + $0x2d0] sm:$0xff]
        %v1547 = vld [vmem:[%s250 + $0x2d8] sm:$0xff]
        %v1548 = vld [vmem:[%s250 + $0x2e0] sm:$0xff]
        %v1549 = vld [vmem:[%s250 + $0x2e8] sm:$0xff]
        %v1550 = vld [vmem:[%s250 + $0x2f0] sm:$0xff]
        %v1551 = vld [vmem:[%s250 + $0x2f8] sm:$0xff]
        %v1552 = vld [vmem:[%s250 + $0x300] sm:$0xff]
        %v1553 = vld [vmem:[%s250 + $0x308] sm:$0xff]
        %v1554 = vld [vmem:[%s250 + $0x310] sm:$0xff]
        %v1555 = vld [vmem:[%s250 + $0x318] sm:$0xff]
        %v1556 = vld [vmem:[%s250 + $0x320] sm:$0xff]
        %v1557 = vld [vmem:[%s250 + $0x328] sm:$0xff]
        %v1558 = vld [vmem:[%s250 + $0x330] sm:$0xff]
        %v1559 = vld [vmem:[%s250 + $0x338] sm:$0xff]
        %v1560 = vld [vmem:[%s250 + $0x340] sm:$0xff]
        %v1561 = vld [vmem:[%s250 + $0x348] sm:$0xff]
        %v1562 = vld [vmem:[%s250 + $0x350] sm:$0xff]
        %v1563 = vld [vmem:[%s250 + $0x358] sm:$0xff]
        %v1564 = vld [vmem:[%s250 + $0x360] sm:$0xff]
        %v1565 = vld [vmem:[%s250 + $0x368] sm:$0xff]
        %v1566 = vld [vmem:[%s250 + $0x370] sm:$0xff]
        %v1567 = vld [vmem:[%s250 + $0x378] sm:$0xff]
        %v1568 = vld [vmem:[%s250 + $0x380] sm:$0xff]
        %v1569 = vld [vmem:[%s250 + $0x388] sm:$0xff]
        %v1570 = vld [vmem:[%s250 + $0x390] sm:$0xff]
        %v1571 = vld [vmem:[%s250 + $0x398] sm:$0xff]
        %v1572 = vld [vmem:[%s250 + $0x3a0] sm:$0xff]
        %v1573 = vld [vmem:[%s250 + $0x3a8] sm:$0xff]
        %v1574 = vld [vmem:[%s250 + $0x3b0] sm:$0xff]
        %v1575 = vld [vmem:[%s250 + $0x3b8] sm:$0xff]
        %v1576 = vld [vmem:[%s250 + $0x3c0] sm:$0xff]
        %v1577 = vld [vmem:[%s250 + $0x3c8] sm:$0xff]
        %v1578 = vld [vmem:[%s250 + $0x3d0] sm:$0xff]
        %v1579 = vld [vmem:[%s250 + $0x3d8] sm:$0xff]
        %v1580 = vld [vmem:[%s250 + $0x3e0] sm:$0xff]
        %v1581 = vld [vmem:[%s250 + $0x3e8] sm:$0xff]
        %v1582 = vld [vmem:[%s250 + $0x3f0] sm:$0xff]
        %v1583 = vld [vmem:[%s250 + $0x3f8] sm:$0xff]
        %v1584 = vld [vmem:[%s250 + $0x400] sm:$0xff]
        %v1585 = vld [vmem:[%s250 + $0x408] sm:$0xff]
        %v1586 = vld [vmem:[%s250 + $0x410] sm:$0xff]
        %v1587 = vld [vmem:[%s250 + $0x418] sm:$0xff]
        %v1588 = vld [vmem:[%s250 + $0x420] sm:$0xff]
        %v1589 = vld [vmem:[%s250 + $0x428] sm:$0xff]
        %v1590 = vld [vmem:[%s250 + $0x430] sm:$0xff]
        %v1591 = vld [vmem:[%s250 + $0x438] sm:$0xff]
        %v1592 = vld [vmem:[%s250 + $0x440] sm:$0xff]
        %v1593 = vld [vmem:[%s250 + $0x448] sm:$0xff]
        %v1594 = vld [vmem:[%s250 + $0x450] sm:$0xff]
        %v1595 = vld [vmem:[%s250 + $0x458] sm:$0xff]
        %v1596 = vld [vmem:[%s250 + $0x460] sm:$0xff]
        %v1597 = vld [vmem:[%s250 + $0x468] sm:$0xff]
        %v1598 = vld [vmem:[%s250 + $0x470] sm:$0xff]
        %v1599 = vld [vmem:[%s250 + $0x478] sm:$0xff]
        %v1600 = vld [vmem:[%s250 + $0x480] sm:$0xff]
        %v1601 = vld [vmem:[%s250 + $0x488] sm:$0xff]
        %v1602 = vld [vmem:[%s250 + $0x490] sm:$0xff]
        %v1603 = vld [vmem:[%s250 + $0x498] sm:$0xff]
        %v1604 = vld [vmem:[%s250 + $0x4a0] sm:$0xff]
        %v1605 = vld [vmem:[%s250 + $0x4a8] sm:$0xff]
        %v1606 = vld [vmem:[%s250 + $0x4b0] sm:$0xff]
        %v1607 = vld [vmem:[%s250 + $0x4b8] sm:$0xff]
        %v1608 = vld [vmem:[%s250 + $0x4c0] sm:$0xff]
        %v1609 = vld [vmem:[%s250 + $0x4c8] sm:$0xff]
        %v1610 = vld [vmem:[%s250 + $0x4d0] sm:$0xff]
        %v1611 = vld [vmem:[%s250 + $0x4d8] sm:$0xff]
        %v1612 = vld [vmem:[%s250 + $0x4e0] sm:$0xff]
        %v1613 = vld [vmem:[%s250 + $0x4e8] sm:$0xff]
        %v1614 = vld [vmem:[%s250 + $0x4f0] sm:$0xff]
        %v1615 = vld [vmem:[%s250 + $0x4f8] sm:$0xff]
        %v1616 = vld [vmem:[%s250 + $0x500] sm:$0xff]
        %v1617 = vld [vmem:[%s250 + $0x508] sm:$0xff]
        %v1618 = vld [vmem:[%s250 + $0x510] sm:$0xff]
        %v1619 = vld [vmem:[%s250 + $0x518] sm:$0xff]
        %v1620 = vld [vmem:[%s250 + $0x520] sm:$0xff]
        %v1621 = vld [vmem:[%s250 + $0x528] sm:$0xff]
        %v1622 = vld [vmem:[%s250 + $0x530] sm:$0xff]
        %v1623 = vld [vmem:[%s250 + $0x538] sm:$0xff]
        %v1624 = vld [vmem:[%s250 + $0x540] sm:$0xff]
        %v1625 = vld [vmem:[%s250 + $0x548] sm:$0xff]
        %v1626 = vld [vmem:[%s250 + $0x550] sm:$0xff]
        %v1627 = vld [vmem:[%s250 + $0x558] sm:$0xff]
        %vm1628 = vcmask 15360
        %v1629 = vsel %vm1628, %v1456, -inf
        %1630 = vmax.xlane.f32.xlu0 %v1629
        %v1631 = vpop.xlane.xlu0 %1630
        %v1632 = vsel %vm1628, %v1457, -inf
        %1633 = vmax.xlane.f32.xlu0 %v1632
        %v1634 = vpop.xlane.xlu0 %1633
        %v1635 = vsel %vm1628, %v1458, -inf
        %1636 = vmax.xlane.f32.xlu0 %v1635
        %v1637 = vpop.xlane.xlu0 %1636
        %v1638 = vsel %vm1628, %v1459, -inf
        %1639 = vmax.xlane.f32.xlu0 %v1638
        %v1640 = vpop.xlane.xlu0 %1639
        %v1641 = vsel %vm1628, %v1460, -inf
        %1642 = vmax.xlane.f32.xlu0 %v1641
        %v1643 = vpop.xlane.xlu0 %1642
        %v1644 = vsel %vm1628, %v1461, -inf
        %1645 = vmax.xlane.f32.xlu0 %v1644
        %v1646 = vpop.xlane.xlu0 %1645
        %v1647 = vsel %vm1628, %v1462, -inf
        %1648 = vmax.xlane.f32.xlu0 %v1647
        %v1649 = vpop.xlane.xlu0 %1648
        %v1650 = vsel %vm1628, %v1463, -inf
        %1651 = vmax.xlane.f32.xlu0 %v1650
        %v1652 = vpop.xlane.xlu0 %1651
        %v1653 = vsel %vm1628, %v1464, -inf
        %1654 = vmax.xlane.f32.xlu0 %v1653
        %v1655 = vpop.xlane.xlu0 %1654
        %v1656 = vsel %vm1628, %v1465, -inf
        %1657 = vmax.xlane.f32.xlu0 %v1656
        %v1658 = vpop.xlane.xlu0 %1657
        %v1659 = vsel %vm1628, %v1466, -inf
        %1660 = vmax.xlane.f32.xlu0 %v1659
        %v1661 = vpop.xlane.xlu0 %1660
        %v1662 = vsel %vm1628, %v1467, -inf
        %1663 = vmax.xlane.f32.xlu0 %v1662
        %v1664 = vpop.xlane.xlu0 %1663
        %v1665 = vsel %vm1628, %v1468, -inf
        %1666 = vmax.xlane.f32.xlu0 %v1665
        %v1667 = vpop.xlane.xlu0 %1666
        %v1668 = vsel %vm1628, %v1469, -inf
        %1669 = vmax.xlane.f32.xlu0 %v1668
        %v1670 = vpop.xlane.xlu0 %1669
        %v1671 = vsel %vm1628, %v1470, -inf
        %1672 = vmax.xlane.f32.xlu0 %v1671
        %v1673 = vpop.xlane.xlu0 %1672
        %v1674 = vsel %vm1628, %v1471, -inf
        %1675 = vmax.xlane.f32.xlu0 %v1674
        %v1676 = vpop.xlane.xlu0 %1675
        %v1677 = vsel %vm1628, %v1472, -inf
        %1678 = vmax.xlane.f32.xlu0 %v1677
        %v1679 = vpop.xlane.xlu0 %1678
        %v1680 = vsel %vm1628, %v1473, -inf
        %1681 = vmax.xlane.f32.xlu0 %v1680
        %v1682 = vpop.xlane.xlu0 %1681
        %v1683 = vsel %vm1628, %v1474, -inf
        %1684 = vmax.xlane.f32.xlu0 %v1683
        %v1685 = vpop.xlane.xlu0 %1684
        %v1686 = vsel %vm1628, %v1475, -inf
        %1687 = vmax.xlane.f32.xlu0 %v1686
        %v1688 = vpop.xlane.xlu0 %1687
        %v1689 = vsel %vm1628, %v1476, -inf
        %1690 = vmax.xlane.f32.xlu0 %v1689
        %v1691 = vpop.xlane.xlu0 %1690
        %v1692 = vsel %vm1628, %v1477, -inf
        %1693 = vmax.xlane.f32.xlu0 %v1692
        %v1694 = vpop.xlane.xlu0 %1693
        %v1695 = vsel %vm1628, %v1478, -inf
        %1696 = vmax.xlane.f32.xlu0 %v1695
        %v1697 = vpop.xlane.xlu0 %1696
        %v1698 = vsel %vm1628, %v1479, -inf
        %1699 = vmax.xlane.f32.xlu0 %v1698
        %v1700 = vpop.xlane.xlu0 %1699
        %v1701 = vsel %vm1628, %v1480, -inf
        %1702 = vmax.xlane.f32.xlu0 %v1701
        %v1703 = vpop.xlane.xlu0 %1702
        %v1704 = vsel %vm1628, %v1481, -inf
        %1705 = vmax.xlane.f32.xlu0 %v1704
        %v1706 = vpop.xlane.xlu0 %1705
        %v1707 = vsel %vm1628, %v1482, -inf
        %1708 = vmax.xlane.f32.xlu0 %v1707
        %v1709 = vpop.xlane.xlu0 %1708
        %v1710 = vsel %vm1628, %v1483, -inf
        %1711 = vmax.xlane.f32.xlu0 %v1710
        %v1712 = vpop.xlane.xlu0 %1711
        %v1713 = vsel %vm1628, %v1484, -inf
        %1714 = vmax.xlane.f32.xlu0 %v1713
        %v1715 = vpop.xlane.xlu0 %1714
        %v1716 = vsel %vm1628, %v1485, -inf
        %1717 = vmax.xlane.f32.xlu0 %v1716
        %v1718 = vpop.xlane.xlu0 %1717
        %v1719 = vsel %vm1628, %v1486, -inf
        %1720 = vmax.xlane.f32.xlu0 %v1719
        %v1721 = vpop.xlane.xlu0 %1720
        %v1722 = vsel %vm1628, %v1487, -inf
        %1723 = vmax.xlane.f32.xlu0 %v1722
        %v1724 = vpop.xlane.xlu0 %1723
        %v1725 = vsel %vm1628, %v1488, -inf
        %1726 = vmax.xlane.f32.xlu0 %v1725
        %v1727 = vpop.xlane.xlu0 %1726
        %v1728 = vsel %vm1628, %v1489, -inf
        %1729 = vmax.xlane.f32.xlu0 %v1728
        %v1730 = vpop.xlane.xlu0 %1729
        %v1731 = vsel %vm1628, %v1490, -inf
        %1732 = vmax.xlane.f32.xlu0 %v1731
        %v1733 = vpop.xlane.xlu0 %1732
        %v1734 = vsel %vm1628, %v1491, -inf
        %1735 = vmax.xlane.f32.xlu0 %v1734
        %v1736 = vpop.xlane.xlu0 %1735
        %v1737 = vsel %vm1628, %v1492, -inf
        %1738 = vmax.xlane.f32.xlu0 %v1737
        %v1739 = vpop.xlane.xlu0 %1738
        %v1740 = vsel %vm1628, %v1493, -inf
        %1741 = vmax.xlane.f32.xlu0 %v1740
        %v1742 = vpop.xlane.xlu0 %1741
        %v1743 = vsel %vm1628, %v1494, -inf
        %1744 = vmax.xlane.f32.xlu0 %v1743
        %v1745 = vpop.xlane.xlu0 %1744
        %v1746 = vsel %vm1628, %v1495, -inf
        %1747 = vmax.xlane.f32.xlu0 %v1746
        %v1748 = vpop.xlane.xlu0 %1747
        %v1749 = vsel %vm1628, %v1496, -inf
        %1750 = vmax.xlane.f32.xlu0 %v1749
        %v1751 = vpop.xlane.xlu0 %1750
        %v1752 = vsel %vm1628, %v1497, -inf
        %1753 = vmax.xlane.f32.xlu0 %v1752
        %v1754 = vpop.xlane.xlu0 %1753
        %v1755 = vsel %vm1628, %v1498, -inf
        %1756 = vmax.xlane.f32.xlu0 %v1755
        %v1757 = vpop.xlane.xlu0 %1756
        %v1758 = vsel %vm1628, %v1499, -inf
        %1759 = vmax.xlane.f32.xlu0 %v1758
        %v1760 = vpop.xlane.xlu0 %1759
        %v1761 = vsel %vm1628, %v1500, -inf
        %1762 = vmax.xlane.f32.xlu0 %v1761
        %v1763 = vpop.xlane.xlu0 %1762
        %v1764 = vsel %vm1628, %v1501, -inf
        %1765 = vmax.xlane.f32.xlu0 %v1764
        %v1766 = vpop.xlane.xlu0 %1765
        %v1767 = vsel %vm1628, %v1502, -inf
        %1768 = vmax.xlane.f32.xlu0 %v1767
        %v1769 = vpop.xlane.xlu0 %1768
        %v1770 = vsel %vm1628, %v1503, -inf
        %1771 = vmax.xlane.f32.xlu0 %v1770
        %v1772 = vpop.xlane.xlu0 %1771
        %v1773 = vsel %vm1628, %v1504, -inf
        %1774 = vmax.xlane.f32.xlu0 %v1773
        %v1775 = vpop.xlane.xlu0 %1774
        %v1776 = vsel %vm1628, %v1505, -inf
        %1777 = vmax.xlane.f32.xlu0 %v1776
        %v1778 = vpop.xlane.xlu0 %1777
        %v1779 = vsel %vm1628, %v1506, -inf
        %1780 = vmax.xlane.f32.xlu0 %v1779
        %v1781 = vpop.xlane.xlu0 %1780
        %v1782 = vsel %vm1628, %v1507, -inf
        %1783 = vmax.xlane.f32.xlu0 %v1782
        %v1784 = vpop.xlane.xlu0 %1783
        %v1785 = vsel %vm1628, %v1508, -inf
        %1786 = vmax.xlane.f32.xlu0 %v1785
        %v1787 = vpop.xlane.xlu0 %1786
        %v1788 = vsel %vm1628, %v1509, -inf
        %1789 = vmax.xlane.f32.xlu0 %v1788
        %v1790 = vpop.xlane.xlu0 %1789
        %v1791 = vsel %vm1628, %v1510, -inf
        %1792 = vmax.xlane.f32.xlu0 %v1791
        %v1793 = vpop.xlane.xlu0 %1792
        %v1794 = vsel %vm1628, %v1511, -inf
        %1795 = vmax.xlane.f32.xlu0 %v1794
        %v1796 = vpop.xlane.xlu0 %1795
        %v1797 = vsel %vm1628, %v1512, -inf
        %1798 = vmax.xlane.f32.xlu0 %v1797
        %v1799 = vpop.xlane.xlu0 %1798
        %v1800 = vsel %vm1628, %v1513, -inf
        %1801 = vmax.xlane.f32.xlu0 %v1800
        %v1802 = vpop.xlane.xlu0 %1801
        %v1803 = vsel %vm1628, %v1514, -inf
        %1804 = vmax.xlane.f32.xlu0 %v1803
        %v1805 = vpop.xlane.xlu0 %1804
        %v1806 = vsel %vm1628, %v1515, -inf
        %1807 = vmax.xlane.f32.xlu0 %v1806
        %v1808 = vpop.xlane.xlu0 %1807
        %v1809 = vsel %vm1628, %v1516, -inf
        %1810 = vmax.xlane.f32.xlu0 %v1809
        %v1811 = vpop.xlane.xlu0 %1810
        %v1812 = vsel %vm1628, %v1517, -inf
        %1813 = vmax.xlane.f32.xlu0 %v1812
        %v1814 = vpop.xlane.xlu0 %1813
        %v1815 = vsel %vm1628, %v1518, -inf
        %1816 = vmax.xlane.f32.xlu0 %v1815
        %v1817 = vpop.xlane.xlu0 %1816
        %v1818 = vsel %vm1628, %v1519, -inf
        %1819 = vmax.xlane.f32.xlu0 %v1818
        %v1820 = vpop.xlane.xlu0 %1819
        %v1821 = vsel %vm1628, %v1520, -inf
        %1822 = vmax.xlane.f32.xlu0 %v1821
        %v1823 = vpop.xlane.xlu0 %1822
        %v1824 = vsel %vm1628, %v1521, -inf
        %1825 = vmax.xlane.f32.xlu0 %v1824
        %v1826 = vpop.xlane.xlu0 %1825
        %v1827 = vsel %vm1628, %v1522, -inf
        %1828 = vmax.xlane.f32.xlu0 %v1827
        %v1829 = vpop.xlane.xlu0 %1828
        %v1830 = vsel %vm1628, %v1523, -inf
        %1831 = vmax.xlane.f32.xlu0 %v1830
        %v1832 = vpop.xlane.xlu0 %1831
        %v1833 = vsel %vm1628, %v1524, -inf
        %1834 = vmax.xlane.f32.xlu0 %v1833
        %v1835 = vpop.xlane.xlu0 %1834
        %v1836 = vsel %vm1628, %v1525, -inf
        %1837 = vmax.xlane.f32.xlu0 %v1836
        %v1838 = vpop.xlane.xlu0 %1837
        %v1839 = vsel %vm1628, %v1526, -inf
        %1840 = vmax.xlane.f32.xlu0 %v1839
        %v1841 = vpop.xlane.xlu0 %1840
        %v1842 = vsel %vm1628, %v1527, -inf
        %1843 = vmax.xlane.f32.xlu0 %v1842
        %v1844 = vpop.xlane.xlu0 %1843
        %v1845 = vsel %vm1628, %v1528, -inf
        %1846 = vmax.xlane.f32.xlu0 %v1845
        %v1847 = vpop.xlane.xlu0 %1846
        %v1848 = vsel %vm1628, %v1529, -inf
        %1849 = vmax.xlane.f32.xlu0 %v1848
        %v1850 = vpop.xlane.xlu0 %1849
        %v1851 = vsel %vm1628, %v1530, -inf
        %1852 = vmax.xlane.f32.xlu0 %v1851
        %v1853 = vpop.xlane.xlu0 %1852
        %v1854 = vsel %vm1628, %v1531, -inf
        %1855 = vmax.xlane.f32.xlu0 %v1854
        %v1856 = vpop.xlane.xlu0 %1855
        %v1857 = vsel %vm1628, %v1532, -inf
        %1858 = vmax.xlane.f32.xlu0 %v1857
        %v1859 = vpop.xlane.xlu0 %1858
        %v1860 = vsel %vm1628, %v1533, -inf
        %1861 = vmax.xlane.f32.xlu0 %v1860
        %v1862 = vpop.xlane.xlu0 %1861
        %v1863 = vsel %vm1628, %v1534, -inf
        %1864 = vmax.xlane.f32.xlu0 %v1863
        %v1865 = vpop.xlane.xlu0 %1864
        %v1866 = vsel %vm1628, %v1535, -inf
        %1867 = vmax.xlane.f32.xlu0 %v1866
        %v1868 = vpop.xlane.xlu0 %1867
        %v1869 = vsel %vm1628, %v1536, -inf
        %1870 = vmax.xlane.f32.xlu0 %v1869
        %v1871 = vpop.xlane.xlu0 %1870
        %v1872 = vsel %vm1628, %v1537, -inf
        %1873 = vmax.xlane.f32.xlu0 %v1872
        %v1874 = vpop.xlane.xlu0 %1873
        %v1875 = vsel %vm1628, %v1538, -inf
        %1876 = vmax.xlane.f32.xlu0 %v1875
        %v1877 = vpop.xlane.xlu0 %1876
        %v1878 = vsel %vm1628, %v1539, -inf
        %1879 = vmax.xlane.f32.xlu0 %v1878
        %v1880 = vpop.xlane.xlu0 %1879
        %v1881 = vsel %vm1628, %v1540, -inf
        %1882 = vmax.xlane.f32.xlu0 %v1881
        %v1883 = vpop.xlane.xlu0 %1882
        %v1884 = vsel %vm1628, %v1541, -inf
        %1885 = vmax.xlane.f32.xlu0 %v1884
        %v1886 = vpop.xlane.xlu0 %1885
        %v1887 = vsel %vm1628, %v1542, -inf
        %1888 = vmax.xlane.f32.xlu0 %v1887
        %v1889 = vpop.xlane.xlu0 %1888
        %v1890 = vsel %vm1628, %v1543, -inf
        %1891 = vmax.xlane.f32.xlu0 %v1890
        %v1892 = vpop.xlane.xlu0 %1891
        %v1893 = vsel %vm1628, %v1544, -inf
        %1894 = vmax.xlane.f32.xlu0 %v1893
        %v1895 = vpop.xlane.xlu0 %1894
        %v1896 = vsel %vm1628, %v1545, -inf
        %1897 = vmax.xlane.f32.xlu0 %v1896
        %v1898 = vpop.xlane.xlu0 %1897
        %v1899 = vsel %vm1628, %v1546, -inf
        %1900 = vmax.xlane.f32.xlu0 %v1899
        %v1901 = vpop.xlane.xlu0 %1900
        %v1902 = vsel %vm1628, %v1547, -inf
        %1903 = vmax.xlane.f32.xlu0 %v1902
        %v1904 = vpop.xlane.xlu0 %1903
        %v1905 = vsel %vm1628, %v1548, -inf
        %1906 = vmax.xlane.f32.xlu0 %v1905
        %v1907 = vpop.xlane.xlu0 %1906
        %v1908 = vsel %vm1628, %v1549, -inf
        %1909 = vmax.xlane.f32.xlu0 %v1908
        %v1910 = vpop.xlane.xlu0 %1909
        %v1911 = vsel %vm1628, %v1550, -inf
        %1912 = vmax.xlane.f32.xlu0 %v1911
        %v1913 = vpop.xlane.xlu0 %1912
        %v1914 = vsel %vm1628, %v1551, -inf
        %1915 = vmax.xlane.f32.xlu0 %v1914
        %v1916 = vpop.xlane.xlu0 %1915
        %v1917 = vsel %vm1628, %v1552, -inf
        %1918 = vmax.xlane.f32.xlu0 %v1917
        %v1919 = vpop.xlane.xlu0 %1918
        %v1920 = vsel %vm1628, %v1553, -inf
        %1921 = vmax.xlane.f32.xlu0 %v1920
        %v1922 = vpop.xlane.xlu0 %1921
        %v1923 = vsel %vm1628, %v1554, -inf
        %1924 = vmax.xlane.f32.xlu0 %v1923
        %v1925 = vpop.xlane.xlu0 %1924
        %v1926 = vsel %vm1628, %v1555, -inf
        %1927 = vmax.xlane.f32.xlu0 %v1926
        %v1928 = vpop.xlane.xlu0 %1927
        %v1929 = vsel %vm1628, %v1556, -inf
        %1930 = vmax.xlane.f32.xlu0 %v1929
        %v1931 = vpop.xlane.xlu0 %1930
        %v1932 = vsel %vm1628, %v1557, -inf
        %1933 = vmax.xlane.f32.xlu0 %v1932
        %v1934 = vpop.xlane.xlu0 %1933
        %v1935 = vsel %vm1628, %v1558, -inf
        %1936 = vmax.xlane.f32.xlu0 %v1935
        %v1937 = vpop.xlane.xlu0 %1936
        %v1938 = vsel %vm1628, %v1559, -inf
        %1939 = vmax.xlane.f32.xlu0 %v1938
        %v1940 = vpop.xlane.xlu0 %1939
        %v1941 = vsel %vm1628, %v1560, -inf
        %1942 = vmax.xlane.f32.xlu0 %v1941
        %v1943 = vpop.xlane.xlu0 %1942
        %v1944 = vsel %vm1628, %v1561, -inf
        %1945 = vmax.xlane.f32.xlu0 %v1944
        %v1946 = vpop.xlane.xlu0 %1945
        %v1947 = vsel %vm1628, %v1562, -inf
        %1948 = vmax.xlane.f32.xlu0 %v1947
        %v1949 = vpop.xlane.xlu0 %1948
        %v1950 = vsel %vm1628, %v1563, -inf
        %1951 = vmax.xlane.f32.xlu0 %v1950
        %v1952 = vpop.xlane.xlu0 %1951
        %v1953 = vsel %vm1628, %v1564, -inf
        %1954 = vmax.xlane.f32.xlu0 %v1953
        %v1955 = vpop.xlane.xlu0 %1954
        %v1956 = vsel %vm1628, %v1565, -inf
        %1957 = vmax.xlane.f32.xlu0 %v1956
        %v1958 = vpop.xlane.xlu0 %1957
        %v1959 = vsel %vm1628, %v1566, -inf
        %1960 = vmax.xlane.f32.xlu0 %v1959
        %v1961 = vpop.xlane.xlu0 %1960
        %v1962 = vsel %vm1628, %v1567, -inf
        %1963 = vmax.xlane.f32.xlu0 %v1962
        %v1964 = vpop.xlane.xlu0 %1963
        %v1965 = vsel %vm1628, %v1568, -inf
        %1966 = vmax.xlane.f32.xlu0 %v1965
        %v1967 = vpop.xlane.xlu0 %1966
        %v1968 = vsel %vm1628, %v1569, -inf
        %1969 = vmax.xlane.f32.xlu0 %v1968
        %v1970 = vpop.xlane.xlu0 %1969
        %v1971 = vsel %vm1628, %v1570, -inf
        %1972 = vmax.xlane.f32.xlu0 %v1971
        %v1973 = vpop.xlane.xlu0 %1972
        %v1974 = vsel %vm1628, %v1571, -inf
        %1975 = vmax.xlane.f32.xlu0 %v1974
        %v1976 = vpop.xlane.xlu0 %1975
        %v1977 = vsel %vm1628, %v1572, -inf
        %1978 = vmax.xlane.f32.xlu0 %v1977
        %v1979 = vpop.xlane.xlu0 %1978
        %v1980 = vsel %vm1628, %v1573, -inf
        %1981 = vmax.xlane.f32.xlu0 %v1980
        %v1982 = vpop.xlane.xlu0 %1981
        %v1983 = vsel %vm1628, %v1574, -inf
        %1984 = vmax.xlane.f32.xlu0 %v1983
        %v1985 = vpop.xlane.xlu0 %1984
        %v1986 = vsel %vm1628, %v1575, -inf
        %1987 = vmax.xlane.f32.xlu0 %v1986
        %v1988 = vpop.xlane.xlu0 %1987
        %v1989 = vsel %vm1628, %v1576, -inf
        %1990 = vmax.xlane.f32.xlu0 %v1989
        %v1991 = vpop.xlane.xlu0 %1990
        %v1992 = vsel %vm1628, %v1577, -inf
        %1993 = vmax.xlane.f32.xlu0 %v1992
        %v1994 = vpop.xlane.xlu0 %1993
        %v1995 = vsel %vm1628, %v1578, -inf
        %1996 = vmax.xlane.f32.xlu0 %v1995
        %v1997 = vpop.xlane.xlu0 %1996
        %v1998 = vsel %vm1628, %v1579, -inf
        %1999 = vmax.xlane.f32.xlu0 %v1998
        %v2000 = vpop.xlane.xlu0 %1999
        %v2001 = vsel %vm1628, %v1580, -inf
        %2002 = vmax.xlane.f32.xlu0 %v2001
        %v2003 = vpop.xlane.xlu0 %2002
        %v2004 = vsel %vm1628, %v1581, -inf
        %2005 = vmax.xlane.f32.xlu0 %v2004
        %v2006 = vpop.xlane.xlu0 %2005
        %v2007 = vsel %vm1628, %v1582, -inf
        %2008 = vmax.xlane.f32.xlu0 %v2007
        %v2009 = vpop.xlane.xlu0 %2008
        %v2010 = vsel %vm1628, %v1583, -inf
        %2011 = vmax.xlane.f32.xlu0 %v2010
        %v2012 = vpop.xlane.xlu0 %2011
        %v2013 = vsel %vm1628, %v1584, -inf
        %2014 = vmax.xlane.f32.xlu0 %v2013
        %v2015 = vpop.xlane.xlu0 %2014
        %v2016 = vsel %vm1628, %v1585, -inf
        %2017 = vmax.xlane.f32.xlu0 %v2016
        %v2018 = vpop.xlane.xlu0 %2017
        %v2019 = vsel %vm1628, %v1586, -inf
        %2020 = vmax.xlane.f32.xlu0 %v2019
        %v2021 = vpop.xlane.xlu0 %2020
        %v2022 = vsel %vm1628, %v1587, -inf
        %2023 = vmax.xlane.f32.xlu0 %v2022
        %v2024 = vpop.xlane.xlu0 %2023
        %v2025 = vsel %vm1628, %v1588, -inf
        %2026 = vmax.xlane.f32.xlu0 %v2025
        %v2027 = vpop.xlane.xlu0 %2026
        %v2028 = vsel %vm1628, %v1589, -inf
        %2029 = vmax.xlane.f32.xlu0 %v2028
        %v2030 = vpop.xlane.xlu0 %2029
        %v2031 = vsel %vm1628, %v1590, -inf
        %2032 = vmax.xlane.f32.xlu0 %v2031
        %v2033 = vpop.xlane.xlu0 %2032
        %v2034 = vsel %vm1628, %v1591, -inf
        %2035 = vmax.xlane.f32.xlu0 %v2034
        %v2036 = vpop.xlane.xlu0 %2035
        %v2037 = vsel %vm1628, %v1592, -inf
        %2038 = vmax.xlane.f32.xlu0 %v2037
        %v2039 = vpop.xlane.xlu0 %2038
        %v2040 = vsel %vm1628, %v1593, -inf
        %2041 = vmax.xlane.f32.xlu0 %v2040
        %v2042 = vpop.xlane.xlu0 %2041
        %v2043 = vsel %vm1628, %v1594, -inf
        %2044 = vmax.xlane.f32.xlu0 %v2043
        %v2045 = vpop.xlane.xlu0 %2044
        %v2046 = vsel %vm1628, %v1595, -inf
        %2047 = vmax.xlane.f32.xlu0 %v2046
        %v2048 = vpop.xlane.xlu0 %2047
        %v2049 = vsel %vm1628, %v1596, -inf
        %2050 = vmax.xlane.f32.xlu0 %v2049
        %v2051 = vpop.xlane.xlu0 %2050
        %v2052 = vsel %vm1628, %v1597, -inf
        %2053 = vmax.xlane.f32.xlu0 %v2052
        %v2054 = vpop.xlane.xlu0 %2053
        %v2055 = vsel %vm1628, %v1598, -inf
        %2056 = vmax.xlane.f32.xlu0 %v2055
        %v2057 = vpop.xlane.xlu0 %2056
        %v2058 = vsel %vm1628, %v1599, -inf
        %2059 = vmax.xlane.f32.xlu0 %v2058
        %v2060 = vpop.xlane.xlu0 %2059
        %v2061 = vsel %vm1628, %v1600, -inf
        %2062 = vmax.xlane.f32.xlu0 %v2061
        %v2063 = vpop.xlane.xlu0 %2062
        %v2064 = vsel %vm1628, %v1601, -inf
        %2065 = vmax.xlane.f32.xlu0 %v2064
        %v2066 = vpop.xlane.xlu0 %2065
        %v2067 = vsel %vm1628, %v1602, -inf
        %2068 = vmax.xlane.f32.xlu0 %v2067
        %v2069 = vpop.xlane.xlu0 %2068
        %v2070 = vsel %vm1628, %v1603, -inf
        %2071 = vmax.xlane.f32.xlu0 %v2070
        %v2072 = vpop.xlane.xlu0 %2071
        %v2073 = vsel %vm1628, %v1604, -inf
        %2074 = vmax.xlane.f32.xlu0 %v2073
        %v2075 = vpop.xlane.xlu0 %2074
        %v2076 = vsel %vm1628, %v1605, -inf
        %2077 = vmax.xlane.f32.xlu0 %v2076
        %v2078 = vpop.xlane.xlu0 %2077
        %v2079 = vsel %vm1628, %v1606, -inf
        %2080 = vmax.xlane.f32.xlu0 %v2079
        %v2081 = vpop.xlane.xlu0 %2080
        %v2082 = vsel %vm1628, %v1607, -inf
        %2083 = vmax.xlane.f32.xlu0 %v2082
        %v2084 = vpop.xlane.xlu0 %2083
        %v2085 = vsel %vm1628, %v1608, -inf
        %2086 = vmax.xlane.f32.xlu0 %v2085
        %v2087 = vpop.xlane.xlu0 %2086
        %v2088 = vsel %vm1628, %v1609, -inf
        %2089 = vmax.xlane.f32.xlu0 %v2088
        %v2090 = vpop.xlane.xlu0 %2089
        %v2091 = vsel %vm1628, %v1610, -inf
        %2092 = vmax.xlane.f32.xlu0 %v2091
        %v2093 = vpop.xlane.xlu0 %2092
        %v2094 = vsel %vm1628, %v1611, -inf
        %2095 = vmax.xlane.f32.xlu0 %v2094
        %v2096 = vpop.xlane.xlu0 %2095
        %v2097 = vsel %vm1628, %v1612, -inf
        %2098 = vmax.xlane.f32.xlu0 %v2097
        %v2099 = vpop.xlane.xlu0 %2098
        %v2100 = vsel %vm1628, %v1613, -inf
        %2101 = vmax.xlane.f32.xlu0 %v2100
        %v2102 = vpop.xlane.xlu0 %2101
        %v2103 = vsel %vm1628, %v1614, -inf
        %2104 = vmax.xlane.f32.xlu0 %v2103
        %v2105 = vpop.xlane.xlu0 %2104
        %v2106 = vsel %vm1628, %v1615, -inf
        %2107 = vmax.xlane.f32.xlu0 %v2106
        %v2108 = vpop.xlane.xlu0 %2107
        %v2109 = vsel %vm1628, %v1616, -inf
        %2110 = vmax.xlane.f32.xlu0 %v2109
        %v2111 = vpop.xlane.xlu0 %2110
        %v2112 = vsel %vm1628, %v1617, -inf
        %2113 = vmax.xlane.f32.xlu0 %v2112
        %v2114 = vpop.xlane.xlu0 %2113
        %v2115 = vsel %vm1628, %v1618, -inf
        %2116 = vmax.xlane.f32.xlu0 %v2115
        %v2117 = vpop.xlane.xlu0 %2116
        %v2118 = vsel %vm1628, %v1619, -inf
        %2119 = vmax.xlane.f32.xlu0 %v2118
        %v2120 = vpop.xlane.xlu0 %2119
        %v2121 = vsel %vm1628, %v1620, -inf
        %2122 = vmax.xlane.f32.xlu0 %v2121
        %v2123 = vpop.xlane.xlu0 %2122
        %v2124 = vsel %vm1628, %v1621, -inf
        %2125 = vmax.xlane.f32.xlu0 %v2124
        %v2126 = vpop.xlane.xlu0 %2125
        %v2127 = vsel %vm1628, %v1622, -inf
        %2128 = vmax.xlane.f32.xlu0 %v2127
        %v2129 = vpop.xlane.xlu0 %2128
        %v2130 = vsel %vm1628, %v1623, -inf
        %2131 = vmax.xlane.f32.xlu0 %v2130
        %v2132 = vpop.xlane.xlu0 %2131
        %v2133 = vsel %vm1628, %v1624, -inf
        %2134 = vmax.xlane.f32.xlu0 %v2133
        %v2135 = vpop.xlane.xlu0 %2134
        %v2136 = vsel %vm1628, %v1625, -inf
        %2137 = vmax.xlane.f32.xlu0 %v2136
        %v2138 = vpop.xlane.xlu0 %2137
        %v2139 = vsel %vm1628, %v1626, -inf
        %2140 = vmax.xlane.f32.xlu0 %v2139
        %v2141 = vpop.xlane.xlu0 %2140
        %v2142 = vsel %vm1628, %v1627, -inf
        %2143 = vmax.xlane.f32.xlu0 %v2142
        %v2144 = vpop.xlane.xlu0 %2143
        %v2145 = vsub.f32 %v1456, %v1631
        %v2146 = vsub.f32 %v1457, %v1634
        %v2147 = vsub.f32 %v1458, %v1637
        %v2148 = vsub.f32 %v1459, %v1640
        %v2149 = vsub.f32 %v1460, %v1643
        %v2150 = vsub.f32 %v1461, %v1646
        %v2151 = vsub.f32 %v1462, %v1649
        %v2152 = vsub.f32 %v1463, %v1652
        %v2153 = vsub.f32 %v1464, %v1655
        %v2154 = vsub.f32 %v1465, %v1658
        %v2155 = vsub.f32 %v1466, %v1661
        %v2156 = vsub.f32 %v1467, %v1664
        %v2157 = vsub.f32 %v1468, %v1667
        %v2158 = vsub.f32 %v1469, %v1670
        %v2159 = vsub.f32 %v1470, %v1673
        %v2160 = vsub.f32 %v1471, %v1676
        %v2161 = vsub.f32 %v1472, %v1679
        %v2162 = vsub.f32 %v1473, %v1682
        %v2163 = vsub.f32 %v1474, %v1685
        %v2164 = vsub.f32 %v1475, %v1688
        %v2165 = vsub.f32 %v1476, %v1691
        %v2166 = vsub.f32 %v1477, %v1694
        %v2167 = vsub.f32 %v1478, %v1697
        %v2168 = vsub.f32 %v1479, %v1700
        %v2169 = vsub.f32 %v1480, %v1703
        %v2170 = vsub.f32 %v1481, %v1706
        %v2171 = vsub.f32 %v1482, %v1709
        %v2172 = vsub.f32 %v1483, %v1712
        %v2173 = vsub.f32 %v1484, %v1715
        %v2174 = vsub.f32 %v1485, %v1718
        %v2175 = vsub.f32 %v1486, %v1721
        %v2176 = vsub.f32 %v1487, %v1724
        %v2177 = vsub.f32 %v1488, %v1727
        %v2178 = vsub.f32 %v1489, %v1730
        %v2179 = vsub.f32 %v1490, %v1733
        %v2180 = vsub.f32 %v1491, %v1736
        %v2181 = vsub.f32 %v1492, %v1739
        %v2182 = vsub.f32 %v1493, %v1742
        %v2183 = vsub.f32 %v1494, %v1745
        %v2184 = vsub.f32 %v1495, %v1748
        %v2185 = vsub.f32 %v1496, %v1751
        %v2186 = vsub.f32 %v1497, %v1754
        %v2187 = vsub.f32 %v1498, %v1757
        %v2188 = vsub.f32 %v1499, %v1760
        %v2189 = vsub.f32 %v1500, %v1763
        %v2190 = vsub.f32 %v1501, %v1766
        %v2191 = vsub.f32 %v1502, %v1769
        %v2192 = vsub.f32 %v1503, %v1772
        %v2193 = vsub.f32 %v1504, %v1775
        %v2194 = vsub.f32 %v1505, %v1778
        %v2195 = vsub.f32 %v1506, %v1781
        %v2196 = vsub.f32 %v1507, %v1784
        %v2197 = vsub.f32 %v1508, %v1787
        %v2198 = vsub.f32 %v1509, %v1790
        %v2199 = vsub.f32 %v1510, %v1793
        %v2200 = vsub.f32 %v1511, %v1796
        %v2201 = vsub.f32 %v1512, %v1799
        %v2202 = vsub.f32 %v1513, %v1802
        %v2203 = vsub.f32 %v1514, %v1805
        %v2204 = vsub.f32 %v1515, %v1808
        %v2205 = vsub.f32 %v1516, %v1811
        %v2206 = vsub.f32 %v1517, %v1814
        %v2207 = vsub.f32 %v1518, %v1817
        %v2208 = vsub.f32 %v1519, %v1820
        %v2209 = vsub.f32 %v1520, %v1823
        %v2210 = vsub.f32 %v1521, %v1826
        %v2211 = vsub.f32 %v1522, %v1829
        %v2212 = vsub.f32 %v1523, %v1832
        %v2213 = vsub.f32 %v1524, %v1835
        %v2214 = vsub.f32 %v1525, %v1838
        %v2215 = vsub.f32 %v1526, %v1841
        %v2216 = vsub.f32 %v1527, %v1844
        %v2217 = vsub.f32 %v1528, %v1847
        %v2218 = vsub.f32 %v1529, %v1850
        %v2219 = vsub.f32 %v1530, %v1853
        %v2220 = vsub.f32 %v1531, %v1856
        %v2221 = vsub.f32 %v1532, %v1859
        %v2222 = vsub.f32 %v1533, %v1862
        %v2223 = vsub.f32 %v1534, %v1865
        %v2224 = vsub.f32 %v1535, %v1868
        %v2225 = vsub.f32 %v1536, %v1871
        %v2226 = vsub.f32 %v1537, %v1874
        %v2227 = vsub.f32 %v1538, %v1877
        %v2228 = vsub.f32 %v1539, %v1880
        %v2229 = vsub.f32 %v1540, %v1883
        %v2230 = vsub.f32 %v1541, %v1886
        %v2231 = vsub.f32 %v1542, %v1889
        %v2232 = vsub.f32 %v1543, %v1892
        %v2233 = vsub.f32 %v1544, %v1895
        %v2234 = vsub.f32 %v1545, %v1898
        %v2235 = vsub.f32 %v1546, %v1901
        %v2236 = vsub.f32 %v1547, %v1904
        %v2237 = vsub.f32 %v1548, %v1907
        %v2238 = vsub.f32 %v1549, %v1910
        %v2239 = vsub.f32 %v1550, %v1913
        %v2240 = vsub.f32 %v1551, %v1916
        %v2241 = vsub.f32 %v1552, %v1919
        %v2242 = vsub.f32 %v1553, %v1922
        %v2243 = vsub.f32 %v1554, %v1925
        %v2244 = vsub.f32 %v1555, %v1928
        %v2245 = vsub.f32 %v1556, %v1931
        %v2246 = vsub.f32 %v1557, %v1934
        %v2247 = vsub.f32 %v1558, %v1937
        %v2248 = vsub.f32 %v1559, %v1940
        %v2249 = vsub.f32 %v1560, %v1943
        %v2250 = vsub.f32 %v1561, %v1946
        %v2251 = vsub.f32 %v1562, %v1949
        %v2252 = vsub.f32 %v1563, %v1952
        %v2253 = vsub.f32 %v1564, %v1955
        %v2254 = vsub.f32 %v1565, %v1958
        %v2255 = vsub.f32 %v1566, %v1961
        %v2256 = vsub.f32 %v1567, %v1964
        %v2257 = vsub.f32 %v1568, %v1967
        %v2258 = vsub.f32 %v1569, %v1970
        %v2259 = vsub.f32 %v1570, %v1973
        %v2260 = vsub.f32 %v1571, %v1976
        %v2261 = vsub.f32 %v1572, %v1979
        %v2262 = vsub.f32 %v1573, %v1982
        %v2263 = vsub.f32 %v1574, %v1985
        %v2264 = vsub.f32 %v1575, %v1988
        %v2265 = vsub.f32 %v1576, %v1991
        %v2266 = vsub.f32 %v1577, %v1994
        %v2267 = vsub.f32 %v1578, %v1997
        %v2268 = vsub.f32 %v1579, %v2000
        %v2269 = vsub.f32 %v1580, %v2003
        %v2270 = vsub.f32 %v1581, %v2006
        %v2271 = vsub.f32 %v1582, %v2009
        %v2272 = vsub.f32 %v1583, %v2012
        %v2273 = vsub.f32 %v1584, %v2015
        %v2274 = vsub.f32 %v1585, %v2018
        %v2275 = vsub.f32 %v1586, %v2021
        %v2276 = vsub.f32 %v1587, %v2024
        %v2277 = vsub.f32 %v1588, %v2027
        %v2278 = vsub.f32 %v1589, %v2030
        %v2279 = vsub.f32 %v1590, %v2033
        %v2280 = vsub.f32 %v1591, %v2036
        %v2281 = vsub.f32 %v1592, %v2039
        %v2282 = vsub.f32 %v1593, %v2042
        %v2283 = vsub.f32 %v1594, %v2045
        %v2284 = vsub.f32 %v1595, %v2048
        %v2285 = vsub.f32 %v1596, %v2051
        %v2286 = vsub.f32 %v1597, %v2054
        %v2287 = vsub.f32 %v1598, %v2057
        %v2288 = vsub.f32 %v1599, %v2060
        %v2289 = vsub.f32 %v1600, %v2063
        %v2290 = vsub.f32 %v1601, %v2066
        %v2291 = vsub.f32 %v1602, %v2069
        %v2292 = vsub.f32 %v1603, %v2072
        %v2293 = vsub.f32 %v1604, %v2075
        %v2294 = vsub.f32 %v1605, %v2078
        %v2295 = vsub.f32 %v1606, %v2081
        %v2296 = vsub.f32 %v1607, %v2084
        %v2297 = vsub.f32 %v1608, %v2087
        %v2298 = vsub.f32 %v1609, %v2090
        %v2299 = vsub.f32 %v1610, %v2093
        %v2300 = vsub.f32 %v1611, %v2096
        %v2301 = vsub.f32 %v1612, %v2099
        %v2302 = vsub.f32 %v1613, %v2102
        %v2303 = vsub.f32 %v1614, %v2105
        %v2304 = vsub.f32 %v1615, %v2108
        %v2305 = vsub.f32 %v1616, %v2111
        %v2306 = vsub.f32 %v1617, %v2114
        %v2307 = vsub.f32 %v1618, %v2117
        %v2308 = vsub.f32 %v1619, %v2120
        %v2309 = vsub.f32 %v1620, %v2123
        %v2310 = vsub.f32 %v1621, %v2126
        %v2311 = vsub.f32 %v1622, %v2129
        %v2312 = vsub.f32 %v1623, %v2132
        %v2313 = vsub.f32 %v1624, %v2135
        %v2314 = vsub.f32 %v1625, %v2138
        %v2315 = vsub.f32 %v1626, %v2141
        %v2316 = vsub.f32 %v1627, %v2144
        %v2317 = vmul.f32 %v2145, 1.442695
        %v2318 = vpow.pop %v2317
        %v2319 = vmul.f32 %v2146, 1.442695
        %v2320 = vpow.pop %v2319
        %v2321 = vmul.f32 %v2147, 1.442695
        %v2322 = vpow.pop %v2321
        %v2323 = vmul.f32 %v2148, 1.442695
        %v2324 = vpow.pop %v2323
        %v2325 = vmul.f32 %v2149, 1.442695
        %v2326 = vpow.pop %v2325
        %v2327 = vmul.f32 %v2150, 1.442695
        %v2328 = vpow.pop %v2327
        %v2329 = vmul.f32 %v2151, 1.442695
        %v2330 = vpow.pop %v2329
        %v2331 = vmul.f32 %v2152, 1.442695
        %v2332 = vpow.pop %v2331
        %v2333 = vmul.f32 %v2153, 1.442695
        %v2334 = vpow.pop %v2333
        %v2335 = vmul.f32 %v2154, 1.442695
        %v2336 = vpow.pop %v2335
        %v2337 = vmul.f32 %v2155, 1.442695
        %v2338 = vpow.pop %v2337
        %v2339 = vmul.f32 %v2156, 1.442695
        %v2340 = vpow.pop %v2339
        %v2341 = vmul.f32 %v2157, 1.442695
        %v2342 = vpow.pop %v2341
        %v2343 = vmul.f32 %v2158, 1.442695
        %v2344 = vpow.pop %v2343
        %v2345 = vmul.f32 %v2159, 1.442695
        %v2346 = vpow.pop %v2345
        %v2347 = vmul.f32 %v2160, 1.442695
        %v2348 = vpow.pop %v2347
        %v2349 = vmul.f32 %v2161, 1.442695
        %v2350 = vpow.pop %v2349
        %v2351 = vmul.f32 %v2162, 1.442695
        %v2352 = vpow.pop %v2351
        %v2353 = vmul.f32 %v2163, 1.442695
        %v2354 = vpow.pop %v2353
        %v2355 = vmul.f32 %v2164, 1.442695
        %v2356 = vpow.pop %v2355
        %v2357 = vmul.f32 %v2165, 1.442695
        %v2358 = vpow.pop %v2357
        %v2359 = vmul.f32 %v2166, 1.442695
        %v2360 = vpow.pop %v2359
        %v2361 = vmul.f32 %v2167, 1.442695
        %v2362 = vpow.pop %v2361
        %v2363 = vmul.f32 %v2168, 1.442695
        %v2364 = vpow.pop %v2363
        %v2365 = vmul.f32 %v2169, 1.442695
        %v2366 = vpow.pop %v2365
        %v2367 = vmul.f32 %v2170, 1.442695
        %v2368 = vpow.pop %v2367
        %v2369 = vmul.f32 %v2171, 1.442695
        %v2370 = vpow.pop %v2369
        %v2371 = vmul.f32 %v2172, 1.442695
        %v2372 = vpow.pop %v2371
        %v2373 = vmul.f32 %v2173, 1.442695
        %v2374 = vpow.pop %v2373
        %v2375 = vmul.f32 %v2174, 1.442695
        %v2376 = vpow.pop %v2375
        %v2377 = vmul.f32 %v2175, 1.442695
        %v2378 = vpow.pop %v2377
        %v2379 = vmul.f32 %v2176, 1.442695
        %v2380 = vpow.pop %v2379
        %v2381 = vmul.f32 %v2177, 1.442695
        %v2382 = vpow.pop %v2381
        %v2383 = vmul.f32 %v2178, 1.442695
        %v2384 = vpow.pop %v2383
        %v2385 = vmul.f32 %v2179, 1.442695
        %v2386 = vpow.pop %v2385
        %v2387 = vmul.f32 %v2180, 1.442695
        %v2388 = vpow.pop %v2387
        %v2389 = vmul.f32 %v2181, 1.442695
        %v2390 = vpow.pop %v2389
        %v2391 = vmul.f32 %v2182, 1.442695
        %v2392 = vpow.pop %v2391
        %v2393 = vmul.f32 %v2183, 1.442695
        %v2394 = vpow.pop %v2393
        %v2395 = vmul.f32 %v2184, 1.442695
        %v2396 = vpow.pop %v2395
        %v2397 = vmul.f32 %v2185, 1.442695
        %v2398 = vpow.pop %v2397
        %v2399 = vmul.f32 %v2186, 1.442695
        %v2400 = vpow.pop %v2399
        %v2401 = vmul.f32 %v2187, 1.442695
        %v2402 = vpow.pop %v2401
        %v2403 = vmul.f32 %v2188, 1.442695
        %v2404 = vpow.pop %v2403
        %v2405 = vmul.f32 %v2189, 1.442695
        %v2406 = vpow.pop %v2405
        %v2407 = vmul.f32 %v2190, 1.442695
        %v2408 = vpow.pop %v2407
        %v2409 = vmul.f32 %v2191, 1.442695
        %v2410 = vpow.pop %v2409
        %v2411 = vmul.f32 %v2192, 1.442695
        %v2412 = vpow.pop %v2411
        %v2413 = vmul.f32 %v2193, 1.442695
        %v2414 = vpow.pop %v2413
        %v2415 = vmul.f32 %v2194, 1.442695
        %v2416 = vpow.pop %v2415
        %v2417 = vmul.f32 %v2195, 1.442695
        %v2418 = vpow.pop %v2417
        %v2419 = vmul.f32 %v2196, 1.442695
        %v2420 = vpow.pop %v2419
        %v2421 = vmul.f32 %v2197, 1.442695
        %v2422 = vpow.pop %v2421
        %v2423 = vmul.f32 %v2198, 1.442695
        %v2424 = vpow.pop %v2423
        %v2425 = vmul.f32 %v2199, 1.442695
        %v2426 = vpow.pop %v2425
        %v2427 = vmul.f32 %v2200, 1.442695
        %v2428 = vpow.pop %v2427
        %v2429 = vmul.f32 %v2201, 1.442695
        %v2430 = vpow.pop %v2429
        %v2431 = vmul.f32 %v2202, 1.442695
        %v2432 = vpow.pop %v2431
        %v2433 = vmul.f32 %v2203, 1.442695
        %v2434 = vpow.pop %v2433
        %v2435 = vmul.f32 %v2204, 1.442695
        %v2436 = vpow.pop %v2435
        %v2437 = vmul.f32 %v2205, 1.442695
        %v2438 = vpow.pop %v2437
        %v2439 = vmul.f32 %v2206, 1.442695
        %v2440 = vpow.pop %v2439
        %v2441 = vmul.f32 %v2207, 1.442695
        %v2442 = vpow.pop %v2441
        %v2443 = vmul.f32 %v2208, 1.442695
        %v2444 = vpow.pop %v2443
        %v2445 = vmul.f32 %v2209, 1.442695
        %v2446 = vpow.pop %v2445
        %v2447 = vmul.f32 %v2210, 1.442695
        %v2448 = vpow.pop %v2447
        %v2449 = vmul.f32 %v2211, 1.442695
        %v2450 = vpow.pop %v2449
        %v2451 = vmul.f32 %v2212, 1.442695
        %v2452 = vpow.pop %v2451
        %v2453 = vmul.f32 %v2213, 1.442695
        %v2454 = vpow.pop %v2453
        %v2455 = vmul.f32 %v2214, 1.442695
        %v2456 = vpow.pop %v2455
        %v2457 = vmul.f32 %v2215, 1.442695
        %v2458 = vpow.pop %v2457
        %v2459 = vmul.f32 %v2216, 1.442695
        %v2460 = vpow.pop %v2459
        %v2461 = vmul.f32 %v2217, 1.442695
        %v2462 = vpow.pop %v2461
        %v2463 = vmul.f32 %v2218, 1.442695
        %v2464 = vpow.pop %v2463
        %v2465 = vmul.f32 %v2219, 1.442695
        %v2466 = vpow.pop %v2465
        %v2467 = vmul.f32 %v2220, 1.442695
        %v2468 = vpow.pop %v2467
        %v2469 = vmul.f32 %v2221, 1.442695
        %v2470 = vpow.pop %v2469
        %v2471 = vmul.f32 %v2222, 1.442695
        %v2472 = vpow.pop %v2471
        %v2473 = vmul.f32 %v2223, 1.442695
        %v2474 = vpow.pop %v2473
        %v2475 = vmul.f32 %v2224, 1.442695
        %v2476 = vpow.pop %v2475
        %v2477 = vmul.f32 %v2225, 1.442695
        %v2478 = vpow.pop %v2477
        %v2479 = vmul.f32 %v2226, 1.442695
        %v2480 = vpow.pop %v2479
        %v2481 = vmul.f32 %v2227, 1.442695
        %v2482 = vpow.pop %v2481
        %v2483 = vmul.f32 %v2228, 1.442695
        %v2484 = vpow.pop %v2483
        %v2485 = vmul.f32 %v2229, 1.442695
        %v2486 = vpow.pop %v2485
        %v2487 = vmul.f32 %v2230, 1.442695
        %v2488 = vpow.pop %v2487
        %v2489 = vmul.f32 %v2231, 1.442695
        %v2490 = vpow.pop %v2489
        %v2491 = vmul.f32 %v2232, 1.442695
        %v2492 = vpow.pop %v2491
        %v2493 = vmul.f32 %v2233, 1.442695
        %v2494 = vpow.pop %v2493
        %v2495 = vmul.f32 %v2234, 1.442695
        %v2496 = vpow.pop %v2495
        %v2497 = vmul.f32 %v2235, 1.442695
        %v2498 = vpow.pop %v2497
        %v2499 = vmul.f32 %v2236, 1.442695
        %v2500 = vpow.pop %v2499
        %v2501 = vmul.f32 %v2237, 1.442695
        %v2502 = vpow.pop %v2501
        %v2503 = vmul.f32 %v2238, 1.442695
        %v2504 = vpow.pop %v2503
        %v2505 = vmul.f32 %v2239, 1.442695
        %v2506 = vpow.pop %v2505
        %v2507 = vmul.f32 %v2240, 1.442695
        %v2508 = vpow.pop %v2507
        %v2509 = vmul.f32 %v2241, 1.442695
        %v2510 = vpow.pop %v2509
        %v2511 = vmul.f32 %v2242, 1.442695
        %v2512 = vpow.pop %v2511
        %v2513 = vmul.f32 %v2243, 1.442695
        %v2514 = vpow.pop %v2513
        %v2515 = vmul.f32 %v2244, 1.442695
        %v2516 = vpow.pop %v2515
        %v2517 = vmul.f32 %v2245, 1.442695
        %v2518 = vpow.pop %v2517
        %v2519 = vmul.f32 %v2246, 1.442695
        %v2520 = vpow.pop %v2519
        %v2521 = vmul.f32 %v2247, 1.442695
        %v2522 = vpow.pop %v2521
        %v2523 = vmul.f32 %v2248, 1.442695
        %v2524 = vpow.pop %v2523
        %v2525 = vmul.f32 %v2249, 1.442695
        %v2526 = vpow.pop %v2525
        %v2527 = vmul.f32 %v2250, 1.442695
        %v2528 = vpow.pop %v2527
        %v2529 = vmul.f32 %v2251, 1.442695
        %v2530 = vpow.pop %v2529
        %v2531 = vmul.f32 %v2252, 1.442695
        %v2532 = vpow.pop %v2531
        %v2533 = vmul.f32 %v2253, 1.442695
        %v2534 = vpow.pop %v2533
        %v2535 = vmul.f32 %v2254, 1.442695
        %v2536 = vpow.pop %v2535
        %v2537 = vmul.f32 %v2255, 1.442695
        %v2538 = vpow.pop %v2537
        %v2539 = vmul.f32 %v2256, 1.442695
        %v2540 = vpow.pop %v2539
        %v2541 = vmul.f32 %v2257, 1.442695
        %v2542 = vpow.pop %v2541
        %v2543 = vmul.f32 %v2258, 1.442695
        %v2544 = vpow.pop %v2543
        %v2545 = vmul.f32 %v2259, 1.442695
        %v2546 = vpow.pop %v2545
        %v2547 = vmul.f32 %v2260, 1.442695
        %v2548 = vpow.pop %v2547
        %v2549 = vmul.f32 %v2261, 1.442695
        %v2550 = vpow.pop %v2549
        %v2551 = vmul.f32 %v2262, 1.442695
        %v2552 = vpow.pop %v2551
        %v2553 = vmul.f32 %v2263, 1.442695
        %v2554 = vpow.pop %v2553
        %v2555 = vmul.f32 %v2264, 1.442695
        %v2556 = vpow.pop %v2555
        %v2557 = vmul.f32 %v2265, 1.442695
        %v2558 = vpow.pop %v2557
        %v2559 = vmul.f32 %v2266, 1.442695
        %v2560 = vpow.pop %v2559
        %v2561 = vmul.f32 %v2267, 1.442695
        %v2562 = vpow.pop %v2561
        %v2563 = vmul.f32 %v2268, 1.442695
        %v2564 = vpow.pop %v2563
        %v2565 = vmul.f32 %v2269, 1.442695
        %v2566 = vpow.pop %v2565
        %v2567 = vmul.f32 %v2270, 1.442695
        %v2568 = vpow.pop %v2567
        %v2569 = vmul.f32 %v2271, 1.442695
        %v2570 = vpow.pop %v2569
        %v2571 = vmul.f32 %v2272, 1.442695
        %v2572 = vpow.pop %v2571
        %v2573 = vmul.f32 %v2273, 1.442695
        %v2574 = vpow.pop %v2573
        %v2575 = vmul.f32 %v2274, 1.442695
        %v2576 = vpow.pop %v2575
        %v2577 = vmul.f32 %v2275, 1.442695
        %v2578 = vpow.pop %v2577
        %v2579 = vmul.f32 %v2276, 1.442695
        %v2580 = vpow.pop %v2579
        %v2581 = vmul.f32 %v2277, 1.442695
        %v2582 = vpow.pop %v2581
        %v2583 = vmul.f32 %v2278, 1.442695
        %v2584 = vpow.pop %v2583
        %v2585 = vmul.f32 %v2279, 1.442695
        %v2586 = vpow.pop %v2585
        %v2587 = vmul.f32 %v2280, 1.442695
        %v2588 = vpow.pop %v2587
        %v2589 = vmul.f32 %v2281, 1.442695
        %v2590 = vpow.pop %v2589
        %v2591 = vmul.f32 %v2282, 1.442695
        %v2592 = vpow.pop %v2591
        %v2593 = vmul.f32 %v2283, 1.442695
        %v2594 = vpow.pop %v2593
        %v2595 = vmul.f32 %v2284, 1.442695
        %v2596 = vpow.pop %v2595
        %v2597 = vmul.f32 %v2285, 1.442695
        %v2598 = vpow.pop %v2597
        %v2599 = vmul.f32 %v2286, 1.442695
        %v2600 = vpow.pop %v2599
        %v2601 = vmul.f32 %v2287, 1.442695
        %v2602 = vpow.pop %v2601
        %v2603 = vmul.f32 %v2288, 1.442695
        %v2604 = vpow.pop %v2603
        %v2605 = vmul.f32 %v2289, 1.442695
        %v2606 = vpow.pop %v2605
        %v2607 = vmul.f32 %v2290, 1.442695
        %v2608 = vpow.pop %v2607
        %v2609 = vmul.f32 %v2291, 1.442695
        %v2610 = vpow.pop %v2609
        %v2611 = vmul.f32 %v2292, 1.442695
        %v2612 = vpow.pop %v2611
        %v2613 = vmul.f32 %v2293, 1.442695
        %v2614 = vpow.pop %v2613
        %v2615 = vmul.f32 %v2294, 1.442695
        %v2616 = vpow.pop %v2615
        %v2617 = vmul.f32 %v2295, 1.442695
        %v2618 = vpow.pop %v2617
        %v2619 = vmul.f32 %v2296, 1.442695
        %v2620 = vpow.pop %v2619
        %v2621 = vmul.f32 %v2297, 1.442695
        %v2622 = vpow.pop %v2621
        %v2623 = vmul.f32 %v2298, 1.442695
        %v2624 = vpow.pop %v2623
        %v2625 = vmul.f32 %v2299, 1.442695
        %v2626 = vpow.pop %v2625
        %v2627 = vmul.f32 %v2300, 1.442695
        %v2628 = vpow.pop %v2627
        %v2629 = vmul.f32 %v2301, 1.442695
        %v2630 = vpow.pop %v2629
        %v2631 = vmul.f32 %v2302, 1.442695
        %v2632 = vpow.pop %v2631
        %v2633 = vmul.f32 %v2303, 1.442695
        %v2634 = vpow.pop %v2633
        %v2635 = vmul.f32 %v2304, 1.442695
        %v2636 = vpow.pop %v2635
        %v2637 = vmul.f32 %v2305, 1.442695
        %v2638 = vpow.pop %v2637
        %v2639 = vmul.f32 %v2306, 1.442695
        %v2640 = vpow.pop %v2639
        %v2641 = vmul.f32 %v2307, 1.442695
        %v2642 = vpow.pop %v2641
        %v2643 = vmul.f32 %v2308, 1.442695
        %v2644 = vpow.pop %v2643
        %v2645 = vmul.f32 %v2309, 1.442695
        %v2646 = vpow.pop %v2645
        %v2647 = vmul.f32 %v2310, 1.442695
        %v2648 = vpow.pop %v2647
        %v2649 = vmul.f32 %v2311, 1.442695
        %v2650 = vpow.pop %v2649
        %v2651 = vmul.f32 %v2312, 1.442695
        %v2652 = vpow.pop %v2651
        %v2653 = vmul.f32 %v2313, 1.442695
        %v2654 = vpow.pop %v2653
        %v2655 = vmul.f32 %v2314, 1.442695
        %v2656 = vpow.pop %v2655
        %v2657 = vmul.f32 %v2315, 1.442695
        %v2658 = vpow.pop %v2657
        %v2659 = vmul.f32 %v2316, 1.442695
        %v2660 = vpow.pop %v2659
        %v2661 = vsel %vm1628, %v2318, 0.0
        %2662 = vadd.xlane.f32.xlu0 %v2661
        %v2663 = vpop.xlane.xlu0 %2662
        %v2664 = vsel %vm1628, %v2320, 0.0
        %2665 = vadd.xlane.f32.xlu0 %v2664
        %v2666 = vpop.xlane.xlu0 %2665
        %v2667 = vsel %vm1628, %v2322, 0.0
        %2668 = vadd.xlane.f32.xlu0 %v2667
        %v2669 = vpop.xlane.xlu0 %2668
        %v2670 = vsel %vm1628, %v2324, 0.0
        %2671 = vadd.xlane.f32.xlu0 %v2670
        %v2672 = vpop.xlane.xlu0 %2671
        %v2673 = vsel %vm1628, %v2326, 0.0
        %2674 = vadd.xlane.f32.xlu0 %v2673
        %v2675 = vpop.xlane.xlu0 %2674
        %v2676 = vsel %vm1628, %v2328, 0.0
        %2677 = vadd.xlane.f32.xlu0 %v2676
        %v2678 = vpop.xlane.xlu0 %2677
        %v2679 = vsel %vm1628, %v2330, 0.0
        %2680 = vadd.xlane.f32.xlu0 %v2679
        %v2681 = vpop.xlane.xlu0 %2680
        %v2682 = vsel %vm1628, %v2332, 0.0
        %2683 = vadd.xlane.f32.xlu0 %v2682
        %v2684 = vpop.xlane.xlu0 %2683
        %v2685 = vsel %vm1628, %v2334, 0.0
        %2686 = vadd.xlane.f32.xlu0 %v2685
        %v2687 = vpop.xlane.xlu0 %2686
        %v2688 = vsel %vm1628, %v2336, 0.0
        %2689 = vadd.xlane.f32.xlu0 %v2688
        %v2690 = vpop.xlane.xlu0 %2689
        %v2691 = vsel %vm1628, %v2338, 0.0
        %2692 = vadd.xlane.f32.xlu0 %v2691
        %v2693 = vpop.xlane.xlu0 %2692
        %v2694 = vsel %vm1628, %v2340, 0.0
        %2695 = vadd.xlane.f32.xlu0 %v2694
        %v2696 = vpop.xlane.xlu0 %2695
        %v2697 = vsel %vm1628, %v2342, 0.0
        %2698 = vadd.xlane.f32.xlu0 %v2697
        %v2699 = vpop.xlane.xlu0 %2698
        %v2700 = vsel %vm1628, %v2344, 0.0
        %2701 = vadd.xlane.f32.xlu0 %v2700
        %v2702 = vpop.xlane.xlu0 %2701
        %v2703 = vsel %vm1628, %v2346, 0.0
        %2704 = vadd.xlane.f32.xlu0 %v2703
        %v2705 = vpop.xlane.xlu0 %2704
        %v2706 = vsel %vm1628, %v2348, 0.0
        %2707 = vadd.xlane.f32.xlu0 %v2706
        %v2708 = vpop.xlane.xlu0 %2707
        %v2709 = vsel %vm1628, %v2350, 0.0
        %2710 = vadd.xlane.f32.xlu0 %v2709
        %v2711 = vpop.xlane.xlu0 %2710
        %v2712 = vsel %vm1628, %v2352, 0.0
        %2713 = vadd.xlane.f32.xlu0 %v2712
        %v2714 = vpop.xlane.xlu0 %2713
        %v2715 = vsel %vm1628, %v2354, 0.0
        %2716 = vadd.xlane.f32.xlu0 %v2715
        %v2717 = vpop.xlane.xlu0 %2716
        %v2718 = vsel %vm1628, %v2356, 0.0
        %2719 = vadd.xlane.f32.xlu0 %v2718
        %v2720 = vpop.xlane.xlu0 %2719
        %v2721 = vsel %vm1628, %v2358, 0.0
        %2722 = vadd.xlane.f32.xlu0 %v2721
        %v2723 = vpop.xlane.xlu0 %2722
        %v2724 = vsel %vm1628, %v2360, 0.0
        %2725 = vadd.xlane.f32.xlu0 %v2724
        %v2726 = vpop.xlane.xlu0 %2725
        %v2727 = vsel %vm1628, %v2362, 0.0
        %2728 = vadd.xlane.f32.xlu0 %v2727
        %v2729 = vpop.xlane.xlu0 %2728
        %v2730 = vsel %vm1628, %v2364, 0.0
        %2731 = vadd.xlane.f32.xlu0 %v2730
        %v2732 = vpop.xlane.xlu0 %2731
        %v2733 = vsel %vm1628, %v2366, 0.0
        %2734 = vadd.xlane.f32.xlu0 %v2733
        %v2735 = vpop.xlane.xlu0 %2734
        %v2736 = vsel %vm1628, %v2368, 0.0
        %2737 = vadd.xlane.f32.xlu0 %v2736
        %v2738 = vpop.xlane.xlu0 %2737
        %v2739 = vsel %vm1628, %v2370, 0.0
        %2740 = vadd.xlane.f32.xlu0 %v2739
        %v2741 = vpop.xlane.xlu0 %2740
        %v2742 = vsel %vm1628, %v2372, 0.0
        %2743 = vadd.xlane.f32.xlu0 %v2742
        %v2744 = vpop.xlane.xlu0 %2743
        %v2745 = vsel %vm1628, %v2374, 0.0
        %2746 = vadd.xlane.f32.xlu0 %v2745
        %v2747 = vpop.xlane.xlu0 %2746
        %v2748 = vsel %vm1628, %v2376, 0.0
        %2749 = vadd.xlane.f32.xlu0 %v2748
        %v2750 = vpop.xlane.xlu0 %2749
        %v2751 = vsel %vm1628, %v2378, 0.0
        %2752 = vadd.xlane.f32.xlu0 %v2751
        %v2753 = vpop.xlane.xlu0 %2752
        %v2754 = vsel %vm1628, %v2380, 0.0
        %2755 = vadd.xlane.f32.xlu0 %v2754
        %v2756 = vpop.xlane.xlu0 %2755
        %v2757 = vsel %vm1628, %v2382, 0.0
        %2758 = vadd.xlane.f32.xlu0 %v2757
        %v2759 = vpop.xlane.xlu0 %2758
        %v2760 = vsel %vm1628, %v2384, 0.0
        %2761 = vadd.xlane.f32.xlu0 %v2760
        %v2762 = vpop.xlane.xlu0 %2761
        %v2763 = vsel %vm1628, %v2386, 0.0
        %2764 = vadd.xlane.f32.xlu0 %v2763
        %v2765 = vpop.xlane.xlu0 %2764
        %v2766 = vsel %vm1628, %v2388, 0.0
        %2767 = vadd.xlane.f32.xlu0 %v2766
        %v2768 = vpop.xlane.xlu0 %2767
        %v2769 = vsel %vm1628, %v2390, 0.0
        %2770 = vadd.xlane.f32.xlu0 %v2769
        %v2771 = vpop.xlane.xlu0 %2770
        %v2772 = vsel %vm1628, %v2392, 0.0
        %2773 = vadd.xlane.f32.xlu0 %v2772
        %v2774 = vpop.xlane.xlu0 %2773
        %v2775 = vsel %vm1628, %v2394, 0.0
        %2776 = vadd.xlane.f32.xlu0 %v2775
        %v2777 = vpop.xlane.xlu0 %2776
        %v2778 = vsel %vm1628, %v2396, 0.0
        %2779 = vadd.xlane.f32.xlu0 %v2778
        %v2780 = vpop.xlane.xlu0 %2779
        %v2781 = vsel %vm1628, %v2398, 0.0
        %2782 = vadd.xlane.f32.xlu0 %v2781
        %v2783 = vpop.xlane.xlu0 %2782
        %v2784 = vsel %vm1628, %v2400, 0.0
        %2785 = vadd.xlane.f32.xlu0 %v2784
        %v2786 = vpop.xlane.xlu0 %2785
        %v2787 = vsel %vm1628, %v2402, 0.0
        %2788 = vadd.xlane.f32.xlu0 %v2787
        %v2789 = vpop.xlane.xlu0 %2788
        %v2790 = vsel %vm1628, %v2404, 0.0
        %2791 = vadd.xlane.f32.xlu0 %v2790
        %v2792 = vpop.xlane.xlu0 %2791
        %v2793 = vsel %vm1628, %v2406, 0.0
        %2794 = vadd.xlane.f32.xlu0 %v2793
        %v2795 = vpop.xlane.xlu0 %2794
        %v2796 = vsel %vm1628, %v2408, 0.0
        %2797 = vadd.xlane.f32.xlu0 %v2796
        %v2798 = vpop.xlane.xlu0 %2797
        %v2799 = vsel %vm1628, %v2410, 0.0
        %2800 = vadd.xlane.f32.xlu0 %v2799
        %v2801 = vpop.xlane.xlu0 %2800
        %v2802 = vsel %vm1628, %v2412, 0.0
        %2803 = vadd.xlane.f32.xlu0 %v2802
        %v2804 = vpop.xlane.xlu0 %2803
        %v2805 = vsel %vm1628, %v2414, 0.0
        %2806 = vadd.xlane.f32.xlu0 %v2805
        %v2807 = vpop.xlane.xlu0 %2806
        %v2808 = vsel %vm1628, %v2416, 0.0
        %2809 = vadd.xlane.f32.xlu0 %v2808
        %v2810 = vpop.xlane.xlu0 %2809
        %v2811 = vsel %vm1628, %v2418, 0.0
        %2812 = vadd.xlane.f32.xlu0 %v2811
        %v2813 = vpop.xlane.xlu0 %2812
        %v2814 = vsel %vm1628, %v2420, 0.0
        %2815 = vadd.xlane.f32.xlu0 %v2814
        %v2816 = vpop.xlane.xlu0 %2815
        %v2817 = vsel %vm1628, %v2422, 0.0
        %2818 = vadd.xlane.f32.xlu0 %v2817
        %v2819 = vpop.xlane.xlu0 %2818
        %v2820 = vsel %vm1628, %v2424, 0.0
        %2821 = vadd.xlane.f32.xlu0 %v2820
        %v2822 = vpop.xlane.xlu0 %2821
        %v2823 = vsel %vm1628, %v2426, 0.0
        %2824 = vadd.xlane.f32.xlu0 %v2823
        %v2825 = vpop.xlane.xlu0 %2824
        %v2826 = vsel %vm1628, %v2428, 0.0
        %2827 = vadd.xlane.f32.xlu0 %v2826
        %v2828 = vpop.xlane.xlu0 %2827
        %v2829 = vsel %vm1628, %v2430, 0.0
        %2830 = vadd.xlane.f32.xlu0 %v2829
        %v2831 = vpop.xlane.xlu0 %2830
        %v2832 = vsel %vm1628, %v2432, 0.0
        %2833 = vadd.xlane.f32.xlu0 %v2832
        %v2834 = vpop.xlane.xlu0 %2833
        %v2835 = vsel %vm1628, %v2434, 0.0
        %2836 = vadd.xlane.f32.xlu0 %v2835
        %v2837 = vpop.xlane.xlu0 %2836
        %v2838 = vsel %vm1628, %v2436, 0.0
        %2839 = vadd.xlane.f32.xlu0 %v2838
        %v2840 = vpop.xlane.xlu0 %2839
        %v2841 = vsel %vm1628, %v2438, 0.0
        %2842 = vadd.xlane.f32.xlu0 %v2841
        %v2843 = vpop.xlane.xlu0 %2842
        %v2844 = vsel %vm1628, %v2440, 0.0
        %2845 = vadd.xlane.f32.xlu0 %v2844
        %v2846 = vpop.xlane.xlu0 %2845
        %v2847 = vsel %vm1628, %v2442, 0.0
        %2848 = vadd.xlane.f32.xlu0 %v2847
        %v2849 = vpop.xlane.xlu0 %2848
        %v2850 = vsel %vm1628, %v2444, 0.0
        %2851 = vadd.xlane.f32.xlu0 %v2850
        %v2852 = vpop.xlane.xlu0 %2851
        %v2853 = vsel %vm1628, %v2446, 0.0
        %2854 = vadd.xlane.f32.xlu0 %v2853
        %v2855 = vpop.xlane.xlu0 %2854
        %v2856 = vsel %vm1628, %v2448, 0.0
        %2857 = vadd.xlane.f32.xlu0 %v2856
        %v2858 = vpop.xlane.xlu0 %2857
        %v2859 = vsel %vm1628, %v2450, 0.0
        %2860 = vadd.xlane.f32.xlu0 %v2859
        %v2861 = vpop.xlane.xlu0 %2860
        %v2862 = vsel %vm1628, %v2452, 0.0
        %2863 = vadd.xlane.f32.xlu0 %v2862
        %v2864 = vpop.xlane.xlu0 %2863
        %v2865 = vsel %vm1628, %v2454, 0.0
        %2866 = vadd.xlane.f32.xlu0 %v2865
        %v2867 = vpop.xlane.xlu0 %2866
        %v2868 = vsel %vm1628, %v2456, 0.0
        %2869 = vadd.xlane.f32.xlu0 %v2868
        %v2870 = vpop.xlane.xlu0 %2869
        %v2871 = vsel %vm1628, %v2458, 0.0
        %2872 = vadd.xlane.f32.xlu0 %v2871
        %v2873 = vpop.xlane.xlu0 %2872
        %v2874 = vsel %vm1628, %v2460, 0.0
        %2875 = vadd.xlane.f32.xlu0 %v2874
        %v2876 = vpop.xlane.xlu0 %2875
        %v2877 = vsel %vm1628, %v2462, 0.0
        %2878 = vadd.xlane.f32.xlu0 %v2877
        %v2879 = vpop.xlane.xlu0 %2878
        %v2880 = vsel %vm1628, %v2464, 0.0
        %2881 = vadd.xlane.f32.xlu0 %v2880
        %v2882 = vpop.xlane.xlu0 %2881
        %v2883 = vsel %vm1628, %v2466, 0.0
        %2884 = vadd.xlane.f32.xlu0 %v2883
        %v2885 = vpop.xlane.xlu0 %2884
        %v2886 = vsel %vm1628, %v2468, 0.0
        %2887 = vadd.xlane.f32.xlu0 %v2886
        %v2888 = vpop.xlane.xlu0 %2887
        %v2889 = vsel %vm1628, %v2470, 0.0
        %2890 = vadd.xlane.f32.xlu0 %v2889
        %v2891 = vpop.xlane.xlu0 %2890
        %v2892 = vsel %vm1628, %v2472, 0.0
        %2893 = vadd.xlane.f32.xlu0 %v2892
        %v2894 = vpop.xlane.xlu0 %2893
        %v2895 = vsel %vm1628, %v2474, 0.0
        %2896 = vadd.xlane.f32.xlu0 %v2895
        %v2897 = vpop.xlane.xlu0 %2896
        %v2898 = vsel %vm1628, %v2476, 0.0
        %2899 = vadd.xlane.f32.xlu0 %v2898
        %v2900 = vpop.xlane.xlu0 %2899
        %v2901 = vsel %vm1628, %v2478, 0.0
        %2902 = vadd.xlane.f32.xlu0 %v2901
        %v2903 = vpop.xlane.xlu0 %2902
        %v2904 = vsel %vm1628, %v2480, 0.0
        %2905 = vadd.xlane.f32.xlu0 %v2904
        %v2906 = vpop.xlane.xlu0 %2905
        %v2907 = vsel %vm1628, %v2482, 0.0
        %2908 = vadd.xlane.f32.xlu0 %v2907
        %v2909 = vpop.xlane.xlu0 %2908
        %v2910 = vsel %vm1628, %v2484, 0.0
        %2911 = vadd.xlane.f32.xlu0 %v2910
        %v2912 = vpop.xlane.xlu0 %2911
        %v2913 = vsel %vm1628, %v2486, 0.0
        %2914 = vadd.xlane.f32.xlu0 %v2913
        %v2915 = vpop.xlane.xlu0 %2914
        %v2916 = vsel %vm1628, %v2488, 0.0
        %2917 = vadd.xlane.f32.xlu0 %v2916
        %v2918 = vpop.xlane.xlu0 %2917
        %v2919 = vsel %vm1628, %v2490, 0.0
        %2920 = vadd.xlane.f32.xlu0 %v2919
        %v2921 = vpop.xlane.xlu0 %2920
        %v2922 = vsel %vm1628, %v2492, 0.0
        %2923 = vadd.xlane.f32.xlu0 %v2922
        %v2924 = vpop.xlane.xlu0 %2923
        %v2925 = vsel %vm1628, %v2494, 0.0
        %2926 = vadd.xlane.f32.xlu0 %v2925
        %v2927 = vpop.xlane.xlu0 %2926
        %v2928 = vsel %vm1628, %v2496, 0.0
        %2929 = vadd.xlane.f32.xlu0 %v2928
        %v2930 = vpop.xlane.xlu0 %2929
        %v2931 = vsel %vm1628, %v2498, 0.0
        %2932 = vadd.xlane.f32.xlu0 %v2931
        %v2933 = vpop.xlane.xlu0 %2932
        %v2934 = vsel %vm1628, %v2500, 0.0
        %2935 = vadd.xlane.f32.xlu0 %v2934
        %v2936 = vpop.xlane.xlu0 %2935
        %v2937 = vsel %vm1628, %v2502, 0.0
        %2938 = vadd.xlane.f32.xlu0 %v2937
        %v2939 = vpop.xlane.xlu0 %2938
        %v2940 = vsel %vm1628, %v2504, 0.0
        %2941 = vadd.xlane.f32.xlu0 %v2940
        %v2942 = vpop.xlane.xlu0 %2941
        %v2943 = vsel %vm1628, %v2506, 0.0
        %2944 = vadd.xlane.f32.xlu0 %v2943
        %v2945 = vpop.xlane.xlu0 %2944
        %v2946 = vsel %vm1628, %v2508, 0.0
        %2947 = vadd.xlane.f32.xlu0 %v2946
        %v2948 = vpop.xlane.xlu0 %2947
        %v2949 = vsel %vm1628, %v2510, 0.0
        %2950 = vadd.xlane.f32.xlu0 %v2949
        %v2951 = vpop.xlane.xlu0 %2950
        %v2952 = vsel %vm1628, %v2512, 0.0
        %2953 = vadd.xlane.f32.xlu0 %v2952
        %v2954 = vpop.xlane.xlu0 %2953
        %v2955 = vsel %vm1628, %v2514, 0.0
        %2956 = vadd.xlane.f32.xlu0 %v2955
        %v2957 = vpop.xlane.xlu0 %2956
        %v2958 = vsel %vm1628, %v2516, 0.0
        %2959 = vadd.xlane.f32.xlu0 %v2958
        %v2960 = vpop.xlane.xlu0 %2959
        %v2961 = vsel %vm1628, %v2518, 0.0
        %2962 = vadd.xlane.f32.xlu0 %v2961
        %v2963 = vpop.xlane.xlu0 %2962
        %v2964 = vsel %vm1628, %v2520, 0.0
        %2965 = vadd.xlane.f32.xlu0 %v2964
        %v2966 = vpop.xlane.xlu0 %2965
        %v2967 = vsel %vm1628, %v2522, 0.0
        %2968 = vadd.xlane.f32.xlu0 %v2967
        %v2969 = vpop.xlane.xlu0 %2968
        %v2970 = vsel %vm1628, %v2524, 0.0
        %2971 = vadd.xlane.f32.xlu0 %v2970
        %v2972 = vpop.xlane.xlu0 %2971
        %v2973 = vsel %vm1628, %v2526, 0.0
        %2974 = vadd.xlane.f32.xlu0 %v2973
        %v2975 = vpop.xlane.xlu0 %2974
        %v2976 = vsel %vm1628, %v2528, 0.0
        %2977 = vadd.xlane.f32.xlu0 %v2976
        %v2978 = vpop.xlane.xlu0 %2977
        %v2979 = vsel %vm1628, %v2530, 0.0
        %2980 = vadd.xlane.f32.xlu0 %v2979
        %v2981 = vpop.xlane.xlu0 %2980
        %v2982 = vsel %vm1628, %v2532, 0.0
        %2983 = vadd.xlane.f32.xlu0 %v2982
        %v2984 = vpop.xlane.xlu0 %2983
        %v2985 = vsel %vm1628, %v2534, 0.0
        %2986 = vadd.xlane.f32.xlu0 %v2985
        %v2987 = vpop.xlane.xlu0 %2986
        %v2988 = vsel %vm1628, %v2536, 0.0
        %2989 = vadd.xlane.f32.xlu0 %v2988
        %v2990 = vpop.xlane.xlu0 %2989
        %v2991 = vsel %vm1628, %v2538, 0.0
        %2992 = vadd.xlane.f32.xlu0 %v2991
        %v2993 = vpop.xlane.xlu0 %2992
        %v2994 = vsel %vm1628, %v2540, 0.0
        %2995 = vadd.xlane.f32.xlu0 %v2994
        %v2996 = vpop.xlane.xlu0 %2995
        %v2997 = vsel %vm1628, %v2542, 0.0
        %2998 = vadd.xlane.f32.xlu0 %v2997
        %v2999 = vpop.xlane.xlu0 %2998
        %v3000 = vsel %vm1628, %v2544, 0.0
        %3001 = vadd.xlane.f32.xlu0 %v3000
        %v3002 = vpop.xlane.xlu0 %3001
        %v3003 = vsel %vm1628, %v2546, 0.0
        %3004 = vadd.xlane.f32.xlu0 %v3003
        %v3005 = vpop.xlane.xlu0 %3004
        %v3006 = vsel %vm1628, %v2548, 0.0
        %3007 = vadd.xlane.f32.xlu0 %v3006
        %v3008 = vpop.xlane.xlu0 %3007
        %v3009 = vsel %vm1628, %v2550, 0.0
        %3010 = vadd.xlane.f32.xlu0 %v3009
        %v3011 = vpop.xlane.xlu0 %3010
        %v3012 = vsel %vm1628, %v2552, 0.0
        %3013 = vadd.xlane.f32.xlu0 %v3012
        %v3014 = vpop.xlane.xlu0 %3013
        %v3015 = vsel %vm1628, %v2554, 0.0
        %3016 = vadd.xlane.f32.xlu0 %v3015
        %v3017 = vpop.xlane.xlu0 %3016
        %v3018 = vsel %vm1628, %v2556, 0.0
        %3019 = vadd.xlane.f32.xlu0 %v3018
        %v3020 = vpop.xlane.xlu0 %3019
        %v3021 = vsel %vm1628, %v2558, 0.0
        %3022 = vadd.xlane.f32.xlu0 %v3021
        %v3023 = vpop.xlane.xlu0 %3022
        %v3024 = vsel %vm1628, %v2560, 0.0
        %3025 = vadd.xlane.f32.xlu0 %v3024
        %v3026 = vpop.xlane.xlu0 %3025
        %v3027 = vsel %vm1628, %v2562, 0.0
        %3028 = vadd.xlane.f32.xlu0 %v3027
        %v3029 = vpop.xlane.xlu0 %3028
        %v3030 = vsel %vm1628, %v2564, 0.0
        %3031 = vadd.xlane.f32.xlu0 %v3030
        %v3032 = vpop.xlane.xlu0 %3031
        %v3033 = vsel %vm1628, %v2566, 0.0
        %3034 = vadd.xlane.f32.xlu0 %v3033
        %v3035 = vpop.xlane.xlu0 %3034
        %v3036 = vsel %vm1628, %v2568, 0.0
        %3037 = vadd.xlane.f32.xlu0 %v3036
        %v3038 = vpop.xlane.xlu0 %3037
        %v3039 = vsel %vm1628, %v2570, 0.0
        %3040 = vadd.xlane.f32.xlu0 %v3039
        %v3041 = vpop.xlane.xlu0 %3040
        %v3042 = vsel %vm1628, %v2572, 0.0
        %3043 = vadd.xlane.f32.xlu0 %v3042
        %v3044 = vpop.xlane.xlu0 %3043
        %v3045 = vsel %vm1628, %v2574, 0.0
        %3046 = vadd.xlane.f32.xlu0 %v3045
        %v3047 = vpop.xlane.xlu0 %3046
        %v3048 = vsel %vm1628, %v2576, 0.0
        %3049 = vadd.xlane.f32.xlu0 %v3048
        %v3050 = vpop.xlane.xlu0 %3049
        %v3051 = vsel %vm1628, %v2578, 0.0
        %3052 = vadd.xlane.f32.xlu0 %v3051
        %v3053 = vpop.xlane.xlu0 %3052
        %v3054 = vsel %vm1628, %v2580, 0.0
        %3055 = vadd.xlane.f32.xlu0 %v3054
        %v3056 = vpop.xlane.xlu0 %3055
        %v3057 = vsel %vm1628, %v2582, 0.0
        %3058 = vadd.xlane.f32.xlu0 %v3057
        %v3059 = vpop.xlane.xlu0 %3058
        %v3060 = vsel %vm1628, %v2584, 0.0
        %3061 = vadd.xlane.f32.xlu0 %v3060
        %v3062 = vpop.xlane.xlu0 %3061
        %v3063 = vsel %vm1628, %v2586, 0.0
        %3064 = vadd.xlane.f32.xlu0 %v3063
        %v3065 = vpop.xlane.xlu0 %3064
        %v3066 = vsel %vm1628, %v2588, 0.0
        %3067 = vadd.xlane.f32.xlu0 %v3066
        %v3068 = vpop.xlane.xlu0 %3067
        %v3069 = vsel %vm1628, %v2590, 0.0
        %3070 = vadd.xlane.f32.xlu0 %v3069
        %v3071 = vpop.xlane.xlu0 %3070
        %v3072 = vsel %vm1628, %v2592, 0.0
        %3073 = vadd.xlane.f32.xlu0 %v3072
        %v3074 = vpop.xlane.xlu0 %3073
        %v3075 = vsel %vm1628, %v2594, 0.0
        %3076 = vadd.xlane.f32.xlu0 %v3075
        %v3077 = vpop.xlane.xlu0 %3076
        %v3078 = vsel %vm1628, %v2596, 0.0
        %3079 = vadd.xlane.f32.xlu0 %v3078
        %v3080 = vpop.xlane.xlu0 %3079
        %v3081 = vsel %vm1628, %v2598, 0.0
        %3082 = vadd.xlane.f32.xlu0 %v3081
        %v3083 = vpop.xlane.xlu0 %3082
        %v3084 = vsel %vm1628, %v2600, 0.0
        %3085 = vadd.xlane.f32.xlu0 %v3084
        %v3086 = vpop.xlane.xlu0 %3085
        %v3087 = vsel %vm1628, %v2602, 0.0
        %3088 = vadd.xlane.f32.xlu0 %v3087
        %v3089 = vpop.xlane.xlu0 %3088
        %v3090 = vsel %vm1628, %v2604, 0.0
        %3091 = vadd.xlane.f32.xlu0 %v3090
        %v3092 = vpop.xlane.xlu0 %3091
        %v3093 = vsel %vm1628, %v2606, 0.0
        %3094 = vadd.xlane.f32.xlu0 %v3093
        %v3095 = vpop.xlane.xlu0 %3094
        %v3096 = vsel %vm1628, %v2608, 0.0
        %3097 = vadd.xlane.f32.xlu0 %v3096
        %v3098 = vpop.xlane.xlu0 %3097
        %v3099 = vsel %vm1628, %v2610, 0.0
        %3100 = vadd.xlane.f32.xlu0 %v3099
        %v3101 = vpop.xlane.xlu0 %3100
        %v3102 = vsel %vm1628, %v2612, 0.0
        %3103 = vadd.xlane.f32.xlu0 %v3102
        %v3104 = vpop.xlane.xlu0 %3103
        %v3105 = vsel %vm1628, %v2614, 0.0
        %3106 = vadd.xlane.f32.xlu0 %v3105
        %v3107 = vpop.xlane.xlu0 %3106
        %v3108 = vsel %vm1628, %v2616, 0.0
        %3109 = vadd.xlane.f32.xlu0 %v3108
        %v3110 = vpop.xlane.xlu0 %3109
        %v3111 = vsel %vm1628, %v2618, 0.0
        %3112 = vadd.xlane.f32.xlu0 %v3111
        %v3113 = vpop.xlane.xlu0 %3112
        %v3114 = vsel %vm1628, %v2620, 0.0
        %3115 = vadd.xlane.f32.xlu0 %v3114
        %v3116 = vpop.xlane.xlu0 %3115
        %v3117 = vsel %vm1628, %v2622, 0.0
        %3118 = vadd.xlane.f32.xlu0 %v3117
        %v3119 = vpop.xlane.xlu0 %3118
        %v3120 = vsel %vm1628, %v2624, 0.0
        %3121 = vadd.xlane.f32.xlu0 %v3120
        %v3122 = vpop.xlane.xlu0 %3121
        %v3123 = vsel %vm1628, %v2626, 0.0
        %3124 = vadd.xlane.f32.xlu0 %v3123
        %v3125 = vpop.xlane.xlu0 %3124
        %v3126 = vsel %vm1628, %v2628, 0.0
        %3127 = vadd.xlane.f32.xlu0 %v3126
        %v3128 = vpop.xlane.xlu0 %3127
        %v3129 = vsel %vm1628, %v2630, 0.0
        %3130 = vadd.xlane.f32.xlu0 %v3129
        %v3131 = vpop.xlane.xlu0 %3130
        %v3132 = vsel %vm1628, %v2632, 0.0
        %3133 = vadd.xlane.f32.xlu0 %v3132
        %v3134 = vpop.xlane.xlu0 %3133
        %v3135 = vsel %vm1628, %v2634, 0.0
        %3136 = vadd.xlane.f32.xlu0 %v3135
        %v3137 = vpop.xlane.xlu0 %3136
        %v3138 = vsel %vm1628, %v2636, 0.0
        %3139 = vadd.xlane.f32.xlu0 %v3138
        %v3140 = vpop.xlane.xlu0 %3139
        %v3141 = vsel %vm1628, %v2638, 0.0
        %3142 = vadd.xlane.f32.xlu0 %v3141
        %v3143 = vpop.xlane.xlu0 %3142
        %v3144 = vsel %vm1628, %v2640, 0.0
        %3145 = vadd.xlane.f32.xlu0 %v3144
        %v3146 = vpop.xlane.xlu0 %3145
        %v3147 = vsel %vm1628, %v2642, 0.0
        %3148 = vadd.xlane.f32.xlu0 %v3147
        %v3149 = vpop.xlane.xlu0 %3148
        %v3150 = vsel %vm1628, %v2644, 0.0
        %3151 = vadd.xlane.f32.xlu0 %v3150
        %v3152 = vpop.xlane.xlu0 %3151
        %v3153 = vsel %vm1628, %v2646, 0.0
        %3154 = vadd.xlane.f32.xlu0 %v3153
        %v3155 = vpop.xlane.xlu0 %3154
        %v3156 = vsel %vm1628, %v2648, 0.0
        %3157 = vadd.xlane.f32.xlu0 %v3156
        %v3158 = vpop.xlane.xlu0 %3157
        %v3159 = vsel %vm1628, %v2650, 0.0
        %3160 = vadd.xlane.f32.xlu0 %v3159
        %v3161 = vpop.xlane.xlu0 %3160
        %v3162 = vsel %vm1628, %v2652, 0.0
        %3163 = vadd.xlane.f32.xlu0 %v3162
        %v3164 = vpop.xlane.xlu0 %3163
        %v3165 = vsel %vm1628, %v2654, 0.0
        %3166 = vadd.xlane.f32.xlu0 %v3165
        %v3167 = vpop.xlane.xlu0 %3166
        %v3168 = vsel %vm1628, %v2656, 0.0
        %3169 = vadd.xlane.f32.xlu0 %v3168
        %v3170 = vpop.xlane.xlu0 %3169
        %v3171 = vsel %vm1628, %v2658, 0.0
        %3172 = vadd.xlane.f32.xlu0 %v3171
        %v3173 = vpop.xlane.xlu0 %3172
        %v3174 = vsel %vm1628, %v2660, 0.0
        %3175 = vadd.xlane.f32.xlu0 %v3174
        %v3176 = vpop.xlane.xlu0 %3175
        %v3177 = vrcp.pop %v2663
        %v3178 = vrcp.pop %v2666
        %v3179 = vrcp.pop %v2669
        %v3180 = vrcp.pop %v2672
        %v3181 = vrcp.pop %v2675
        %v3182 = vrcp.pop %v2678
        %v3183 = vrcp.pop %v2681
        %v3184 = vrcp.pop %v2684
        %v3185 = vrcp.pop %v2687
        %v3186 = vrcp.pop %v2690
        %v3187 = vrcp.pop %v2693
        %v3188 = vrcp.pop %v2696
        %v3189 = vrcp.pop %v2699
        %v3190 = vrcp.pop %v2702
        %v3191 = vrcp.pop %v2705
        %v3192 = vrcp.pop %v2708
        %v3193 = vrcp.pop %v2711
        %v3194 = vrcp.pop %v2714
        %v3195 = vrcp.pop %v2717
        %v3196 = vrcp.pop %v2720
        %v3197 = vrcp.pop %v2723
        %v3198 = vrcp.pop %v2726
        %v3199 = vrcp.pop %v2729
        %v3200 = vrcp.pop %v2732
        %v3201 = vrcp.pop %v2735
        %v3202 = vrcp.pop %v2738
        %v3203 = vrcp.pop %v2741
        %v3204 = vrcp.pop %v2744
        %v3205 = vrcp.pop %v2747
        %v3206 = vrcp.pop %v2750
        %v3207 = vrcp.pop %v2753
        %v3208 = vrcp.pop %v2756
        %v3209 = vrcp.pop %v2759
        %v3210 = vrcp.pop %v2762
        %v3211 = vrcp.pop %v2765
        %v3212 = vrcp.pop %v2768
        %v3213 = vrcp.pop %v2771
        %v3214 = vrcp.pop %v2774
        %v3215 = vrcp.pop %v2777
        %v3216 = vrcp.pop %v2780
        %v3217 = vrcp.pop %v2783
        %v3218 = vrcp.pop %v2786
        %v3219 = vrcp.pop %v2789
        %v3220 = vrcp.pop %v2792
        %v3221 = vrcp.pop %v2795
        %v3222 = vrcp.pop %v2798
        %v3223 = vrcp.pop %v2801
        %v3224 = vrcp.pop %v2804
        %v3225 = vrcp.pop %v2807
        %v3226 = vrcp.pop %v2810
        %v3227 = vrcp.pop %v2813
        %v3228 = vrcp.pop %v2816
        %v3229 = vrcp.pop %v2819
        %v3230 = vrcp.pop %v2822
        %v3231 = vrcp.pop %v2825
        %v3232 = vrcp.pop %v2828
        %v3233 = vrcp.pop %v2831
        %v3234 = vrcp.pop %v2834
        %v3235 = vrcp.pop %v2837
        %v3236 = vrcp.pop %v2840
        %v3237 = vrcp.pop %v2843
        %v3238 = vrcp.pop %v2846
        %v3239 = vrcp.pop %v2849
        %v3240 = vrcp.pop %v2852
        %v3241 = vrcp.pop %v2855
        %v3242 = vrcp.pop %v2858
        %v3243 = vrcp.pop %v2861
        %v3244 = vrcp.pop %v2864
        %v3245 = vrcp.pop %v2867
        %v3246 = vrcp.pop %v2870
        %v3247 = vrcp.pop %v2873
        %v3248 = vrcp.pop %v2876
        %v3249 = vrcp.pop %v2879
        %v3250 = vrcp.pop %v2882
        %v3251 = vrcp.pop %v2885
        %v3252 = vrcp.pop %v2888
        %v3253 = vrcp.pop %v2891
        %v3254 = vrcp.pop %v2894
        %v3255 = vrcp.pop %v2897
        %v3256 = vrcp.pop %v2900
        %v3257 = vrcp.pop %v2903
        %v3258 = vrcp.pop %v2906
        %v3259 = vrcp.pop %v2909
        %v3260 = vrcp.pop %v2912
        %v3261 = vrcp.pop %v2915
        %v3262 = vrcp.pop %v2918
        %v3263 = vrcp.pop %v2921
        %v3264 = vrcp.pop %v2924
        %v3265 = vrcp.pop %v2927
        %v3266 = vrcp.pop %v2930
        %v3267 = vrcp.pop %v2933
        %v3268 = vrcp.pop %v2936
        %v3269 = vrcp.pop %v2939
        %v3270 = vrcp.pop %v2942
        %v3271 = vrcp.pop %v2945
        %v3272 = vrcp.pop %v2948
        %v3273 = vrcp.pop %v2951
        %v3274 = vrcp.pop %v2954
        %v3275 = vrcp.pop %v2957
        %v3276 = vrcp.pop %v2960
        %v3277 = vrcp.pop %v2963
        %v3278 = vrcp.pop %v2966
        %v3279 = vrcp.pop %v2969
        %v3280 = vrcp.pop %v2972
        %v3281 = vrcp.pop %v2975
        %v3282 = vrcp.pop %v2978
        %v3283 = vrcp.pop %v2981
        %v3284 = vrcp.pop %v2984
        %v3285 = vrcp.pop %v2987
        %v3286 = vrcp.pop %v2990
        %v3287 = vrcp.pop %v2993
        %v3288 = vrcp.pop %v2996
        %v3289 = vrcp.pop %v2999
        %v3290 = vrcp.pop %v3002
        %v3291 = vrcp.pop %v3005
        %v3292 = vrcp.pop %v3008
        %v3293 = vrcp.pop %v3011
        %v3294 = vrcp.pop %v3014
        %v3295 = vrcp.pop %v3017
        %v3296 = vrcp.pop %v3020
        %v3297 = vrcp.pop %v3023
        %v3298 = vrcp.pop %v3026
        %v3299 = vrcp.pop %v3029
        %v3300 = vrcp.pop %v3032
        %v3301 = vrcp.pop %v3035
        %v3302 = vrcp.pop %v3038
        %v3303 = vrcp.pop %v3041
        %v3304 = vrcp.pop %v3044
        %v3305 = vrcp.pop %v3047
        %v3306 = vrcp.pop %v3050
        %v3307 = vrcp.pop %v3053
        %v3308 = vrcp.pop %v3056
        %v3309 = vrcp.pop %v3059
        %v3310 = vrcp.pop %v3062
        %v3311 = vrcp.pop %v3065
        %v3312 = vrcp.pop %v3068
        %v3313 = vrcp.pop %v3071
        %v3314 = vrcp.pop %v3074
        %v3315 = vrcp.pop %v3077
        %v3316 = vrcp.pop %v3080
        %v3317 = vrcp.pop %v3083
        %v3318 = vrcp.pop %v3086
        %v3319 = vrcp.pop %v3089
        %v3320 = vrcp.pop %v3092
        %v3321 = vrcp.pop %v3095
        %v3322 = vrcp.pop %v3098
        %v3323 = vrcp.pop %v3101
        %v3324 = vrcp.pop %v3104
        %v3325 = vrcp.pop %v3107
        %v3326 = vrcp.pop %v3110
        %v3327 = vrcp.pop %v3113
        %v3328 = vrcp.pop %v3116
        %v3329 = vrcp.pop %v3119
        %v3330 = vrcp.pop %v3122
        %v3331 = vrcp.pop %v3125
        %v3332 = vrcp.pop %v3128
        %v3333 = vrcp.pop %v3131
        %v3334 = vrcp.pop %v3134
        %v3335 = vrcp.pop %v3137
        %v3336 = vrcp.pop %v3140
        %v3337 = vrcp.pop %v3143
        %v3338 = vrcp.pop %v3146
        %v3339 = vrcp.pop %v3149
        %v3340 = vrcp.pop %v3152
        %v3341 = vrcp.pop %v3155
        %v3342 = vrcp.pop %v3158
        %v3343 = vrcp.pop %v3161
        %v3344 = vrcp.pop %v3164
        %v3345 = vrcp.pop %v3167
        %v3346 = vrcp.pop %v3170
        %v3347 = vrcp.pop %v3173
        %v3348 = vrcp.pop %v3176
        %v3349 = vmul.f32 %v2318, %v3177
        %v3350 = vmul.f32 %v2320, %v3178
        %v3351 = vmul.f32 %v2322, %v3179
        %v3352 = vmul.f32 %v2324, %v3180
        %v3353 = vmul.f32 %v2326, %v3181
        %v3354 = vmul.f32 %v2328, %v3182
        %v3355 = vmul.f32 %v2330, %v3183
        %v3356 = vmul.f32 %v2332, %v3184
        %v3357 = vmul.f32 %v2334, %v3185
        %v3358 = vmul.f32 %v2336, %v3186
        %v3359 = vmul.f32 %v2338, %v3187
        %v3360 = vmul.f32 %v2340, %v3188
        %v3361 = vmul.f32 %v2342, %v3189
        %v3362 = vmul.f32 %v2344, %v3190
        %v3363 = vmul.f32 %v2346, %v3191
        %v3364 = vmul.f32 %v2348, %v3192
        %v3365 = vmul.f32 %v2350, %v3193
        %v3366 = vmul.f32 %v2352, %v3194
        %v3367 = vmul.f32 %v2354, %v3195
        %v3368 = vmul.f32 %v2356, %v3196
        %v3369 = vmul.f32 %v2358, %v3197
        %v3370 = vmul.f32 %v2360, %v3198
        %v3371 = vmul.f32 %v2362, %v3199
        %v3372 = vmul.f32 %v2364, %v3200
        %v3373 = vmul.f32 %v2366, %v3201
        %v3374 = vmul.f32 %v2368, %v3202
        %v3375 = vmul.f32 %v2370, %v3203
        %v3376 = vmul.f32 %v2372, %v3204
        %v3377 = vmul.f32 %v2374, %v3205
        %v3378 = vmul.f32 %v2376, %v3206
        %v3379 = vmul.f32 %v2378, %v3207
        %v3380 = vmul.f32 %v2380, %v3208
        %v3381 = vmul.f32 %v2382, %v3209
        %v3382 = vmul.f32 %v2384, %v3210
        %v3383 = vmul.f32 %v2386, %v3211
        %v3384 = vmul.f32 %v2388, %v3212
        %v3385 = vmul.f32 %v2390, %v3213
        %v3386 = vmul.f32 %v2392, %v3214
        %v3387 = vmul.f32 %v2394, %v3215
        %v3388 = vmul.f32 %v2396, %v3216
        %v3389 = vmul.f32 %v2398, %v3217
        %v3390 = vmul.f32 %v2400, %v3218
        %v3391 = vmul.f32 %v2402, %v3219
        %v3392 = vmul.f32 %v2404, %v3220
        %v3393 = vmul.f32 %v2406, %v3221
        %v3394 = vmul.f32 %v2408, %v3222
        %v3395 = vmul.f32 %v2410, %v3223
        %v3396 = vmul.f32 %v2412, %v3224
        %v3397 = vmul.f32 %v2414, %v3225
        %v3398 = vmul.f32 %v2416, %v3226
        %v3399 = vmul.f32 %v2418, %v3227
        %v3400 = vmul.f32 %v2420, %v3228
        %v3401 = vmul.f32 %v2422, %v3229
        %v3402 = vmul.f32 %v2424, %v3230
        %v3403 = vmul.f32 %v2426, %v3231
        %v3404 = vmul.f32 %v2428, %v3232
        %v3405 = vmul.f32 %v2430, %v3233
        %v3406 = vmul.f32 %v2432, %v3234
        %v3407 = vmul.f32 %v2434, %v3235
        %v3408 = vmul.f32 %v2436, %v3236
        %v3409 = vmul.f32 %v2438, %v3237
        %v3410 = vmul.f32 %v2440, %v3238
        %v3411 = vmul.f32 %v2442, %v3239
        %v3412 = vmul.f32 %v2444, %v3240
        %v3413 = vmul.f32 %v2446, %v3241
        %v3414 = vmul.f32 %v2448, %v3242
        %v3415 = vmul.f32 %v2450, %v3243
        %v3416 = vmul.f32 %v2452, %v3244
        %v3417 = vmul.f32 %v2454, %v3245
        %v3418 = vmul.f32 %v2456, %v3246
        %v3419 = vmul.f32 %v2458, %v3247
        %v3420 = vmul.f32 %v2460, %v3248
        %v3421 = vmul.f32 %v2462, %v3249
        %v3422 = vmul.f32 %v2464, %v3250
        %v3423 = vmul.f32 %v2466, %v3251
        %v3424 = vmul.f32 %v2468, %v3252
        %v3425 = vmul.f32 %v2470, %v3253
        %v3426 = vmul.f32 %v2472, %v3254
        %v3427 = vmul.f32 %v2474, %v3255
        %v3428 = vmul.f32 %v2476, %v3256
        %v3429 = vmul.f32 %v2478, %v3257
        %v3430 = vmul.f32 %v2480, %v3258
        %v3431 = vmul.f32 %v2482, %v3259
        %v3432 = vmul.f32 %v2484, %v3260
        %v3433 = vmul.f32 %v2486, %v3261
        %v3434 = vmul.f32 %v2488, %v3262
        %v3435 = vmul.f32 %v2490, %v3263
        %v3436 = vmul.f32 %v2492, %v3264
        %v3437 = vmul.f32 %v2494, %v3265
        %v3438 = vmul.f32 %v2496, %v3266
        %v3439 = vmul.f32 %v2498, %v3267
        %v3440 = vmul.f32 %v2500, %v3268
        %v3441 = vmul.f32 %v2502, %v3269
        %v3442 = vmul.f32 %v2504, %v3270
        %v3443 = vmul.f32 %v2506, %v3271
        %v3444 = vmul.f32 %v2508, %v3272
        %v3445 = vmul.f32 %v2510, %v3273
        %v3446 = vmul.f32 %v2512, %v3274
        %v3447 = vmul.f32 %v2514, %v3275
        %v3448 = vmul.f32 %v2516, %v3276
        %v3449 = vmul.f32 %v2518, %v3277
        %v3450 = vmul.f32 %v2520, %v3278
        %v3451 = vmul.f32 %v2522, %v3279
        %v3452 = vmul.f32 %v2524, %v3280
        %v3453 = vmul.f32 %v2526, %v3281
        %v3454 = vmul.f32 %v2528, %v3282
        %v3455 = vmul.f32 %v2530, %v3283
        %v3456 = vmul.f32 %v2532, %v3284
        %v3457 = vmul.f32 %v2534, %v3285
        %v3458 = vmul.f32 %v2536, %v3286
        %v3459 = vmul.f32 %v2538, %v3287
        %v3460 = vmul.f32 %v2540, %v3288
        %v3461 = vmul.f32 %v2542, %v3289
        %v3462 = vmul.f32 %v2544, %v3290
        %v3463 = vmul.f32 %v2546, %v3291
        %v3464 = vmul.f32 %v2548, %v3292
        %v3465 = vmul.f32 %v2550, %v3293
        %v3466 = vmul.f32 %v2552, %v3294
        %v3467 = vmul.f32 %v2554, %v3295
        %v3468 = vmul.f32 %v2556, %v3296
        %v3469 = vmul.f32 %v2558, %v3297
        %v3470 = vmul.f32 %v2560, %v3298
        %v3471 = vmul.f32 %v2562, %v3299
        %v3472 = vmul.f32 %v2564, %v3300
        %v3473 = vmul.f32 %v2566, %v3301
        %v3474 = vmul.f32 %v2568, %v3302
        %v3475 = vmul.f32 %v2570, %v3303
        %v3476 = vmul.f32 %v2572, %v3304
        %v3477 = vmul.f32 %v2574, %v3305
        %v3478 = vmul.f32 %v2576, %v3306
        %v3479 = vmul.f32 %v2578, %v3307
        %v3480 = vmul.f32 %v2580, %v3308
        %v3481 = vmul.f32 %v2582, %v3309
        %v3482 = vmul.f32 %v2584, %v3310
        %v3483 = vmul.f32 %v2586, %v3311
        %v3484 = vmul.f32 %v2588, %v3312
        %v3485 = vmul.f32 %v2590, %v3313
        %v3486 = vmul.f32 %v2592, %v3314
        %v3487 = vmul.f32 %v2594, %v3315
        %v3488 = vmul.f32 %v2596, %v3316
        %v3489 = vmul.f32 %v2598, %v3317
        %v3490 = vmul.f32 %v2600, %v3318
        %v3491 = vmul.f32 %v2602, %v3319
        %v3492 = vmul.f32 %v2604, %v3320
        %v3493 = vmul.f32 %v2606, %v3321
        %v3494 = vmul.f32 %v2608, %v3322
        %v3495 = vmul.f32 %v2610, %v3323
        %v3496 = vmul.f32 %v2612, %v3324
        %v3497 = vmul.f32 %v2614, %v3325
        %v3498 = vmul.f32 %v2616, %v3326
        %v3499 = vmul.f32 %v2618, %v3327
        %v3500 = vmul.f32 %v2620, %v3328
        %v3501 = vmul.f32 %v2622, %v3329
        %v3502 = vmul.f32 %v2624, %v3330
        %v3503 = vmul.f32 %v2626, %v3331
        %v3504 = vmul.f32 %v2628, %v3332
        %v3505 = vmul.f32 %v2630, %v3333
        %v3506 = vmul.f32 %v2632, %v3334
        %v3507 = vmul.f32 %v2634, %v3335
        %v3508 = vmul.f32 %v2636, %v3336
        %v3509 = vmul.f32 %v2638, %v3337
        %v3510 = vmul.f32 %v2640, %v3338
        %v3511 = vmul.f32 %v2642, %v3339
        %v3512 = vmul.f32 %v2644, %v3340
        %v3513 = vmul.f32 %v2646, %v3341
        %v3514 = vmul.f32 %v2648, %v3342
        %v3515 = vmul.f32 %v2650, %v3343
        %v3516 = vmul.f32 %v2652, %v3344
        %v3517 = vmul.f32 %v2654, %v3345
        %v3518 = vmul.f32 %v2656, %v3346
        %v3519 = vmul.f32 %v2658, %v3347
        %v3520 = vmul.f32 %v2660, %v3348
        %3522 = vset.pattern.permute.xlu0 0
        %3523 = vperm.xlu0 %3522, %v3349
        %v3524 = vpop.permute.xlu0 %3523
        %3527 = vset.pattern.permute.xlu0 0
        %3528 = vperm.xlu0 %3527, %v3350
        %v3529 = vpop.permute.xlu0 %3528
        %3532 = vset.pattern.permute.xlu0 0
        %3533 = vperm.xlu0 %3532, %v3351
        %v3534 = vpop.permute.xlu0 %3533
        %3537 = vset.pattern.permute.xlu0 0
        %3538 = vperm.xlu0 %3537, %v3352
        %v3539 = vpop.permute.xlu0 %3538
        %3542 = vset.pattern.permute.xlu0 0
        %3543 = vperm.xlu0 %3542, %v3353
        %v3544 = vpop.permute.xlu0 %3543
        %3547 = vset.pattern.permute.xlu0 0
        %3548 = vperm.xlu0 %3547, %v3354
        %v3549 = vpop.permute.xlu0 %3548
        %3552 = vset.pattern.permute.xlu0 0
        %3553 = vperm.xlu0 %3552, %v3355
        %v3554 = vpop.permute.xlu0 %3553
        %3557 = vset.pattern.permute.xlu0 0
        %3558 = vperm.xlu0 %3557, %v3356
        %v3559 = vpop.permute.xlu0 %3558
        %3562 = vset.pattern.permute.xlu0 0
        %3563 = vperm.xlu0 %3562, %v3357
        %v3564 = vpop.permute.xlu0 %3563
        %3567 = vset.pattern.permute.xlu0 0
        %3568 = vperm.xlu0 %3567, %v3358
        %v3569 = vpop.permute.xlu0 %3568
        %3572 = vset.pattern.permute.xlu0 0
        %3573 = vperm.xlu0 %3572, %v3359
        %v3574 = vpop.permute.xlu0 %3573
        %3577 = vset.pattern.permute.xlu0 0
        %3578 = vperm.xlu0 %3577, %v3360
        %v3579 = vpop.permute.xlu0 %3578
        %3582 = vset.pattern.permute.xlu0 0
        %3583 = vperm.xlu0 %3582, %v3361
        %v3584 = vpop.permute.xlu0 %3583
        %3587 = vset.pattern.permute.xlu0 0
        %3588 = vperm.xlu0 %3587, %v3362
        %v3589 = vpop.permute.xlu0 %3588
        %3592 = vset.pattern.permute.xlu0 0
        %3593 = vperm.xlu0 %3592, %v3363
        %v3594 = vpop.permute.xlu0 %3593
        %3597 = vset.pattern.permute.xlu0 0
        %3598 = vperm.xlu0 %3597, %v3364
        %v3599 = vpop.permute.xlu0 %3598
        %3602 = vset.pattern.permute.xlu0 0
        %3603 = vperm.xlu0 %3602, %v3365
        %v3604 = vpop.permute.xlu0 %3603
        %3607 = vset.pattern.permute.xlu0 0
        %3608 = vperm.xlu0 %3607, %v3366
        %v3609 = vpop.permute.xlu0 %3608
        %3612 = vset.pattern.permute.xlu0 0
        %3613 = vperm.xlu0 %3612, %v3367
        %v3614 = vpop.permute.xlu0 %3613
        %3617 = vset.pattern.permute.xlu0 0
        %3618 = vperm.xlu0 %3617, %v3368
        %v3619 = vpop.permute.xlu0 %3618
        %3622 = vset.pattern.permute.xlu0 0
        %3623 = vperm.xlu0 %3622, %v3369
        %v3624 = vpop.permute.xlu0 %3623
        %3627 = vset.pattern.permute.xlu0 0
        %3628 = vperm.xlu0 %3627, %v3370
        %v3629 = vpop.permute.xlu0 %3628
        %3632 = vset.pattern.permute.xlu0 0
        %3633 = vperm.xlu0 %3632, %v3371
        %v3634 = vpop.permute.xlu0 %3633
        %3637 = vset.pattern.permute.xlu0 0
        %3638 = vperm.xlu0 %3637, %v3372
        %v3639 = vpop.permute.xlu0 %3638
        %3642 = vset.pattern.permute.xlu0 0
        %3643 = vperm.xlu0 %3642, %v3373
        %v3644 = vpop.permute.xlu0 %3643
        %3647 = vset.pattern.permute.xlu0 0
        %3648 = vperm.xlu0 %3647, %v3374
        %v3649 = vpop.permute.xlu0 %3648
        %3652 = vset.pattern.permute.xlu0 0
        %3653 = vperm.xlu0 %3652, %v3375
        %v3654 = vpop.permute.xlu0 %3653
        %3657 = vset.pattern.permute.xlu0 0
        %3658 = vperm.xlu0 %3657, %v3376
        %v3659 = vpop.permute.xlu0 %3658
        %3662 = vset.pattern.permute.xlu0 0
        %3663 = vperm.xlu0 %3662, %v3377
        %v3664 = vpop.permute.xlu0 %3663
        %3667 = vset.pattern.permute.xlu0 0
        %3668 = vperm.xlu0 %3667, %v3378
        %v3669 = vpop.permute.xlu0 %3668
        %3672 = vset.pattern.permute.xlu0 0
        %3673 = vperm.xlu0 %3672, %v3379
        %v3674 = vpop.permute.xlu0 %3673
        %3677 = vset.pattern.permute.xlu0 0
        %3678 = vperm.xlu0 %3677, %v3380
        %v3679 = vpop.permute.xlu0 %3678
        %3682 = vset.pattern.permute.xlu0 0
        %3683 = vperm.xlu0 %3682, %v3381
        %v3684 = vpop.permute.xlu0 %3683
        %3687 = vset.pattern.permute.xlu0 0
        %3688 = vperm.xlu0 %3687, %v3382
        %v3689 = vpop.permute.xlu0 %3688
        %3692 = vset.pattern.permute.xlu0 0
        %3693 = vperm.xlu0 %3692, %v3383
        %v3694 = vpop.permute.xlu0 %3693
        %3697 = vset.pattern.permute.xlu0 0
        %3698 = vperm.xlu0 %3697, %v3384
        %v3699 = vpop.permute.xlu0 %3698
        %3702 = vset.pattern.permute.xlu0 0
        %3703 = vperm.xlu0 %3702, %v3385
        %v3704 = vpop.permute.xlu0 %3703
        %3707 = vset.pattern.permute.xlu0 0
        %3708 = vperm.xlu0 %3707, %v3386
        %v3709 = vpop.permute.xlu0 %3708
        %3712 = vset.pattern.permute.xlu0 0
        %3713 = vperm.xlu0 %3712, %v3387
        %v3714 = vpop.permute.xlu0 %3713
        %3717 = vset.pattern.permute.xlu0 0
        %3718 = vperm.xlu0 %3717, %v3388
        %v3719 = vpop.permute.xlu0 %3718
        %3722 = vset.pattern.permute.xlu0 0
        %3723 = vperm.xlu0 %3722, %v3389
        %v3724 = vpop.permute.xlu0 %3723
        %3727 = vset.pattern.permute.xlu0 0
        %3728 = vperm.xlu0 %3727, %v3390
        %v3729 = vpop.permute.xlu0 %3728
        %3732 = vset.pattern.permute.xlu0 0
        %3733 = vperm.xlu0 %3732, %v3391
        %v3734 = vpop.permute.xlu0 %3733
        %3737 = vset.pattern.permute.xlu0 0
        %3738 = vperm.xlu0 %3737, %v3392
        %v3739 = vpop.permute.xlu0 %3738
        %3742 = vset.pattern.permute.xlu0 0
        %3743 = vperm.xlu0 %3742, %v3393
        %v3744 = vpop.permute.xlu0 %3743
        %3747 = vset.pattern.permute.xlu0 0
        %3748 = vperm.xlu0 %3747, %v3394
        %v3749 = vpop.permute.xlu0 %3748
        %3752 = vset.pattern.permute.xlu0 0
        %3753 = vperm.xlu0 %3752, %v3395
        %v3754 = vpop.permute.xlu0 %3753
        %3757 = vset.pattern.permute.xlu0 0
        %3758 = vperm.xlu0 %3757, %v3396
        %v3759 = vpop.permute.xlu0 %3758
        %3762 = vset.pattern.permute.xlu0 0
        %3763 = vperm.xlu0 %3762, %v3397
        %v3764 = vpop.permute.xlu0 %3763
        %3767 = vset.pattern.permute.xlu0 0
        %3768 = vperm.xlu0 %3767, %v3398
        %v3769 = vpop.permute.xlu0 %3768
        %3772 = vset.pattern.permute.xlu0 0
        %3773 = vperm.xlu0 %3772, %v3399
        %v3774 = vpop.permute.xlu0 %3773
        %3777 = vset.pattern.permute.xlu0 0
        %3778 = vperm.xlu0 %3777, %v3400
        %v3779 = vpop.permute.xlu0 %3778
        %3782 = vset.pattern.permute.xlu0 0
        %3783 = vperm.xlu0 %3782, %v3401
        %v3784 = vpop.permute.xlu0 %3783
        %3787 = vset.pattern.permute.xlu0 0
        %3788 = vperm.xlu0 %3787, %v3402
        %v3789 = vpop.permute.xlu0 %3788
        %3792 = vset.pattern.permute.xlu0 0
        %3793 = vperm.xlu0 %3792, %v3403
        %v3794 = vpop.permute.xlu0 %3793
        %3797 = vset.pattern.permute.xlu0 0
        %3798 = vperm.xlu0 %3797, %v3404
        %v3799 = vpop.permute.xlu0 %3798
        %3802 = vset.pattern.permute.xlu0 0
        %3803 = vperm.xlu0 %3802, %v3405
        %v3804 = vpop.permute.xlu0 %3803
        %3807 = vset.pattern.permute.xlu0 0
        %3808 = vperm.xlu0 %3807, %v3406
        %v3809 = vpop.permute.xlu0 %3808
        %3812 = vset.pattern.permute.xlu0 0
        %3813 = vperm.xlu0 %3812, %v3407
        %v3814 = vpop.permute.xlu0 %3813
        %3817 = vset.pattern.permute.xlu0 0
        %3818 = vperm.xlu0 %3817, %v3408
        %v3819 = vpop.permute.xlu0 %3818
        %3822 = vset.pattern.permute.xlu0 0
        %3823 = vperm.xlu0 %3822, %v3409
        %v3824 = vpop.permute.xlu0 %3823
        %3827 = vset.pattern.permute.xlu0 0
        %3828 = vperm.xlu0 %3827, %v3410
        %v3829 = vpop.permute.xlu0 %3828
        %3832 = vset.pattern.permute.xlu0 0
        %3833 = vperm.xlu0 %3832, %v3411
        %v3834 = vpop.permute.xlu0 %3833
        %3837 = vset.pattern.permute.xlu0 0
        %3838 = vperm.xlu0 %3837, %v3412
        %v3839 = vpop.permute.xlu0 %3838
        %3842 = vset.pattern.permute.xlu0 0
        %3843 = vperm.xlu0 %3842, %v3413
        %v3844 = vpop.permute.xlu0 %3843
        %3847 = vset.pattern.permute.xlu0 0
        %3848 = vperm.xlu0 %3847, %v3414
        %v3849 = vpop.permute.xlu0 %3848
        %3852 = vset.pattern.permute.xlu0 0
        %3853 = vperm.xlu0 %3852, %v3415
        %v3854 = vpop.permute.xlu0 %3853
        %3857 = vset.pattern.permute.xlu0 0
        %3858 = vperm.xlu0 %3857, %v3416
        %v3859 = vpop.permute.xlu0 %3858
        %3862 = vset.pattern.permute.xlu0 0
        %3863 = vperm.xlu0 %3862, %v3417
        %v3864 = vpop.permute.xlu0 %3863
        %3867 = vset.pattern.permute.xlu0 0
        %3868 = vperm.xlu0 %3867, %v3418
        %v3869 = vpop.permute.xlu0 %3868
        %3872 = vset.pattern.permute.xlu0 0
        %3873 = vperm.xlu0 %3872, %v3419
        %v3874 = vpop.permute.xlu0 %3873
        %3877 = vset.pattern.permute.xlu0 0
        %3878 = vperm.xlu0 %3877, %v3420
        %v3879 = vpop.permute.xlu0 %3878
        %3882 = vset.pattern.permute.xlu0 0
        %3883 = vperm.xlu0 %3882, %v3421
        %v3884 = vpop.permute.xlu0 %3883
        %3887 = vset.pattern.permute.xlu0 0
        %3888 = vperm.xlu0 %3887, %v3422
        %v3889 = vpop.permute.xlu0 %3888
        %3892 = vset.pattern.permute.xlu0 0
        %3893 = vperm.xlu0 %3892, %v3423
        %v3894 = vpop.permute.xlu0 %3893
        %3897 = vset.pattern.permute.xlu0 0
        %3898 = vperm.xlu0 %3897, %v3424
        %v3899 = vpop.permute.xlu0 %3898
        %3902 = vset.pattern.permute.xlu0 0
        %3903 = vperm.xlu0 %3902, %v3425
        %v3904 = vpop.permute.xlu0 %3903
        %3907 = vset.pattern.permute.xlu0 0
        %3908 = vperm.xlu0 %3907, %v3426
        %v3909 = vpop.permute.xlu0 %3908
        %3912 = vset.pattern.permute.xlu0 0
        %3913 = vperm.xlu0 %3912, %v3427
        %v3914 = vpop.permute.xlu0 %3913
        %3917 = vset.pattern.permute.xlu0 0
        %3918 = vperm.xlu0 %3917, %v3428
        %v3919 = vpop.permute.xlu0 %3918
        %3922 = vset.pattern.permute.xlu0 0
        %3923 = vperm.xlu0 %3922, %v3429
        %v3924 = vpop.permute.xlu0 %3923
        %3927 = vset.pattern.permute.xlu0 0
        %3928 = vperm.xlu0 %3927, %v3430
        %v3929 = vpop.permute.xlu0 %3928
        %3932 = vset.pattern.permute.xlu0 0
        %3933 = vperm.xlu0 %3932, %v3431
        %v3934 = vpop.permute.xlu0 %3933
        %3937 = vset.pattern.permute.xlu0 0
        %3938 = vperm.xlu0 %3937, %v3432
        %v3939 = vpop.permute.xlu0 %3938
        %3942 = vset.pattern.permute.xlu0 0
        %3943 = vperm.xlu0 %3942, %v3433
        %v3944 = vpop.permute.xlu0 %3943
        %3947 = vset.pattern.permute.xlu0 0
        %3948 = vperm.xlu0 %3947, %v3434
        %v3949 = vpop.permute.xlu0 %3948
        %3952 = vset.pattern.permute.xlu0 0
        %3953 = vperm.xlu0 %3952, %v3435
        %v3954 = vpop.permute.xlu0 %3953
        %3957 = vset.pattern.permute.xlu0 0
        %3958 = vperm.xlu0 %3957, %v3436
        %v3959 = vpop.permute.xlu0 %3958
        %3962 = vset.pattern.permute.xlu0 0
        %3963 = vperm.xlu0 %3962, %v3437
        %v3964 = vpop.permute.xlu0 %3963
        %3967 = vset.pattern.permute.xlu0 0
        %3968 = vperm.xlu0 %3967, %v3438
        %v3969 = vpop.permute.xlu0 %3968
        %3972 = vset.pattern.permute.xlu0 0
        %3973 = vperm.xlu0 %3972, %v3439
        %v3974 = vpop.permute.xlu0 %3973
        %3977 = vset.pattern.permute.xlu0 0
        %3978 = vperm.xlu0 %3977, %v3440
        %v3979 = vpop.permute.xlu0 %3978
        %3982 = vset.pattern.permute.xlu0 0
        %3983 = vperm.xlu0 %3982, %v3441
        %v3984 = vpop.permute.xlu0 %3983
        %3987 = vset.pattern.permute.xlu0 0
        %3988 = vperm.xlu0 %3987, %v3442
        %v3989 = vpop.permute.xlu0 %3988
        %3992 = vset.pattern.permute.xlu0 0
        %3993 = vperm.xlu0 %3992, %v3443
        %v3994 = vpop.permute.xlu0 %3993
        %3997 = vset.pattern.permute.xlu0 0
        %3998 = vperm.xlu0 %3997, %v3444
        %v3999 = vpop.permute.xlu0 %3998
        %4002 = vset.pattern.permute.xlu0 0
        %4003 = vperm.xlu0 %4002, %v3445
        %v4004 = vpop.permute.xlu0 %4003
        %4007 = vset.pattern.permute.xlu0 0
        %4008 = vperm.xlu0 %4007, %v3446
        %v4009 = vpop.permute.xlu0 %4008
        %4012 = vset.pattern.permute.xlu0 0
        %4013 = vperm.xlu0 %4012, %v3447
        %v4014 = vpop.permute.xlu0 %4013
        %4017 = vset.pattern.permute.xlu0 0
        %4018 = vperm.xlu0 %4017, %v3448
        %v4019 = vpop.permute.xlu0 %4018
        %4022 = vset.pattern.permute.xlu0 0
        %4023 = vperm.xlu0 %4022, %v3449
        %v4024 = vpop.permute.xlu0 %4023
        %4027 = vset.pattern.permute.xlu0 0
        %4028 = vperm.xlu0 %4027, %v3450
        %v4029 = vpop.permute.xlu0 %4028
        %4032 = vset.pattern.permute.xlu0 0
        %4033 = vperm.xlu0 %4032, %v3451
        %v4034 = vpop.permute.xlu0 %4033
        %4037 = vset.pattern.permute.xlu0 0
        %4038 = vperm.xlu0 %4037, %v3452
        %v4039 = vpop.permute.xlu0 %4038
        %4042 = vset.pattern.permute.xlu0 0
        %4043 = vperm.xlu0 %4042, %v3453
        %v4044 = vpop.permute.xlu0 %4043
        %4047 = vset.pattern.permute.xlu0 0
        %4048 = vperm.xlu0 %4047, %v3454
        %v4049 = vpop.permute.xlu0 %4048
        %4052 = vset.pattern.permute.xlu0 0
        %4053 = vperm.xlu0 %4052, %v3455
        %v4054 = vpop.permute.xlu0 %4053
        %4057 = vset.pattern.permute.xlu0 0
        %4058 = vperm.xlu0 %4057, %v3456
        %v4059 = vpop.permute.xlu0 %4058
        %4062 = vset.pattern.permute.xlu0 0
        %4063 = vperm.xlu0 %4062, %v3457
        %v4064 = vpop.permute.xlu0 %4063
        %4067 = vset.pattern.permute.xlu0 0
        %4068 = vperm.xlu0 %4067, %v3458
        %v4069 = vpop.permute.xlu0 %4068
        %4072 = vset.pattern.permute.xlu0 0
        %4073 = vperm.xlu0 %4072, %v3459
        %v4074 = vpop.permute.xlu0 %4073
        %4077 = vset.pattern.permute.xlu0 0
        %4078 = vperm.xlu0 %4077, %v3460
        %v4079 = vpop.permute.xlu0 %4078
        %4082 = vset.pattern.permute.xlu0 0
        %4083 = vperm.xlu0 %4082, %v3461
        %v4084 = vpop.permute.xlu0 %4083
        %4087 = vset.pattern.permute.xlu0 0
        %4088 = vperm.xlu0 %4087, %v3462
        %v4089 = vpop.permute.xlu0 %4088
        %4092 = vset.pattern.permute.xlu0 0
        %4093 = vperm.xlu0 %4092, %v3463
        %v4094 = vpop.permute.xlu0 %4093
        %4097 = vset.pattern.permute.xlu0 0
        %4098 = vperm.xlu0 %4097, %v3464
        %v4099 = vpop.permute.xlu0 %4098
        %4102 = vset.pattern.permute.xlu0 0
        %4103 = vperm.xlu0 %4102, %v3465
        %v4104 = vpop.permute.xlu0 %4103
        %4107 = vset.pattern.permute.xlu0 0
        %4108 = vperm.xlu0 %4107, %v3466
        %v4109 = vpop.permute.xlu0 %4108
        %4112 = vset.pattern.permute.xlu0 0
        %4113 = vperm.xlu0 %4112, %v3467
        %v4114 = vpop.permute.xlu0 %4113
        %4117 = vset.pattern.permute.xlu0 0
        %4118 = vperm.xlu0 %4117, %v3468
        %v4119 = vpop.permute.xlu0 %4118
        %4122 = vset.pattern.permute.xlu0 0
        %4123 = vperm.xlu0 %4122, %v3469
        %v4124 = vpop.permute.xlu0 %4123
        %4127 = vset.pattern.permute.xlu0 0
        %4128 = vperm.xlu0 %4127, %v3470
        %v4129 = vpop.permute.xlu0 %4128
        %4132 = vset.pattern.permute.xlu0 0
        %4133 = vperm.xlu0 %4132, %v3471
        %v4134 = vpop.permute.xlu0 %4133
        %4137 = vset.pattern.permute.xlu0 0
        %4138 = vperm.xlu0 %4137, %v3472
        %v4139 = vpop.permute.xlu0 %4138
        %4142 = vset.pattern.permute.xlu0 0
        %4143 = vperm.xlu0 %4142, %v3473
        %v4144 = vpop.permute.xlu0 %4143
        %4147 = vset.pattern.permute.xlu0 0
        %4148 = vperm.xlu0 %4147, %v3474
        %v4149 = vpop.permute.xlu0 %4148
        %4152 = vset.pattern.permute.xlu0 0
        %4153 = vperm.xlu0 %4152, %v3475
        %v4154 = vpop.permute.xlu0 %4153
        %4157 = vset.pattern.permute.xlu0 0
        %4158 = vperm.xlu0 %4157, %v3476
        %v4159 = vpop.permute.xlu0 %4158
        %4162 = vset.pattern.permute.xlu0 0
        %4163 = vperm.xlu0 %4162, %v3477
        %v4164 = vpop.permute.xlu0 %4163
        %4167 = vset.pattern.permute.xlu0 0
        %4168 = vperm.xlu0 %4167, %v3478
        %v4169 = vpop.permute.xlu0 %4168
        %4172 = vset.pattern.permute.xlu0 0
        %4173 = vperm.xlu0 %4172, %v3479
        %v4174 = vpop.permute.xlu0 %4173
        %4177 = vset.pattern.permute.xlu0 0
        %4178 = vperm.xlu0 %4177, %v3480
        %v4179 = vpop.permute.xlu0 %4178
        %4182 = vset.pattern.permute.xlu0 0
        %4183 = vperm.xlu0 %4182, %v3481
        %v4184 = vpop.permute.xlu0 %4183
        %4187 = vset.pattern.permute.xlu0 0
        %4188 = vperm.xlu0 %4187, %v3482
        %v4189 = vpop.permute.xlu0 %4188
        %4192 = vset.pattern.permute.xlu0 0
        %4193 = vperm.xlu0 %4192, %v3483
        %v4194 = vpop.permute.xlu0 %4193
        %4197 = vset.pattern.permute.xlu0 0
        %4198 = vperm.xlu0 %4197, %v3484
        %v4199 = vpop.permute.xlu0 %4198
        %4202 = vset.pattern.permute.xlu0 0
        %4203 = vperm.xlu0 %4202, %v3485
        %v4204 = vpop.permute.xlu0 %4203
        %4207 = vset.pattern.permute.xlu0 0
        %4208 = vperm.xlu0 %4207, %v3486
        %v4209 = vpop.permute.xlu0 %4208
        %4212 = vset.pattern.permute.xlu0 0
        %4213 = vperm.xlu0 %4212, %v3487
        %v4214 = vpop.permute.xlu0 %4213
        %4217 = vset.pattern.permute.xlu0 0
        %4218 = vperm.xlu0 %4217, %v3488
        %v4219 = vpop.permute.xlu0 %4218
        %4222 = vset.pattern.permute.xlu0 0
        %4223 = vperm.xlu0 %4222, %v3489
        %v4224 = vpop.permute.xlu0 %4223
        %4227 = vset.pattern.permute.xlu0 0
        %4228 = vperm.xlu0 %4227, %v3490
        %v4229 = vpop.permute.xlu0 %4228
        %4232 = vset.pattern.permute.xlu0 0
        %4233 = vperm.xlu0 %4232, %v3491
        %v4234 = vpop.permute.xlu0 %4233
        %4237 = vset.pattern.permute.xlu0 0
        %4238 = vperm.xlu0 %4237, %v3492
        %v4239 = vpop.permute.xlu0 %4238
        %4242 = vset.pattern.permute.xlu0 0
        %4243 = vperm.xlu0 %4242, %v3493
        %v4244 = vpop.permute.xlu0 %4243
        %4247 = vset.pattern.permute.xlu0 0
        %4248 = vperm.xlu0 %4247, %v3494
        %v4249 = vpop.permute.xlu0 %4248
        %4252 = vset.pattern.permute.xlu0 0
        %4253 = vperm.xlu0 %4252, %v3495
        %v4254 = vpop.permute.xlu0 %4253
        %4257 = vset.pattern.permute.xlu0 0
        %4258 = vperm.xlu0 %4257, %v3496
        %v4259 = vpop.permute.xlu0 %4258
        %4262 = vset.pattern.permute.xlu0 0
        %4263 = vperm.xlu0 %4262, %v3497
        %v4264 = vpop.permute.xlu0 %4263
        %4267 = vset.pattern.permute.xlu0 0
        %4268 = vperm.xlu0 %4267, %v3498
        %v4269 = vpop.permute.xlu0 %4268
        %4272 = vset.pattern.permute.xlu0 0
        %4273 = vperm.xlu0 %4272, %v3499
        %v4274 = vpop.permute.xlu0 %4273
        %4277 = vset.pattern.permute.xlu0 0
        %4278 = vperm.xlu0 %4277, %v3500
        %v4279 = vpop.permute.xlu0 %4278
        %4282 = vset.pattern.permute.xlu0 0
        %4283 = vperm.xlu0 %4282, %v3501
        %v4284 = vpop.permute.xlu0 %4283
        %4287 = vset.pattern.permute.xlu0 0
        %4288 = vperm.xlu0 %4287, %v3502
        %v4289 = vpop.permute.xlu0 %4288
        %4292 = vset.pattern.permute.xlu0 0
        %4293 = vperm.xlu0 %4292, %v3503
        %v4294 = vpop.permute.xlu0 %4293
        %4297 = vset.pattern.permute.xlu0 0
        %4298 = vperm.xlu0 %4297, %v3504
        %v4299 = vpop.permute.xlu0 %4298
        %4302 = vset.pattern.permute.xlu0 0
        %4303 = vperm.xlu0 %4302, %v3505
        %v4304 = vpop.permute.xlu0 %4303
        %4307 = vset.pattern.permute.xlu0 0
        %4308 = vperm.xlu0 %4307, %v3506
        %v4309 = vpop.permute.xlu0 %4308
        %4312 = vset.pattern.permute.xlu0 0
        %4313 = vperm.xlu0 %4312, %v3507
        %v4314 = vpop.permute.xlu0 %4313
        %4317 = vset.pattern.permute.xlu0 0
        %4318 = vperm.xlu0 %4317, %v3508
        %v4319 = vpop.permute.xlu0 %4318
        %4322 = vset.pattern.permute.xlu0 0
        %4323 = vperm.xlu0 %4322, %v3509
        %v4324 = vpop.permute.xlu0 %4323
        %4327 = vset.pattern.permute.xlu0 0
        %4328 = vperm.xlu0 %4327, %v3510
        %v4329 = vpop.permute.xlu0 %4328
        %4332 = vset.pattern.permute.xlu0 0
        %4333 = vperm.xlu0 %4332, %v3511
        %v4334 = vpop.permute.xlu0 %4333
        %4337 = vset.pattern.permute.xlu0 0
        %4338 = vperm.xlu0 %4337, %v3512
        %v4339 = vpop.permute.xlu0 %4338
        %4342 = vset.pattern.permute.xlu0 0
        %4343 = vperm.xlu0 %4342, %v3513
        %v4344 = vpop.permute.xlu0 %4343
        %4347 = vset.pattern.permute.xlu0 0
        %4348 = vperm.xlu0 %4347, %v3514
        %v4349 = vpop.permute.xlu0 %4348
        %4352 = vset.pattern.permute.xlu0 0
        %4353 = vperm.xlu0 %4352, %v3515
        %v4354 = vpop.permute.xlu0 %4353
        %4357 = vset.pattern.permute.xlu0 0
        %4358 = vperm.xlu0 %4357, %v3516
        %v4359 = vpop.permute.xlu0 %4358
        %4362 = vset.pattern.permute.xlu0 0
        %4363 = vperm.xlu0 %4362, %v3517
        %v4364 = vpop.permute.xlu0 %4363
        %4367 = vset.pattern.permute.xlu0 0
        %4368 = vperm.xlu0 %4367, %v3518
        %v4369 = vpop.permute.xlu0 %4368
        %4372 = vset.pattern.permute.xlu0 0
        %4373 = vperm.xlu0 %4372, %v3519
        %v4374 = vpop.permute.xlu0 %4373
        %4377 = vset.pattern.permute.xlu0 0
        %4378 = vperm.xlu0 %4377, %v3520
        %v4379 = vpop.permute.xlu0 %4378
        %v4381 = vmul.f32 %v1027, %v3524
        %v4382 = vmul.f32 %v1029, %v3529
        %v4383 = vmul.f32 %v1032, %v3534
        %v4384 = vmul.f32 %v1034, %v3539
        %v4385 = vmul.f32 %v1037, %v3544
        %v4386 = vmul.f32 %v1039, %v3549
        %v4387 = vmul.f32 %v1042, %v3554
        %v4388 = vmul.f32 %v1044, %v3559
        %v4389 = vmul.f32 %v1047, %v3564
        %v4390 = vmul.f32 %v1049, %v3569
        %v4391 = vmul.f32 %v1052, %v3574
        %v4392 = vmul.f32 %v1054, %v3579
        %v4393 = vmul.f32 %v1057, %v3584
        %v4394 = vmul.f32 %v1059, %v3589
        %v4395 = vmul.f32 %v1062, %v3594
        %v4396 = vmul.f32 %v1064, %v3599
        %v4397 = vmul.f32 %v1067, %v3604
        %v4398 = vmul.f32 %v1069, %v3609
        %v4399 = vmul.f32 %v1072, %v3614
        %v4400 = vmul.f32 %v1074, %v3619
        %v4401 = vmul.f32 %v1077, %v3624
        %v4402 = vmul.f32 %v1079, %v3629
        %v4403 = vmul.f32 %v1082, %v3634
        %v4404 = vmul.f32 %v1084, %v3639
        %v4405 = vmul.f32 %v1087, %v3644
        %v4406 = vmul.f32 %v1089, %v3649
        %v4407 = vmul.f32 %v1092, %v3654
        %v4408 = vmul.f32 %v1094, %v3659
        %v4409 = vmul.f32 %v1097, %v3664
        %v4410 = vmul.f32 %v1099, %v3669
        %v4411 = vmul.f32 %v1102, %v3674
        %v4412 = vmul.f32 %v1104, %v3679
        %v4413 = vmul.f32 %v1107, %v3684
        %v4414 = vmul.f32 %v1109, %v3689
        %v4415 = vmul.f32 %v1112, %v3694
        %v4416 = vmul.f32 %v1114, %v3699
        %v4417 = vmul.f32 %v1117, %v3704
        %v4418 = vmul.f32 %v1119, %v3709
        %v4419 = vmul.f32 %v1122, %v3714
        %v4420 = vmul.f32 %v1124, %v3719
        %v4421 = vmul.f32 %v1127, %v3724
        %v4422 = vmul.f32 %v1129, %v3729
        %v4423 = vmul.f32 %v1132, %v3734
        %v4424 = vmul.f32 %v1134, %v3739
        %v4425 = vmul.f32 %v1137, %v3744
        %v4426 = vmul.f32 %v1139, %v3749
        %v4427 = vmul.f32 %v1142, %v3754
        %v4428 = vmul.f32 %v1144, %v3759
        %v4429 = vmul.f32 %v1147, %v3764
        %v4430 = vmul.f32 %v1149, %v3769
        %v4431 = vmul.f32 %v1152, %v3774
        %v4432 = vmul.f32 %v1154, %v3779
        %v4433 = vmul.f32 %v1157, %v3784
        %v4434 = vmul.f32 %v1159, %v3789
        %v4435 = vmul.f32 %v1162, %v3794
        %v4436 = vmul.f32 %v1164, %v3799
        %v4437 = vmul.f32 %v1167, %v3804
        %v4438 = vmul.f32 %v1169, %v3809
        %v4439 = vmul.f32 %v1172, %v3814
        %v4440 = vmul.f32 %v1174, %v3819
        %v4441 = vmul.f32 %v1177, %v3824
        %v4442 = vmul.f32 %v1179, %v3829
        %v4443 = vmul.f32 %v1182, %v3834
        %v4444 = vmul.f32 %v1184, %v3839
        %v4445 = vmul.f32 %v1187, %v3844
        %v4446 = vmul.f32 %v1189, %v3849
        %v4447 = vmul.f32 %v1192, %v3854
        %v4448 = vmul.f32 %v1194, %v3859
        %v4449 = vmul.f32 %v1197, %v3864
        %v4450 = vmul.f32 %v1199, %v3869
        %v4451 = vmul.f32 %v1202, %v3874
        %v4452 = vmul.f32 %v1204, %v3879
        %v4453 = vmul.f32 %v1207, %v3884
        %v4454 = vmul.f32 %v1209, %v3889
        %v4455 = vmul.f32 %v1212, %v3894
        %v4456 = vmul.f32 %v1214, %v3899
        %v4457 = vmul.f32 %v1217, %v3904
        %v4458 = vmul.f32 %v1219, %v3909
        %v4459 = vmul.f32 %v1222, %v3914
        %v4460 = vmul.f32 %v1224, %v3919
        %v4461 = vmul.f32 %v1227, %v3924
        %v4462 = vmul.f32 %v1229, %v3929
        %v4463 = vmul.f32 %v1232, %v3934
        %v4464 = vmul.f32 %v1234, %v3939
        %v4465 = vmul.f32 %v1237, %v3944
        %v4466 = vmul.f32 %v1239, %v3949
        %v4467 = vmul.f32 %v1242, %v3954
        %v4468 = vmul.f32 %v1244, %v3959
        %v4469 = vmul.f32 %v1247, %v3964
        %v4470 = vmul.f32 %v1249, %v3969
        %v4471 = vmul.f32 %v1252, %v3974
        %v4472 = vmul.f32 %v1254, %v3979
        %v4473 = vmul.f32 %v1257, %v3984
        %v4474 = vmul.f32 %v1259, %v3989
        %v4475 = vmul.f32 %v1262, %v3994
        %v4476 = vmul.f32 %v1264, %v3999
        %v4477 = vmul.f32 %v1267, %v4004
        %v4478 = vmul.f32 %v1269, %v4009
        %v4479 = vmul.f32 %v1272, %v4014
        %v4480 = vmul.f32 %v1274, %v4019
        %v4481 = vmul.f32 %v1277, %v4024
        %v4482 = vmul.f32 %v1279, %v4029
        %v4483 = vmul.f32 %v1282, %v4034
        %v4484 = vmul.f32 %v1284, %v4039
        %v4485 = vmul.f32 %v1287, %v4044
        %v4486 = vmul.f32 %v1289, %v4049
        %v4487 = vmul.f32 %v1292, %v4054
        %v4488 = vmul.f32 %v1294, %v4059
        %v4489 = vmul.f32 %v1297, %v4064
        %v4490 = vmul.f32 %v1299, %v4069
        %v4491 = vmul.f32 %v1302, %v4074
        %v4492 = vmul.f32 %v1304, %v4079
        %v4493 = vmul.f32 %v1307, %v4084
        %v4494 = vmul.f32 %v1309, %v4089
        %v4495 = vmul.f32 %v1312, %v4094
        %v4496 = vmul.f32 %v1314, %v4099
        %v4497 = vmul.f32 %v1317, %v4104
        %v4498 = vmul.f32 %v1319, %v4109
        %v4499 = vmul.f32 %v1322, %v4114
        %v4500 = vmul.f32 %v1324, %v4119
        %v4501 = vmul.f32 %v1327, %v4124
        %v4502 = vmul.f32 %v1329, %v4129
        %v4503 = vmul.f32 %v1332, %v4134
        %v4504 = vmul.f32 %v1334, %v4139
        %v4505 = vmul.f32 %v1337, %v4144
        %v4506 = vmul.f32 %v1339, %v4149
        %v4507 = vmul.f32 %v1342, %v4154
        %v4508 = vmul.f32 %v1344, %v4159
        %v4509 = vmul.f32 %v1347, %v4164
        %v4510 = vmul.f32 %v1349, %v4169
        %v4511 = vmul.f32 %v1352, %v4174
        %v4512 = vmul.f32 %v1354, %v4179
        %v4513 = vmul.f32 %v1357, %v4184
        %v4514 = vmul.f32 %v1359, %v4189
        %v4515 = vmul.f32 %v1362, %v4194
        %v4516 = vmul.f32 %v1364, %v4199
        %v4517 = vmul.f32 %v1367, %v4204
        %v4518 = vmul.f32 %v1369, %v4209
        %v4519 = vmul.f32 %v1372, %v4214
        %v4520 = vmul.f32 %v1374, %v4219
        %v4521 = vmul.f32 %v1377, %v4224
        %v4522 = vmul.f32 %v1379, %v4229
        %v4523 = vmul.f32 %v1382, %v4234
        %v4524 = vmul.f32 %v1384, %v4239
        %v4525 = vmul.f32 %v1387, %v4244
        %v4526 = vmul.f32 %v1389, %v4249
        %v4527 = vmul.f32 %v1392, %v4254
        %v4528 = vmul.f32 %v1394, %v4259
        %v4529 = vmul.f32 %v1397, %v4264
        %v4530 = vmul.f32 %v1399, %v4269
        %v4531 = vmul.f32 %v1402, %v4274
        %v4532 = vmul.f32 %v1404, %v4279
        %v4533 = vmul.f32 %v1407, %v4284
        %v4534 = vmul.f32 %v1409, %v4289
        %v4535 = vmul.f32 %v1412, %v4294
        %v4536 = vmul.f32 %v1414, %v4299
        %v4537 = vmul.f32 %v1417, %v4304
        %v4538 = vmul.f32 %v1419, %v4309
        %v4539 = vmul.f32 %v1422, %v4314
        %v4540 = vmul.f32 %v1424, %v4319
        %v4541 = vmul.f32 %v1427, %v4324
        %v4542 = vmul.f32 %v1429, %v4329
        %v4543 = vmul.f32 %v1432, %v4334
        %v4544 = vmul.f32 %v1434, %v4339
        %v4545 = vmul.f32 %v1437, %v4344
        %v4546 = vmul.f32 %v1439, %v4349
        %v4547 = vmul.f32 %v1442, %v4354
        %v4548 = vmul.f32 %v1444, %v4359
        %v4549 = vmul.f32 %v1447, %v4364
        %v4550 = vmul.f32 %v1449, %v4369
        %v4551 = vmul.f32 %v1452, %v4374
        %v4552 = vmul.f32 %v1454, %v4379
        %4553 = vset.pattern.permute.xlu0 1
        %4554 = vperm.xlu0 %4553, %v3349
        %v4555 = vpop.permute.xlu0 %4554
        %4557 = vset.pattern.permute.xlu0 1
        %4558 = vperm.xlu0 %4557, %v3350
        %v4559 = vpop.permute.xlu0 %4558
        %4561 = vset.pattern.permute.xlu0 1
        %4562 = vperm.xlu0 %4561, %v3351
        %v4563 = vpop.permute.xlu0 %4562
        %4565 = vset.pattern.permute.xlu0 1
        %4566 = vperm.xlu0 %4565, %v3352
        %v4567 = vpop.permute.xlu0 %4566
        %4569 = vset.pattern.permute.xlu0 1
        %4570 = vperm.xlu0 %4569, %v3353
        %v4571 = vpop.permute.xlu0 %4570
        %4573 = vset.pattern.permute.xlu0 1
        %4574 = vperm.xlu0 %4573, %v3354
        %v4575 = vpop.permute.xlu0 %4574
        %4577 = vset.pattern.permute.xlu0 1
        %4578 = vperm.xlu0 %4577, %v3355
        %v4579 = vpop.permute.xlu0 %4578
        %4581 = vset.pattern.permute.xlu0 1
        %4582 = vperm.xlu0 %4581, %v3356
        %v4583 = vpop.permute.xlu0 %4582
        %4585 = vset.pattern.permute.xlu0 1
        %4586 = vperm.xlu0 %4585, %v3357
        %v4587 = vpop.permute.xlu0 %4586
        %4589 = vset.pattern.permute.xlu0 1
        %4590 = vperm.xlu0 %4589, %v3358
        %v4591 = vpop.permute.xlu0 %4590
        %4593 = vset.pattern.permute.xlu0 1
        %4594 = vperm.xlu0 %4593, %v3359
        %v4595 = vpop.permute.xlu0 %4594
        %4597 = vset.pattern.permute.xlu0 1
        %4598 = vperm.xlu0 %4597, %v3360
        %v4599 = vpop.permute.xlu0 %4598
        %4601 = vset.pattern.permute.xlu0 1
        %4602 = vperm.xlu0 %4601, %v3361
        %v4603 = vpop.permute.xlu0 %4602
        %4605 = vset.pattern.permute.xlu0 1
        %4606 = vperm.xlu0 %4605, %v3362
        %v4607 = vpop.permute.xlu0 %4606
        %4609 = vset.pattern.permute.xlu0 1
        %4610 = vperm.xlu0 %4609, %v3363
        %v4611 = vpop.permute.xlu0 %4610
        %4613 = vset.pattern.permute.xlu0 1
        %4614 = vperm.xlu0 %4613, %v3364
        %v4615 = vpop.permute.xlu0 %4614
        %4617 = vset.pattern.permute.xlu0 1
        %4618 = vperm.xlu0 %4617, %v3365
        %v4619 = vpop.permute.xlu0 %4618
        %4621 = vset.pattern.permute.xlu0 1
        %4622 = vperm.xlu0 %4621, %v3366
        %v4623 = vpop.permute.xlu0 %4622
        %4625 = vset.pattern.permute.xlu0 1
        %4626 = vperm.xlu0 %4625, %v3367
        %v4627 = vpop.permute.xlu0 %4626
        %4629 = vset.pattern.permute.xlu0 1
        %4630 = vperm.xlu0 %4629, %v3368
        %v4631 = vpop.permute.xlu0 %4630
        %4633 = vset.pattern.permute.xlu0 1
        %4634 = vperm.xlu0 %4633, %v3369
        %v4635 = vpop.permute.xlu0 %4634
        %4637 = vset.pattern.permute.xlu0 1
        %4638 = vperm.xlu0 %4637, %v3370
        %v4639 = vpop.permute.xlu0 %4638
        %4641 = vset.pattern.permute.xlu0 1
        %4642 = vperm.xlu0 %4641, %v3371
        %v4643 = vpop.permute.xlu0 %4642
        %4645 = vset.pattern.permute.xlu0 1
        %4646 = vperm.xlu0 %4645, %v3372
        %v4647 = vpop.permute.xlu0 %4646
        %4649 = vset.pattern.permute.xlu0 1
        %4650 = vperm.xlu0 %4649, %v3373
        %v4651 = vpop.permute.xlu0 %4650
        %4653 = vset.pattern.permute.xlu0 1
        %4654 = vperm.xlu0 %4653, %v3374
        %v4655 = vpop.permute.xlu0 %4654
        %4657 = vset.pattern.permute.xlu0 1
        %4658 = vperm.xlu0 %4657, %v3375
        %v4659 = vpop.permute.xlu0 %4658
        %4661 = vset.pattern.permute.xlu0 1
        %4662 = vperm.xlu0 %4661, %v3376
        %v4663 = vpop.permute.xlu0 %4662
        %4665 = vset.pattern.permute.xlu0 1
        %4666 = vperm.xlu0 %4665, %v3377
        %v4667 = vpop.permute.xlu0 %4666
        %4669 = vset.pattern.permute.xlu0 1
        %4670 = vperm.xlu0 %4669, %v3378
        %v4671 = vpop.permute.xlu0 %4670
        %4673 = vset.pattern.permute.xlu0 1
        %4674 = vperm.xlu0 %4673, %v3379
        %v4675 = vpop.permute.xlu0 %4674
        %4677 = vset.pattern.permute.xlu0 1
        %4678 = vperm.xlu0 %4677, %v3380
        %v4679 = vpop.permute.xlu0 %4678
        %4681 = vset.pattern.permute.xlu0 1
        %4682 = vperm.xlu0 %4681, %v3381
        %v4683 = vpop.permute.xlu0 %4682
        %4685 = vset.pattern.permute.xlu0 1
        %4686 = vperm.xlu0 %4685, %v3382
        %v4687 = vpop.permute.xlu0 %4686
        %4689 = vset.pattern.permute.xlu0 1
        %4690 = vperm.xlu0 %4689, %v3383
        %v4691 = vpop.permute.xlu0 %4690
        %4693 = vset.pattern.permute.xlu0 1
        %4694 = vperm.xlu0 %4693, %v3384
        %v4695 = vpop.permute.xlu0 %4694
        %4697 = vset.pattern.permute.xlu0 1
        %4698 = vperm.xlu0 %4697, %v3385
        %v4699 = vpop.permute.xlu0 %4698
        %4701 = vset.pattern.permute.xlu0 1
        %4702 = vperm.xlu0 %4701, %v3386
        %v4703 = vpop.permute.xlu0 %4702
        %4705 = vset.pattern.permute.xlu0 1
        %4706 = vperm.xlu0 %4705, %v3387
        %v4707 = vpop.permute.xlu0 %4706
        %4709 = vset.pattern.permute.xlu0 1
        %4710 = vperm.xlu0 %4709, %v3388
        %v4711 = vpop.permute.xlu0 %4710
        %4713 = vset.pattern.permute.xlu0 1
        %4714 = vperm.xlu0 %4713, %v3389
        %v4715 = vpop.permute.xlu0 %4714
        %4717 = vset.pattern.permute.xlu0 1
        %4718 = vperm.xlu0 %4717, %v3390
        %v4719 = vpop.permute.xlu0 %4718
        %4721 = vset.pattern.permute.xlu0 1
        %4722 = vperm.xlu0 %4721, %v3391
        %v4723 = vpop.permute.xlu0 %4722
        %4725 = vset.pattern.permute.xlu0 1
        %4726 = vperm.xlu0 %4725, %v3392
        %v4727 = vpop.permute.xlu0 %4726
        %4729 = vset.pattern.permute.xlu0 1
        %4730 = vperm.xlu0 %4729, %v3393
        %v4731 = vpop.permute.xlu0 %4730
        %4733 = vset.pattern.permute.xlu0 1
        %4734 = vperm.xlu0 %4733, %v3394
        %v4735 = vpop.permute.xlu0 %4734
        %4737 = vset.pattern.permute.xlu0 1
        %4738 = vperm.xlu0 %4737, %v3395
        %v4739 = vpop.permute.xlu0 %4738
        %4741 = vset.pattern.permute.xlu0 1
        %4742 = vperm.xlu0 %4741, %v3396
        %v4743 = vpop.permute.xlu0 %4742
        %4745 = vset.pattern.permute.xlu0 1
        %4746 = vperm.xlu0 %4745, %v3397
        %v4747 = vpop.permute.xlu0 %4746
        %4749 = vset.pattern.permute.xlu0 1
        %4750 = vperm.xlu0 %4749, %v3398
        %v4751 = vpop.permute.xlu0 %4750
        %4753 = vset.pattern.permute.xlu0 1
        %4754 = vperm.xlu0 %4753, %v3399
        %v4755 = vpop.permute.xlu0 %4754
        %4757 = vset.pattern.permute.xlu0 1
        %4758 = vperm.xlu0 %4757, %v3400
        %v4759 = vpop.permute.xlu0 %4758
        %4761 = vset.pattern.permute.xlu0 1
        %4762 = vperm.xlu0 %4761, %v3401
        %v4763 = vpop.permute.xlu0 %4762
        %4765 = vset.pattern.permute.xlu0 1
        %4766 = vperm.xlu0 %4765, %v3402
        %v4767 = vpop.permute.xlu0 %4766
        %4769 = vset.pattern.permute.xlu0 1
        %4770 = vperm.xlu0 %4769, %v3403
        %v4771 = vpop.permute.xlu0 %4770
        %4773 = vset.pattern.permute.xlu0 1
        %4774 = vperm.xlu0 %4773, %v3404
        %v4775 = vpop.permute.xlu0 %4774
        %4777 = vset.pattern.permute.xlu0 1
        %4778 = vperm.xlu0 %4777, %v3405
        %v4779 = vpop.permute.xlu0 %4778
        %4781 = vset.pattern.permute.xlu0 1
        %4782 = vperm.xlu0 %4781, %v3406
        %v4783 = vpop.permute.xlu0 %4782
        %4785 = vset.pattern.permute.xlu0 1
        %4786 = vperm.xlu0 %4785, %v3407
        %v4787 = vpop.permute.xlu0 %4786
        %4789 = vset.pattern.permute.xlu0 1
        %4790 = vperm.xlu0 %4789, %v3408
        %v4791 = vpop.permute.xlu0 %4790
        %4793 = vset.pattern.permute.xlu0 1
        %4794 = vperm.xlu0 %4793, %v3409
        %v4795 = vpop.permute.xlu0 %4794
        %4797 = vset.pattern.permute.xlu0 1
        %4798 = vperm.xlu0 %4797, %v3410
        %v4799 = vpop.permute.xlu0 %4798
        %4801 = vset.pattern.permute.xlu0 1
        %4802 = vperm.xlu0 %4801, %v3411
        %v4803 = vpop.permute.xlu0 %4802
        %4805 = vset.pattern.permute.xlu0 1
        %4806 = vperm.xlu0 %4805, %v3412
        %v4807 = vpop.permute.xlu0 %4806
        %4809 = vset.pattern.permute.xlu0 1
        %4810 = vperm.xlu0 %4809, %v3413
        %v4811 = vpop.permute.xlu0 %4810
        %4813 = vset.pattern.permute.xlu0 1
        %4814 = vperm.xlu0 %4813, %v3414
        %v4815 = vpop.permute.xlu0 %4814
        %4817 = vset.pattern.permute.xlu0 1
        %4818 = vperm.xlu0 %4817, %v3415
        %v4819 = vpop.permute.xlu0 %4818
        %4821 = vset.pattern.permute.xlu0 1
        %4822 = vperm.xlu0 %4821, %v3416
        %v4823 = vpop.permute.xlu0 %4822
        %4825 = vset.pattern.permute.xlu0 1
        %4826 = vperm.xlu0 %4825, %v3417
        %v4827 = vpop.permute.xlu0 %4826
        %4829 = vset.pattern.permute.xlu0 1
        %4830 = vperm.xlu0 %4829, %v3418
        %v4831 = vpop.permute.xlu0 %4830
        %4833 = vset.pattern.permute.xlu0 1
        %4834 = vperm.xlu0 %4833, %v3419
        %v4835 = vpop.permute.xlu0 %4834
        %4837 = vset.pattern.permute.xlu0 1
        %4838 = vperm.xlu0 %4837, %v3420
        %v4839 = vpop.permute.xlu0 %4838
        %4841 = vset.pattern.permute.xlu0 1
        %4842 = vperm.xlu0 %4841, %v3421
        %v4843 = vpop.permute.xlu0 %4842
        %4845 = vset.pattern.permute.xlu0 1
        %4846 = vperm.xlu0 %4845, %v3422
        %v4847 = vpop.permute.xlu0 %4846
        %4849 = vset.pattern.permute.xlu0 1
        %4850 = vperm.xlu0 %4849, %v3423
        %v4851 = vpop.permute.xlu0 %4850
        %4853 = vset.pattern.permute.xlu0 1
        %4854 = vperm.xlu0 %4853, %v3424
        %v4855 = vpop.permute.xlu0 %4854
        %4857 = vset.pattern.permute.xlu0 1
        %4858 = vperm.xlu0 %4857, %v3425
        %v4859 = vpop.permute.xlu0 %4858
        %4861 = vset.pattern.permute.xlu0 1
        %4862 = vperm.xlu0 %4861, %v3426
        %v4863 = vpop.permute.xlu0 %4862
        %4865 = vset.pattern.permute.xlu0 1
        %4866 = vperm.xlu0 %4865, %v3427
        %v4867 = vpop.permute.xlu0 %4866
        %4869 = vset.pattern.permute.xlu0 1
        %4870 = vperm.xlu0 %4869, %v3428
        %v4871 = vpop.permute.xlu0 %4870
        %4873 = vset.pattern.permute.xlu0 1
        %4874 = vperm.xlu0 %4873, %v3429
        %v4875 = vpop.permute.xlu0 %4874
        %4877 = vset.pattern.permute.xlu0 1
        %4878 = vperm.xlu0 %4877, %v3430
        %v4879 = vpop.permute.xlu0 %4878
        %4881 = vset.pattern.permute.xlu0 1
        %4882 = vperm.xlu0 %4881, %v3431
        %v4883 = vpop.permute.xlu0 %4882
        %4885 = vset.pattern.permute.xlu0 1
        %4886 = vperm.xlu0 %4885, %v3432
        %v4887 = vpop.permute.xlu0 %4886
        %4889 = vset.pattern.permute.xlu0 1
        %4890 = vperm.xlu0 %4889, %v3433
        %v4891 = vpop.permute.xlu0 %4890
        %4893 = vset.pattern.permute.xlu0 1
        %4894 = vperm.xlu0 %4893, %v3434
        %v4895 = vpop.permute.xlu0 %4894
        %4897 = vset.pattern.permute.xlu0 1
        %4898 = vperm.xlu0 %4897, %v3435
        %v4899 = vpop.permute.xlu0 %4898
        %4901 = vset.pattern.permute.xlu0 1
        %4902 = vperm.xlu0 %4901, %v3436
        %v4903 = vpop.permute.xlu0 %4902
        %4905 = vset.pattern.permute.xlu0 1
        %4906 = vperm.xlu0 %4905, %v3437
        %v4907 = vpop.permute.xlu0 %4906
        %4909 = vset.pattern.permute.xlu0 1
        %4910 = vperm.xlu0 %4909, %v3438
        %v4911 = vpop.permute.xlu0 %4910
        %4913 = vset.pattern.permute.xlu0 1
        %4914 = vperm.xlu0 %4913, %v3439
        %v4915 = vpop.permute.xlu0 %4914
        %4917 = vset.pattern.permute.xlu0 1
        %4918 = vperm.xlu0 %4917, %v3440
        %v4919 = vpop.permute.xlu0 %4918
        %4921 = vset.pattern.permute.xlu0 1
        %4922 = vperm.xlu0 %4921, %v3441
        %v4923 = vpop.permute.xlu0 %4922
        %4925 = vset.pattern.permute.xlu0 1
        %4926 = vperm.xlu0 %4925, %v3442
        %v4927 = vpop.permute.xlu0 %4926
        %4929 = vset.pattern.permute.xlu0 1
        %4930 = vperm.xlu0 %4929, %v3443
        %v4931 = vpop.permute.xlu0 %4930
        %4933 = vset.pattern.permute.xlu0 1
        %4934 = vperm.xlu0 %4933, %v3444
        %v4935 = vpop.permute.xlu0 %4934
        %4937 = vset.pattern.permute.xlu0 1
        %4938 = vperm.xlu0 %4937, %v3445
        %v4939 = vpop.permute.xlu0 %4938
        %4941 = vset.pattern.permute.xlu0 1
        %4942 = vperm.xlu0 %4941, %v3446
        %v4943 = vpop.permute.xlu0 %4942
        %4945 = vset.pattern.permute.xlu0 1
        %4946 = vperm.xlu0 %4945, %v3447
        %v4947 = vpop.permute.xlu0 %4946
        %4949 = vset.pattern.permute.xlu0 1
        %4950 = vperm.xlu0 %4949, %v3448
        %v4951 = vpop.permute.xlu0 %4950
        %4953 = vset.pattern.permute.xlu0 1
        %4954 = vperm.xlu0 %4953, %v3449
        %v4955 = vpop.permute.xlu0 %4954
        %4957 = vset.pattern.permute.xlu0 1
        %4958 = vperm.xlu0 %4957, %v3450
        %v4959 = vpop.permute.xlu0 %4958
        %4961 = vset.pattern.permute.xlu0 1
        %4962 = vperm.xlu0 %4961, %v3451
        %v4963 = vpop.permute.xlu0 %4962
        %4965 = vset.pattern.permute.xlu0 1
        %4966 = vperm.xlu0 %4965, %v3452
        %v4967 = vpop.permute.xlu0 %4966
        %4969 = vset.pattern.permute.xlu0 1
        %4970 = vperm.xlu0 %4969, %v3453
        %v4971 = vpop.permute.xlu0 %4970
        %4973 = vset.pattern.permute.xlu0 1
        %4974 = vperm.xlu0 %4973, %v3454
        %v4975 = vpop.permute.xlu0 %4974
        %4977 = vset.pattern.permute.xlu0 1
        %4978 = vperm.xlu0 %4977, %v3455
        %v4979 = vpop.permute.xlu0 %4978
        %4981 = vset.pattern.permute.xlu0 1
        %4982 = vperm.xlu0 %4981, %v3456
        %v4983 = vpop.permute.xlu0 %4982
        %4985 = vset.pattern.permute.xlu0 1
        %4986 = vperm.xlu0 %4985, %v3457
        %v4987 = vpop.permute.xlu0 %4986
        %4989 = vset.pattern.permute.xlu0 1
        %4990 = vperm.xlu0 %4989, %v3458
        %v4991 = vpop.permute.xlu0 %4990
        %4993 = vset.pattern.permute.xlu0 1
        %4994 = vperm.xlu0 %4993, %v3459
        %v4995 = vpop.permute.xlu0 %4994
        %4997 = vset.pattern.permute.xlu0 1
        %4998 = vperm.xlu0 %4997, %v3460
        %v4999 = vpop.permute.xlu0 %4998
        %5001 = vset.pattern.permute.xlu0 1
        %5002 = vperm.xlu0 %5001, %v3461
        %v5003 = vpop.permute.xlu0 %5002
        %5005 = vset.pattern.permute.xlu0 1
        %5006 = vperm.xlu0 %5005, %v3462
        %v5007 = vpop.permute.xlu0 %5006
        %5009 = vset.pattern.permute.xlu0 1
        %5010 = vperm.xlu0 %5009, %v3463
        %v5011 = vpop.permute.xlu0 %5010
        %5013 = vset.pattern.permute.xlu0 1
        %5014 = vperm.xlu0 %5013, %v3464
        %v5015 = vpop.permute.xlu0 %5014
        %5017 = vset.pattern.permute.xlu0 1
        %5018 = vperm.xlu0 %5017, %v3465
        %v5019 = vpop.permute.xlu0 %5018
        %5021 = vset.pattern.permute.xlu0 1
        %5022 = vperm.xlu0 %5021, %v3466
        %v5023 = vpop.permute.xlu0 %5022
        %5025 = vset.pattern.permute.xlu0 1
        %5026 = vperm.xlu0 %5025, %v3467
        %v5027 = vpop.permute.xlu0 %5026
        %5029 = vset.pattern.permute.xlu0 1
        %5030 = vperm.xlu0 %5029, %v3468
        %v5031 = vpop.permute.xlu0 %5030
        %5033 = vset.pattern.permute.xlu0 1
        %5034 = vperm.xlu0 %5033, %v3469
        %v5035 = vpop.permute.xlu0 %5034
        %5037 = vset.pattern.permute.xlu0 1
        %5038 = vperm.xlu0 %5037, %v3470
        %v5039 = vpop.permute.xlu0 %5038
        %5041 = vset.pattern.permute.xlu0 1
        %5042 = vperm.xlu0 %5041, %v3471
        %v5043 = vpop.permute.xlu0 %5042
        %5045 = vset.pattern.permute.xlu0 1
        %5046 = vperm.xlu0 %5045, %v3472
        %v5047 = vpop.permute.xlu0 %5046
        %5049 = vset.pattern.permute.xlu0 1
        %5050 = vperm.xlu0 %5049, %v3473
        %v5051 = vpop.permute.xlu0 %5050
        %5053 = vset.pattern.permute.xlu0 1
        %5054 = vperm.xlu0 %5053, %v3474
        %v5055 = vpop.permute.xlu0 %5054
        %5057 = vset.pattern.permute.xlu0 1
        %5058 = vperm.xlu0 %5057, %v3475
        %v5059 = vpop.permute.xlu0 %5058
        %5061 = vset.pattern.permute.xlu0 1
        %5062 = vperm.xlu0 %5061, %v3476
        %v5063 = vpop.permute.xlu0 %5062
        %5065 = vset.pattern.permute.xlu0 1
        %5066 = vperm.xlu0 %5065, %v3477
        %v5067 = vpop.permute.xlu0 %5066
        %5069 = vset.pattern.permute.xlu0 1
        %5070 = vperm.xlu0 %5069, %v3478
        %v5071 = vpop.permute.xlu0 %5070
        %5073 = vset.pattern.permute.xlu0 1
        %5074 = vperm.xlu0 %5073, %v3479
        %v5075 = vpop.permute.xlu0 %5074
        %5077 = vset.pattern.permute.xlu0 1
        %5078 = vperm.xlu0 %5077, %v3480
        %v5079 = vpop.permute.xlu0 %5078
        %5081 = vset.pattern.permute.xlu0 1
        %5082 = vperm.xlu0 %5081, %v3481
        %v5083 = vpop.permute.xlu0 %5082
        %5085 = vset.pattern.permute.xlu0 1
        %5086 = vperm.xlu0 %5085, %v3482
        %v5087 = vpop.permute.xlu0 %5086
        %5089 = vset.pattern.permute.xlu0 1
        %5090 = vperm.xlu0 %5089, %v3483
        %v5091 = vpop.permute.xlu0 %5090
        %5093 = vset.pattern.permute.xlu0 1
        %5094 = vperm.xlu0 %5093, %v3484
        %v5095 = vpop.permute.xlu0 %5094
        %5097 = vset.pattern.permute.xlu0 1
        %5098 = vperm.xlu0 %5097, %v3485
        %v5099 = vpop.permute.xlu0 %5098
        %5101 = vset.pattern.permute.xlu0 1
        %5102 = vperm.xlu0 %5101, %v3486
        %v5103 = vpop.permute.xlu0 %5102
        %5105 = vset.pattern.permute.xlu0 1
        %5106 = vperm.xlu0 %5105, %v3487
        %v5107 = vpop.permute.xlu0 %5106
        %5109 = vset.pattern.permute.xlu0 1
        %5110 = vperm.xlu0 %5109, %v3488
        %v5111 = vpop.permute.xlu0 %5110
        %5113 = vset.pattern.permute.xlu0 1
        %5114 = vperm.xlu0 %5113, %v3489
        %v5115 = vpop.permute.xlu0 %5114
        %5117 = vset.pattern.permute.xlu0 1
        %5118 = vperm.xlu0 %5117, %v3490
        %v5119 = vpop.permute.xlu0 %5118
        %5121 = vset.pattern.permute.xlu0 1
        %5122 = vperm.xlu0 %5121, %v3491
        %v5123 = vpop.permute.xlu0 %5122
        %5125 = vset.pattern.permute.xlu0 1
        %5126 = vperm.xlu0 %5125, %v3492
        %v5127 = vpop.permute.xlu0 %5126
        %5129 = vset.pattern.permute.xlu0 1
        %5130 = vperm.xlu0 %5129, %v3493
        %v5131 = vpop.permute.xlu0 %5130
        %5133 = vset.pattern.permute.xlu0 1
        %5134 = vperm.xlu0 %5133, %v3494
        %v5135 = vpop.permute.xlu0 %5134
        %5137 = vset.pattern.permute.xlu0 1
        %5138 = vperm.xlu0 %5137, %v3495
        %v5139 = vpop.permute.xlu0 %5138
        %5141 = vset.pattern.permute.xlu0 1
        %5142 = vperm.xlu0 %5141, %v3496
        %v5143 = vpop.permute.xlu0 %5142
        %5145 = vset.pattern.permute.xlu0 1
        %5146 = vperm.xlu0 %5145, %v3497
        %v5147 = vpop.permute.xlu0 %5146
        %5149 = vset.pattern.permute.xlu0 1
        %5150 = vperm.xlu0 %5149, %v3498
        %v5151 = vpop.permute.xlu0 %5150
        %5153 = vset.pattern.permute.xlu0 1
        %5154 = vperm.xlu0 %5153, %v3499
        %v5155 = vpop.permute.xlu0 %5154
        %5157 = vset.pattern.permute.xlu0 1
        %5158 = vperm.xlu0 %5157, %v3500
        %v5159 = vpop.permute.xlu0 %5158
        %5161 = vset.pattern.permute.xlu0 1
        %5162 = vperm.xlu0 %5161, %v3501
        %v5163 = vpop.permute.xlu0 %5162
        %5165 = vset.pattern.permute.xlu0 1
        %5166 = vperm.xlu0 %5165, %v3502
        %v5167 = vpop.permute.xlu0 %5166
        %5169 = vset.pattern.permute.xlu0 1
        %5170 = vperm.xlu0 %5169, %v3503
        %v5171 = vpop.permute.xlu0 %5170
        %5173 = vset.pattern.permute.xlu0 1
        %5174 = vperm.xlu0 %5173, %v3504
        %v5175 = vpop.permute.xlu0 %5174
        %5177 = vset.pattern.permute.xlu0 1
        %5178 = vperm.xlu0 %5177, %v3505
        %v5179 = vpop.permute.xlu0 %5178
        %5181 = vset.pattern.permute.xlu0 1
        %5182 = vperm.xlu0 %5181, %v3506
        %v5183 = vpop.permute.xlu0 %5182
        %5185 = vset.pattern.permute.xlu0 1
        %5186 = vperm.xlu0 %5185, %v3507
        %v5187 = vpop.permute.xlu0 %5186
        %5189 = vset.pattern.permute.xlu0 1
        %5190 = vperm.xlu0 %5189, %v3508
        %v5191 = vpop.permute.xlu0 %5190
        %5193 = vset.pattern.permute.xlu0 1
        %5194 = vperm.xlu0 %5193, %v3509
        %v5195 = vpop.permute.xlu0 %5194
        %5197 = vset.pattern.permute.xlu0 1
        %5198 = vperm.xlu0 %5197, %v3510
        %v5199 = vpop.permute.xlu0 %5198
        %5201 = vset.pattern.permute.xlu0 1
        %5202 = vperm.xlu0 %5201, %v3511
        %v5203 = vpop.permute.xlu0 %5202
        %5205 = vset.pattern.permute.xlu0 1
        %5206 = vperm.xlu0 %5205, %v3512
        %v5207 = vpop.permute.xlu0 %5206
        %5209 = vset.pattern.permute.xlu0 1
        %5210 = vperm.xlu0 %5209, %v3513
        %v5211 = vpop.permute.xlu0 %5210
        %5213 = vset.pattern.permute.xlu0 1
        %5214 = vperm.xlu0 %5213, %v3514
        %v5215 = vpop.permute.xlu0 %5214
        %5217 = vset.pattern.permute.xlu0 1
        %5218 = vperm.xlu0 %5217, %v3515
        %v5219 = vpop.permute.xlu0 %5218
        %5221 = vset.pattern.permute.xlu0 1
        %5222 = vperm.xlu0 %5221, %v3516
        %v5223 = vpop.permute.xlu0 %5222
        %5225 = vset.pattern.permute.xlu0 1
        %5226 = vperm.xlu0 %5225, %v3517
        %v5227 = vpop.permute.xlu0 %5226
        %5229 = vset.pattern.permute.xlu0 1
        %5230 = vperm.xlu0 %5229, %v3518
        %v5231 = vpop.permute.xlu0 %5230
        %5233 = vset.pattern.permute.xlu0 1
        %5234 = vperm.xlu0 %5233, %v3519
        %v5235 = vpop.permute.xlu0 %5234
        %5237 = vset.pattern.permute.xlu0 1
        %5238 = vperm.xlu0 %5237, %v3520
        %v5239 = vpop.permute.xlu0 %5238
        %v5241 = vmul.f32 %v1027, %v4555
        %v5242 = vmul.f32 %v1029, %v4559
        %v5243 = vmul.f32 %v1032, %v4563
        %v5244 = vmul.f32 %v1034, %v4567
        %v5245 = vmul.f32 %v1037, %v4571
        %v5246 = vmul.f32 %v1039, %v4575
        %v5247 = vmul.f32 %v1042, %v4579
        %v5248 = vmul.f32 %v1044, %v4583
        %v5249 = vmul.f32 %v1047, %v4587
        %v5250 = vmul.f32 %v1049, %v4591
        %v5251 = vmul.f32 %v1052, %v4595
        %v5252 = vmul.f32 %v1054, %v4599
        %v5253 = vmul.f32 %v1057, %v4603
        %v5254 = vmul.f32 %v1059, %v4607
        %v5255 = vmul.f32 %v1062, %v4611
        %v5256 = vmul.f32 %v1064, %v4615
        %v5257 = vmul.f32 %v1067, %v4619
        %v5258 = vmul.f32 %v1069, %v4623
        %v5259 = vmul.f32 %v1072, %v4627
        %v5260 = vmul.f32 %v1074, %v4631
        %v5261 = vmul.f32 %v1077, %v4635
        %v5262 = vmul.f32 %v1079, %v4639
        %v5263 = vmul.f32 %v1082, %v4643
        %v5264 = vmul.f32 %v1084, %v4647
        %v5265 = vmul.f32 %v1087, %v4651
        %v5266 = vmul.f32 %v1089, %v4655
        %v5267 = vmul.f32 %v1092, %v4659
        %v5268 = vmul.f32 %v1094, %v4663
        %v5269 = vmul.f32 %v1097, %v4667
        %v5270 = vmul.f32 %v1099, %v4671
        %v5271 = vmul.f32 %v1102, %v4675
        %v5272 = vmul.f32 %v1104, %v4679
        %v5273 = vmul.f32 %v1107, %v4683
        %v5274 = vmul.f32 %v1109, %v4687
        %v5275 = vmul.f32 %v1112, %v4691
        %v5276 = vmul.f32 %v1114, %v4695
        %v5277 = vmul.f32 %v1117, %v4699
        %v5278 = vmul.f32 %v1119, %v4703
        %v5279 = vmul.f32 %v1122, %v4707
        %v5280 = vmul.f32 %v1124, %v4711
        %v5281 = vmul.f32 %v1127, %v4715
        %v5282 = vmul.f32 %v1129, %v4719
        %v5283 = vmul.f32 %v1132, %v4723
        %v5284 = vmul.f32 %v1134, %v4727
        %v5285 = vmul.f32 %v1137, %v4731
        %v5286 = vmul.f32 %v1139, %v4735
        %v5287 = vmul.f32 %v1142, %v4739
        %v5288 = vmul.f32 %v1144, %v4743
        %v5289 = vmul.f32 %v1147, %v4747
        %v5290 = vmul.f32 %v1149, %v4751
        %v5291 = vmul.f32 %v1152, %v4755
        %v5292 = vmul.f32 %v1154, %v4759
        %v5293 = vmul.f32 %v1157, %v4763
        %v5294 = vmul.f32 %v1159, %v4767
        %v5295 = vmul.f32 %v1162, %v4771
        %v5296 = vmul.f32 %v1164, %v4775
        %v5297 = vmul.f32 %v1167, %v4779
        %v5298 = vmul.f32 %v1169, %v4783
        %v5299 = vmul.f32 %v1172, %v4787
        %v5300 = vmul.f32 %v1174, %v4791
        %v5301 = vmul.f32 %v1177, %v4795
        %v5302 = vmul.f32 %v1179, %v4799
        %v5303 = vmul.f32 %v1182, %v4803
        %v5304 = vmul.f32 %v1184, %v4807
        %v5305 = vmul.f32 %v1187, %v4811
        %v5306 = vmul.f32 %v1189, %v4815
        %v5307 = vmul.f32 %v1192, %v4819
        %v5308 = vmul.f32 %v1194, %v4823
        %v5309 = vmul.f32 %v1197, %v4827
        %v5310 = vmul.f32 %v1199, %v4831
        %v5311 = vmul.f32 %v1202, %v4835
        %v5312 = vmul.f32 %v1204, %v4839
        %v5313 = vmul.f32 %v1207, %v4843
        %v5314 = vmul.f32 %v1209, %v4847
        %v5315 = vmul.f32 %v1212, %v4851
        %v5316 = vmul.f32 %v1214, %v4855
        %v5317 = vmul.f32 %v1217, %v4859
        %v5318 = vmul.f32 %v1219, %v4863
        %v5319 = vmul.f32 %v1222, %v4867
        %v5320 = vmul.f32 %v1224, %v4871
        %v5321 = vmul.f32 %v1227, %v4875
        %v5322 = vmul.f32 %v1229, %v4879
        %v5323 = vmul.f32 %v1232, %v4883
        %v5324 = vmul.f32 %v1234, %v4887
        %v5325 = vmul.f32 %v1237, %v4891
        %v5326 = vmul.f32 %v1239, %v4895
        %v5327 = vmul.f32 %v1242, %v4899
        %v5328 = vmul.f32 %v1244, %v4903
        %v5329 = vmul.f32 %v1247, %v4907
        %v5330 = vmul.f32 %v1249, %v4911
        %v5331 = vmul.f32 %v1252, %v4915
        %v5332 = vmul.f32 %v1254, %v4919
        %v5333 = vmul.f32 %v1257, %v4923
        %v5334 = vmul.f32 %v1259, %v4927
        %v5335 = vmul.f32 %v1262, %v4931
        %v5336 = vmul.f32 %v1264, %v4935
        %v5337 = vmul.f32 %v1267, %v4939
        %v5338 = vmul.f32 %v1269, %v4943
        %v5339 = vmul.f32 %v1272, %v4947
        %v5340 = vmul.f32 %v1274, %v4951
        %v5341 = vmul.f32 %v1277, %v4955
        %v5342 = vmul.f32 %v1279, %v4959
        %v5343 = vmul.f32 %v1282, %v4963
        %v5344 = vmul.f32 %v1284, %v4967
        %v5345 = vmul.f32 %v1287, %v4971
        %v5346 = vmul.f32 %v1289, %v4975
        %v5347 = vmul.f32 %v1292, %v4979
        %v5348 = vmul.f32 %v1294, %v4983
        %v5349 = vmul.f32 %v1297, %v4987
        %v5350 = vmul.f32 %v1299, %v4991
        %v5351 = vmul.f32 %v1302, %v4995
        %v5352 = vmul.f32 %v1304, %v4999
        %v5353 = vmul.f32 %v1307, %v5003
        %v5354 = vmul.f32 %v1309, %v5007
        %v5355 = vmul.f32 %v1312, %v5011
        %v5356 = vmul.f32 %v1314, %v5015
        %v5357 = vmul.f32 %v1317, %v5019
        %v5358 = vmul.f32 %v1319, %v5023
        %v5359 = vmul.f32 %v1322, %v5027
        %v5360 = vmul.f32 %v1324, %v5031
        %v5361 = vmul.f32 %v1327, %v5035
        %v5362 = vmul.f32 %v1329, %v5039
        %v5363 = vmul.f32 %v1332, %v5043
        %v5364 = vmul.f32 %v1334, %v5047
        %v5365 = vmul.f32 %v1337, %v5051
        %v5366 = vmul.f32 %v1339, %v5055
        %v5367 = vmul.f32 %v1342, %v5059
        %v5368 = vmul.f32 %v1344, %v5063
        %v5369 = vmul.f32 %v1347, %v5067
        %v5370 = vmul.f32 %v1349, %v5071
        %v5371 = vmul.f32 %v1352, %v5075
        %v5372 = vmul.f32 %v1354, %v5079
        %v5373 = vmul.f32 %v1357, %v5083
        %v5374 = vmul.f32 %v1359, %v5087
        %v5375 = vmul.f32 %v1362, %v5091
        %v5376 = vmul.f32 %v1364, %v5095
        %v5377 = vmul.f32 %v1367, %v5099
        %v5378 = vmul.f32 %v1369, %v5103
        %v5379 = vmul.f32 %v1372, %v5107
        %v5380 = vmul.f32 %v1374, %v5111
        %v5381 = vmul.f32 %v1377, %v5115
        %v5382 = vmul.f32 %v1379, %v5119
        %v5383 = vmul.f32 %v1382, %v5123
        %v5384 = vmul.f32 %v1384, %v5127
        %v5385 = vmul.f32 %v1387, %v5131
        %v5386 = vmul.f32 %v1389, %v5135
        %v5387 = vmul.f32 %v1392, %v5139
        %v5388 = vmul.f32 %v1394, %v5143
        %v5389 = vmul.f32 %v1397, %v5147
        %v5390 = vmul.f32 %v1399, %v5151
        %v5391 = vmul.f32 %v1402, %v5155
        %v5392 = vmul.f32 %v1404, %v5159
        %v5393 = vmul.f32 %v1407, %v5163
        %v5394 = vmul.f32 %v1409, %v5167
        %v5395 = vmul.f32 %v1412, %v5171
        %v5396 = vmul.f32 %v1414, %v5175
        %v5397 = vmul.f32 %v1417, %v5179
        %v5398 = vmul.f32 %v1419, %v5183
        %v5399 = vmul.f32 %v1422, %v5187
        %v5400 = vmul.f32 %v1424, %v5191
        %v5401 = vmul.f32 %v1427, %v5195
        %v5402 = vmul.f32 %v1429, %v5199
        %v5403 = vmul.f32 %v1432, %v5203
        %v5404 = vmul.f32 %v1434, %v5207
        %v5405 = vmul.f32 %v1437, %v5211
        %v5406 = vmul.f32 %v1439, %v5215
        %v5407 = vmul.f32 %v1442, %v5219
        %v5408 = vmul.f32 %v1444, %v5223
        %v5409 = vmul.f32 %v1447, %v5227
        %v5410 = vmul.f32 %v1449, %v5231
        %v5411 = vmul.f32 %v1452, %v5235
        %v5412 = vmul.f32 %v1454, %v5239
        %5585 = vrot.lane.b32.xlu0 %v5241, 120
        %v5586 = vpop.permute.xlu0 %5585
        %5587 = vrot.lane.b32.xlu0 %v5242, 120
        %v5588 = vpop.permute.xlu0 %5587
        %5589 = vrot.lane.b32.xlu0 %v5243, 120
        %v5590 = vpop.permute.xlu0 %5589
        %5591 = vrot.lane.b32.xlu0 %v5244, 120
        %v5592 = vpop.permute.xlu0 %5591
        %5593 = vrot.lane.b32.xlu0 %v5245, 120
        %v5594 = vpop.permute.xlu0 %5593
        %5595 = vrot.lane.b32.xlu0 %v5246, 120
        %v5596 = vpop.permute.xlu0 %5595
        %5597 = vrot.lane.b32.xlu0 %v5247, 120
        %v5598 = vpop.permute.xlu0 %5597
        %5599 = vrot.lane.b32.xlu0 %v5248, 120
        %v5600 = vpop.permute.xlu0 %5599
        %5601 = vrot.lane.b32.xlu0 %v5249, 120
        %v5602 = vpop.permute.xlu0 %5601
        %5603 = vrot.lane.b32.xlu0 %v5250, 120
        %v5604 = vpop.permute.xlu0 %5603
        %5605 = vrot.lane.b32.xlu0 %v5251, 120
        %v5606 = vpop.permute.xlu0 %5605
        %5607 = vrot.lane.b32.xlu0 %v5252, 120
        %v5608 = vpop.permute.xlu0 %5607
        %5609 = vrot.lane.b32.xlu0 %v5253, 120
        %v5610 = vpop.permute.xlu0 %5609
        %5611 = vrot.lane.b32.xlu0 %v5254, 120
        %v5612 = vpop.permute.xlu0 %5611
        %5613 = vrot.lane.b32.xlu0 %v5255, 120
        %v5614 = vpop.permute.xlu0 %5613
        %5615 = vrot.lane.b32.xlu0 %v5256, 120
        %v5616 = vpop.permute.xlu0 %5615
        %5617 = vrot.lane.b32.xlu0 %v5257, 120
        %v5618 = vpop.permute.xlu0 %5617
        %5619 = vrot.lane.b32.xlu0 %v5258, 120
        %v5620 = vpop.permute.xlu0 %5619
        %5621 = vrot.lane.b32.xlu0 %v5259, 120
        %v5622 = vpop.permute.xlu0 %5621
        %5623 = vrot.lane.b32.xlu0 %v5260, 120
        %v5624 = vpop.permute.xlu0 %5623
        %5625 = vrot.lane.b32.xlu0 %v5261, 120
        %v5626 = vpop.permute.xlu0 %5625
        %5627 = vrot.lane.b32.xlu0 %v5262, 120
        %v5628 = vpop.permute.xlu0 %5627
        %5629 = vrot.lane.b32.xlu0 %v5263, 120
        %v5630 = vpop.permute.xlu0 %5629
        %5631 = vrot.lane.b32.xlu0 %v5264, 120
        %v5632 = vpop.permute.xlu0 %5631
        %5633 = vrot.lane.b32.xlu0 %v5265, 120
        %v5634 = vpop.permute.xlu0 %5633
        %5635 = vrot.lane.b32.xlu0 %v5266, 120
        %v5636 = vpop.permute.xlu0 %5635
        %5637 = vrot.lane.b32.xlu0 %v5267, 120
        %v5638 = vpop.permute.xlu0 %5637
        %5639 = vrot.lane.b32.xlu0 %v5268, 120
        %v5640 = vpop.permute.xlu0 %5639
        %5641 = vrot.lane.b32.xlu0 %v5269, 120
        %v5642 = vpop.permute.xlu0 %5641
        %5643 = vrot.lane.b32.xlu0 %v5270, 120
        %v5644 = vpop.permute.xlu0 %5643
        %5645 = vrot.lane.b32.xlu0 %v5271, 120
        %v5646 = vpop.permute.xlu0 %5645
        %5647 = vrot.lane.b32.xlu0 %v5272, 120
        %v5648 = vpop.permute.xlu0 %5647
        %5649 = vrot.lane.b32.xlu0 %v5273, 120
        %v5650 = vpop.permute.xlu0 %5649
        %5651 = vrot.lane.b32.xlu0 %v5274, 120
        %v5652 = vpop.permute.xlu0 %5651
        %5653 = vrot.lane.b32.xlu0 %v5275, 120
        %v5654 = vpop.permute.xlu0 %5653
        %5655 = vrot.lane.b32.xlu0 %v5276, 120
        %v5656 = vpop.permute.xlu0 %5655
        %5657 = vrot.lane.b32.xlu0 %v5277, 120
        %v5658 = vpop.permute.xlu0 %5657
        %5659 = vrot.lane.b32.xlu0 %v5278, 120
        %v5660 = vpop.permute.xlu0 %5659
        %5661 = vrot.lane.b32.xlu0 %v5279, 120
        %v5662 = vpop.permute.xlu0 %5661
        %5663 = vrot.lane.b32.xlu0 %v5280, 120
        %v5664 = vpop.permute.xlu0 %5663
        %5665 = vrot.lane.b32.xlu0 %v5281, 120
        %v5666 = vpop.permute.xlu0 %5665
        %5667 = vrot.lane.b32.xlu0 %v5282, 120
        %v5668 = vpop.permute.xlu0 %5667
        %5669 = vrot.lane.b32.xlu0 %v5283, 120
        %v5670 = vpop.permute.xlu0 %5669
        %5671 = vrot.lane.b32.xlu0 %v5284, 120
        %v5672 = vpop.permute.xlu0 %5671
        %5673 = vrot.lane.b32.xlu0 %v5285, 120
        %v5674 = vpop.permute.xlu0 %5673
        %5675 = vrot.lane.b32.xlu0 %v5286, 120
        %v5676 = vpop.permute.xlu0 %5675
        %5677 = vrot.lane.b32.xlu0 %v5287, 120
        %v5678 = vpop.permute.xlu0 %5677
        %5679 = vrot.lane.b32.xlu0 %v5288, 120
        %v5680 = vpop.permute.xlu0 %5679
        %5681 = vrot.lane.b32.xlu0 %v5289, 120
        %v5682 = vpop.permute.xlu0 %5681
        %5683 = vrot.lane.b32.xlu0 %v5290, 120
        %v5684 = vpop.permute.xlu0 %5683
        %5685 = vrot.lane.b32.xlu0 %v5291, 120
        %v5686 = vpop.permute.xlu0 %5685
        %5687 = vrot.lane.b32.xlu0 %v5292, 120
        %v5688 = vpop.permute.xlu0 %5687
        %5689 = vrot.lane.b32.xlu0 %v5293, 120
        %v5690 = vpop.permute.xlu0 %5689
        %5691 = vrot.lane.b32.xlu0 %v5294, 120
        %v5692 = vpop.permute.xlu0 %5691
        %5693 = vrot.lane.b32.xlu0 %v5295, 120
        %v5694 = vpop.permute.xlu0 %5693
        %5695 = vrot.lane.b32.xlu0 %v5296, 120
        %v5696 = vpop.permute.xlu0 %5695
        %5697 = vrot.lane.b32.xlu0 %v5297, 120
        %v5698 = vpop.permute.xlu0 %5697
        %5699 = vrot.lane.b32.xlu0 %v5298, 120
        %v5700 = vpop.permute.xlu0 %5699
        %5701 = vrot.lane.b32.xlu0 %v5299, 120
        %v5702 = vpop.permute.xlu0 %5701
        %5703 = vrot.lane.b32.xlu0 %v5300, 120
        %v5704 = vpop.permute.xlu0 %5703
        %5705 = vrot.lane.b32.xlu0 %v5301, 120
        %v5706 = vpop.permute.xlu0 %5705
        %5707 = vrot.lane.b32.xlu0 %v5302, 120
        %v5708 = vpop.permute.xlu0 %5707
        %5709 = vrot.lane.b32.xlu0 %v5303, 120
        %v5710 = vpop.permute.xlu0 %5709
        %5711 = vrot.lane.b32.xlu0 %v5304, 120
        %v5712 = vpop.permute.xlu0 %5711
        %5713 = vrot.lane.b32.xlu0 %v5305, 120
        %v5714 = vpop.permute.xlu0 %5713
        %5715 = vrot.lane.b32.xlu0 %v5306, 120
        %v5716 = vpop.permute.xlu0 %5715
        %5717 = vrot.lane.b32.xlu0 %v5307, 120
        %v5718 = vpop.permute.xlu0 %5717
        %5719 = vrot.lane.b32.xlu0 %v5308, 120
        %v5720 = vpop.permute.xlu0 %5719
        %5721 = vrot.lane.b32.xlu0 %v5309, 120
        %v5722 = vpop.permute.xlu0 %5721
        %5723 = vrot.lane.b32.xlu0 %v5310, 120
        %v5724 = vpop.permute.xlu0 %5723
        %5725 = vrot.lane.b32.xlu0 %v5311, 120
        %v5726 = vpop.permute.xlu0 %5725
        %5727 = vrot.lane.b32.xlu0 %v5312, 120
        %v5728 = vpop.permute.xlu0 %5727
        %5729 = vrot.lane.b32.xlu0 %v5313, 120
        %v5730 = vpop.permute.xlu0 %5729
        %5731 = vrot.lane.b32.xlu0 %v5314, 120
        %v5732 = vpop.permute.xlu0 %5731
        %5733 = vrot.lane.b32.xlu0 %v5315, 120
        %v5734 = vpop.permute.xlu0 %5733
        %5735 = vrot.lane.b32.xlu0 %v5316, 120
        %v5736 = vpop.permute.xlu0 %5735
        %5737 = vrot.lane.b32.xlu0 %v5317, 120
        %v5738 = vpop.permute.xlu0 %5737
        %5739 = vrot.lane.b32.xlu0 %v5318, 120
        %v5740 = vpop.permute.xlu0 %5739
        %5741 = vrot.lane.b32.xlu0 %v5319, 120
        %v5742 = vpop.permute.xlu0 %5741
        %5743 = vrot.lane.b32.xlu0 %v5320, 120
        %v5744 = vpop.permute.xlu0 %5743
        %5745 = vrot.lane.b32.xlu0 %v5321, 120
        %v5746 = vpop.permute.xlu0 %5745
        %5747 = vrot.lane.b32.xlu0 %v5322, 120
        %v5748 = vpop.permute.xlu0 %5747
        %5749 = vrot.lane.b32.xlu0 %v5323, 120
        %v5750 = vpop.permute.xlu0 %5749
        %5751 = vrot.lane.b32.xlu0 %v5324, 120
        %v5752 = vpop.permute.xlu0 %5751
        %5753 = vrot.lane.b32.xlu0 %v5325, 120
        %v5754 = vpop.permute.xlu0 %5753
        %5755 = vrot.lane.b32.xlu0 %v5326, 120
        %v5756 = vpop.permute.xlu0 %5755
        %5757 = vrot.lane.b32.xlu0 %v5327, 120
        %v5758 = vpop.permute.xlu0 %5757
        %5759 = vrot.lane.b32.xlu0 %v5328, 120
        %v5760 = vpop.permute.xlu0 %5759
        %5761 = vrot.lane.b32.xlu0 %v5329, 120
        %v5762 = vpop.permute.xlu0 %5761
        %5763 = vrot.lane.b32.xlu0 %v5330, 120
        %v5764 = vpop.permute.xlu0 %5763
        %5765 = vrot.lane.b32.xlu0 %v5331, 120
        %v5766 = vpop.permute.xlu0 %5765
        %5767 = vrot.lane.b32.xlu0 %v5332, 120
        %v5768 = vpop.permute.xlu0 %5767
        %5769 = vrot.lane.b32.xlu0 %v5333, 120
        %v5770 = vpop.permute.xlu0 %5769
        %5771 = vrot.lane.b32.xlu0 %v5334, 120
        %v5772 = vpop.permute.xlu0 %5771
        %5773 = vrot.lane.b32.xlu0 %v5335, 120
        %v5774 = vpop.permute.xlu0 %5773
        %5775 = vrot.lane.b32.xlu0 %v5336, 120
        %v5776 = vpop.permute.xlu0 %5775
        %5777 = vrot.lane.b32.xlu0 %v5337, 120
        %v5778 = vpop.permute.xlu0 %5777
        %5779 = vrot.lane.b32.xlu0 %v5338, 120
        %v5780 = vpop.permute.xlu0 %5779
        %5781 = vrot.lane.b32.xlu0 %v5339, 120
        %v5782 = vpop.permute.xlu0 %5781
        %5783 = vrot.lane.b32.xlu0 %v5340, 120
        %v5784 = vpop.permute.xlu0 %5783
        %5785 = vrot.lane.b32.xlu0 %v5341, 120
        %v5786 = vpop.permute.xlu0 %5785
        %5787 = vrot.lane.b32.xlu0 %v5342, 120
        %v5788 = vpop.permute.xlu0 %5787
        %5789 = vrot.lane.b32.xlu0 %v5343, 120
        %v5790 = vpop.permute.xlu0 %5789
        %5791 = vrot.lane.b32.xlu0 %v5344, 120
        %v5792 = vpop.permute.xlu0 %5791
        %5793 = vrot.lane.b32.xlu0 %v5345, 120
        %v5794 = vpop.permute.xlu0 %5793
        %5795 = vrot.lane.b32.xlu0 %v5346, 120
        %v5796 = vpop.permute.xlu0 %5795
        %5797 = vrot.lane.b32.xlu0 %v5347, 120
        %v5798 = vpop.permute.xlu0 %5797
        %5799 = vrot.lane.b32.xlu0 %v5348, 120
        %v5800 = vpop.permute.xlu0 %5799
        %5801 = vrot.lane.b32.xlu0 %v5349, 120
        %v5802 = vpop.permute.xlu0 %5801
        %5803 = vrot.lane.b32.xlu0 %v5350, 120
        %v5804 = vpop.permute.xlu0 %5803
        %5805 = vrot.lane.b32.xlu0 %v5351, 120
        %v5806 = vpop.permute.xlu0 %5805
        %5807 = vrot.lane.b32.xlu0 %v5352, 120
        %v5808 = vpop.permute.xlu0 %5807
        %5809 = vrot.lane.b32.xlu0 %v5353, 120
        %v5810 = vpop.permute.xlu0 %5809
        %5811 = vrot.lane.b32.xlu0 %v5354, 120
        %v5812 = vpop.permute.xlu0 %5811
        %5813 = vrot.lane.b32.xlu0 %v5355, 120
        %v5814 = vpop.permute.xlu0 %5813
        %5815 = vrot.lane.b32.xlu0 %v5356, 120
        %v5816 = vpop.permute.xlu0 %5815
        %5817 = vrot.lane.b32.xlu0 %v5357, 120
        %v5818 = vpop.permute.xlu0 %5817
        %5819 = vrot.lane.b32.xlu0 %v5358, 120
        %v5820 = vpop.permute.xlu0 %5819
        %5821 = vrot.lane.b32.xlu0 %v5359, 120
        %v5822 = vpop.permute.xlu0 %5821
        %5823 = vrot.lane.b32.xlu0 %v5360, 120
        %v5824 = vpop.permute.xlu0 %5823
        %5825 = vrot.lane.b32.xlu0 %v5361, 120
        %v5826 = vpop.permute.xlu0 %5825
        %5827 = vrot.lane.b32.xlu0 %v5362, 120
        %v5828 = vpop.permute.xlu0 %5827
        %5829 = vrot.lane.b32.xlu0 %v5363, 120
        %v5830 = vpop.permute.xlu0 %5829
        %5831 = vrot.lane.b32.xlu0 %v5364, 120
        %v5832 = vpop.permute.xlu0 %5831
        %5833 = vrot.lane.b32.xlu0 %v5365, 120
        %v5834 = vpop.permute.xlu0 %5833
        %5835 = vrot.lane.b32.xlu0 %v5366, 120
        %v5836 = vpop.permute.xlu0 %5835
        %5837 = vrot.lane.b32.xlu0 %v5367, 120
        %v5838 = vpop.permute.xlu0 %5837
        %5839 = vrot.lane.b32.xlu0 %v5368, 120
        %v5840 = vpop.permute.xlu0 %5839
        %5841 = vrot.lane.b32.xlu0 %v5369, 120
        %v5842 = vpop.permute.xlu0 %5841
        %5843 = vrot.lane.b32.xlu0 %v5370, 120
        %v5844 = vpop.permute.xlu0 %5843
        %5845 = vrot.lane.b32.xlu0 %v5371, 120
        %v5846 = vpop.permute.xlu0 %5845
        %5847 = vrot.lane.b32.xlu0 %v5372, 120
        %v5848 = vpop.permute.xlu0 %5847
        %5849 = vrot.lane.b32.xlu0 %v5373, 120
        %v5850 = vpop.permute.xlu0 %5849
        %5851 = vrot.lane.b32.xlu0 %v5374, 120
        %v5852 = vpop.permute.xlu0 %5851
        %5853 = vrot.lane.b32.xlu0 %v5375, 120
        %v5854 = vpop.permute.xlu0 %5853
        %5855 = vrot.lane.b32.xlu0 %v5376, 120
        %v5856 = vpop.permute.xlu0 %5855
        %5857 = vrot.lane.b32.xlu0 %v5377, 120
        %v5858 = vpop.permute.xlu0 %5857
        %5859 = vrot.lane.b32.xlu0 %v5378, 120
        %v5860 = vpop.permute.xlu0 %5859
        %5861 = vrot.lane.b32.xlu0 %v5379, 120
        %v5862 = vpop.permute.xlu0 %5861
        %5863 = vrot.lane.b32.xlu0 %v5380, 120
        %v5864 = vpop.permute.xlu0 %5863
        %5865 = vrot.lane.b32.xlu0 %v5381, 120
        %v5866 = vpop.permute.xlu0 %5865
        %5867 = vrot.lane.b32.xlu0 %v5382, 120
        %v5868 = vpop.permute.xlu0 %5867
        %5869 = vrot.lane.b32.xlu0 %v5383, 120
        %v5870 = vpop.permute.xlu0 %5869
        %5871 = vrot.lane.b32.xlu0 %v5384, 120
        %v5872 = vpop.permute.xlu0 %5871
        %5873 = vrot.lane.b32.xlu0 %v5385, 120
        %v5874 = vpop.permute.xlu0 %5873
        %5875 = vrot.lane.b32.xlu0 %v5386, 120
        %v5876 = vpop.permute.xlu0 %5875
        %5877 = vrot.lane.b32.xlu0 %v5387, 120
        %v5878 = vpop.permute.xlu0 %5877
        %5879 = vrot.lane.b32.xlu0 %v5388, 120
        %v5880 = vpop.permute.xlu0 %5879
        %5881 = vrot.lane.b32.xlu0 %v5389, 120
        %v5882 = vpop.permute.xlu0 %5881
        %5883 = vrot.lane.b32.xlu0 %v5390, 120
        %v5884 = vpop.permute.xlu0 %5883
        %5885 = vrot.lane.b32.xlu0 %v5391, 120
        %v5886 = vpop.permute.xlu0 %5885
        %5887 = vrot.lane.b32.xlu0 %v5392, 120
        %v5888 = vpop.permute.xlu0 %5887
        %5889 = vrot.lane.b32.xlu0 %v5393, 120
        %v5890 = vpop.permute.xlu0 %5889
        %5891 = vrot.lane.b32.xlu0 %v5394, 120
        %v5892 = vpop.permute.xlu0 %5891
        %5893 = vrot.lane.b32.xlu0 %v5395, 120
        %v5894 = vpop.permute.xlu0 %5893
        %5895 = vrot.lane.b32.xlu0 %v5396, 120
        %v5896 = vpop.permute.xlu0 %5895
        %5897 = vrot.lane.b32.xlu0 %v5397, 120
        %v5898 = vpop.permute.xlu0 %5897
        %5899 = vrot.lane.b32.xlu0 %v5398, 120
        %v5900 = vpop.permute.xlu0 %5899
        %5901 = vrot.lane.b32.xlu0 %v5399, 120
        %v5902 = vpop.permute.xlu0 %5901
        %5903 = vrot.lane.b32.xlu0 %v5400, 120
        %v5904 = vpop.permute.xlu0 %5903
        %5905 = vrot.lane.b32.xlu0 %v5401, 120
        %v5906 = vpop.permute.xlu0 %5905
        %5907 = vrot.lane.b32.xlu0 %v5402, 120
        %v5908 = vpop.permute.xlu0 %5907
        %5909 = vrot.lane.b32.xlu0 %v5403, 120
        %v5910 = vpop.permute.xlu0 %5909
        %5911 = vrot.lane.b32.xlu0 %v5404, 120
        %v5912 = vpop.permute.xlu0 %5911
        %5913 = vrot.lane.b32.xlu0 %v5405, 120
        %v5914 = vpop.permute.xlu0 %5913
        %5915 = vrot.lane.b32.xlu0 %v5406, 120
        %v5916 = vpop.permute.xlu0 %5915
        %5917 = vrot.lane.b32.xlu0 %v5407, 120
        %v5918 = vpop.permute.xlu0 %5917
        %5919 = vrot.lane.b32.xlu0 %v5408, 120
        %v5920 = vpop.permute.xlu0 %5919
        %5921 = vrot.lane.b32.xlu0 %v5409, 120
        %v5922 = vpop.permute.xlu0 %5921
        %5923 = vrot.lane.b32.xlu0 %v5410, 120
        %v5924 = vpop.permute.xlu0 %5923
        %5925 = vrot.lane.b32.xlu0 %v5411, 120
        %v5926 = vpop.permute.xlu0 %5925
        %5927 = vrot.lane.b32.xlu0 %v5412, 120
        %v5928 = vpop.permute.xlu0 %5927
        %v6101 = vadd.f32 %v4381, %v5586
        %v6102 = vadd.f32 %v4382, %v5588
        %v6103 = vadd.f32 %v4383, %v5590
        %v6104 = vadd.f32 %v4384, %v5592
        %v6105 = vadd.f32 %v4385, %v5594
        %v6106 = vadd.f32 %v4386, %v5596
        %v6107 = vadd.f32 %v4387, %v5598
        %v6108 = vadd.f32 %v4388, %v5600
        %v6109 = vadd.f32 %v4389, %v5602
        %v6110 = vadd.f32 %v4390, %v5604
        %v6111 = vadd.f32 %v4391, %v5606
        %v6112 = vadd.f32 %v4392, %v5608
        %v6113 = vadd.f32 %v4393, %v5610
        %v6114 = vadd.f32 %v4394, %v5612
        %v6115 = vadd.f32 %v4395, %v5614
        %v6116 = vadd.f32 %v4396, %v5616
        %v6117 = vadd.f32 %v4397, %v5618
        %v6118 = vadd.f32 %v4398, %v5620
        %v6119 = vadd.f32 %v4399, %v5622
        %v6120 = vadd.f32 %v4400, %v5624
        %v6121 = vadd.f32 %v4401, %v5626
        %v6122 = vadd.f32 %v4402, %v5628
        %v6123 = vadd.f32 %v4403, %v5630
        %v6124 = vadd.f32 %v4404, %v5632
        %v6125 = vadd.f32 %v4405, %v5634
        %v6126 = vadd.f32 %v4406, %v5636
        %v6127 = vadd.f32 %v4407, %v5638
        %v6128 = vadd.f32 %v4408, %v5640
        %v6129 = vadd.f32 %v4409, %v5642
        %v6130 = vadd.f32 %v4410, %v5644
        %v6131 = vadd.f32 %v4411, %v5646
        %v6132 = vadd.f32 %v4412, %v5648
        %v6133 = vadd.f32 %v4413, %v5650
        %v6134 = vadd.f32 %v4414, %v5652
        %v6135 = vadd.f32 %v4415, %v5654
        %v6136 = vadd.f32 %v4416, %v5656
        %v6137 = vadd.f32 %v4417, %v5658
        %v6138 = vadd.f32 %v4418, %v5660
        %v6139 = vadd.f32 %v4419, %v5662
        %v6140 = vadd.f32 %v4420, %v5664
        %v6141 = vadd.f32 %v4421, %v5666
        %v6142 = vadd.f32 %v4422, %v5668
        %v6143 = vadd.f32 %v4423, %v5670
        %v6144 = vadd.f32 %v4424, %v5672
        %v6145 = vadd.f32 %v4425, %v5674
        %v6146 = vadd.f32 %v4426, %v5676
        %v6147 = vadd.f32 %v4427, %v5678
        %v6148 = vadd.f32 %v4428, %v5680
        %v6149 = vadd.f32 %v4429, %v5682
        %v6150 = vadd.f32 %v4430, %v5684
        %v6151 = vadd.f32 %v4431, %v5686
        %v6152 = vadd.f32 %v4432, %v5688
        %v6153 = vadd.f32 %v4433, %v5690
        %v6154 = vadd.f32 %v4434, %v5692
        %v6155 = vadd.f32 %v4435, %v5694
        %v6156 = vadd.f32 %v4436, %v5696
        %v6157 = vadd.f32 %v4437, %v5698
        %v6158 = vadd.f32 %v4438, %v5700
        %v6159 = vadd.f32 %v4439, %v5702
        %v6160 = vadd.f32 %v4440, %v5704
        %v6161 = vadd.f32 %v4441, %v5706
        %v6162 = vadd.f32 %v4442, %v5708
        %v6163 = vadd.f32 %v4443, %v5710
        %v6164 = vadd.f32 %v4444, %v5712
        %v6165 = vadd.f32 %v4445, %v5714
        %v6166 = vadd.f32 %v4446, %v5716
        %v6167 = vadd.f32 %v4447, %v5718
        %v6168 = vadd.f32 %v4448, %v5720
        %v6169 = vadd.f32 %v4449, %v5722
        %v6170 = vadd.f32 %v4450, %v5724
        %v6171 = vadd.f32 %v4451, %v5726
        %v6172 = vadd.f32 %v4452, %v5728
        %v6173 = vadd.f32 %v4453, %v5730
        %v6174 = vadd.f32 %v4454, %v5732
        %v6175 = vadd.f32 %v4455, %v5734
        %v6176 = vadd.f32 %v4456, %v5736
        %v6177 = vadd.f32 %v4457, %v5738
        %v6178 = vadd.f32 %v4458, %v5740
        %v6179 = vadd.f32 %v4459, %v5742
        %v6180 = vadd.f32 %v4460, %v5744
        %v6181 = vadd.f32 %v4461, %v5746
        %v6182 = vadd.f32 %v4462, %v5748
        %v6183 = vadd.f32 %v4463, %v5750
        %v6184 = vadd.f32 %v4464, %v5752
        %v6185 = vadd.f32 %v4465, %v5754
        %v6186 = vadd.f32 %v4466, %v5756
        %v6187 = vadd.f32 %v4467, %v5758
        %v6188 = vadd.f32 %v4468, %v5760
        %v6189 = vadd.f32 %v4469, %v5762
        %v6190 = vadd.f32 %v4470, %v5764
        %v6191 = vadd.f32 %v4471, %v5766
        %v6192 = vadd.f32 %v4472, %v5768
        %v6193 = vadd.f32 %v4473, %v5770
        %v6194 = vadd.f32 %v4474, %v5772
        %v6195 = vadd.f32 %v4475, %v5774
        %v6196 = vadd.f32 %v4476, %v5776
        %v6197 = vadd.f32 %v4477, %v5778
        %v6198 = vadd.f32 %v4478, %v5780
        %v6199 = vadd.f32 %v4479, %v5782
        %v6200 = vadd.f32 %v4480, %v5784
        %v6201 = vadd.f32 %v4481, %v5786
        %v6202 = vadd.f32 %v4482, %v5788
        %v6203 = vadd.f32 %v4483, %v5790
        %v6204 = vadd.f32 %v4484, %v5792
        %v6205 = vadd.f32 %v4485, %v5794
        %v6206 = vadd.f32 %v4486, %v5796
        %v6207 = vadd.f32 %v4487, %v5798
        %v6208 = vadd.f32 %v4488, %v5800
        %v6209 = vadd.f32 %v4489, %v5802
        %v6210 = vadd.f32 %v4490, %v5804
        %v6211 = vadd.f32 %v4491, %v5806
        %v6212 = vadd.f32 %v4492, %v5808
        %v6213 = vadd.f32 %v4493, %v5810
        %v6214 = vadd.f32 %v4494, %v5812
        %v6215 = vadd.f32 %v4495, %v5814
        %v6216 = vadd.f32 %v4496, %v5816
        %v6217 = vadd.f32 %v4497, %v5818
        %v6218 = vadd.f32 %v4498, %v5820
        %v6219 = vadd.f32 %v4499, %v5822
        %v6220 = vadd.f32 %v4500, %v5824
        %v6221 = vadd.f32 %v4501, %v5826
        %v6222 = vadd.f32 %v4502, %v5828
        %v6223 = vadd.f32 %v4503, %v5830
        %v6224 = vadd.f32 %v4504, %v5832
        %v6225 = vadd.f32 %v4505, %v5834
        %v6226 = vadd.f32 %v4506, %v5836
        %v6227 = vadd.f32 %v4507, %v5838
        %v6228 = vadd.f32 %v4508, %v5840
        %v6229 = vadd.f32 %v4509, %v5842
        %v6230 = vadd.f32 %v4510, %v5844
        %v6231 = vadd.f32 %v4511, %v5846
        %v6232 = vadd.f32 %v4512, %v5848
        %v6233 = vadd.f32 %v4513, %v5850
        %v6234 = vadd.f32 %v4514, %v5852
        %v6235 = vadd.f32 %v4515, %v5854
        %v6236 = vadd.f32 %v4516, %v5856
        %v6237 = vadd.f32 %v4517, %v5858
        %v6238 = vadd.f32 %v4518, %v5860
        %v6239 = vadd.f32 %v4519, %v5862
        %v6240 = vadd.f32 %v4520, %v5864
        %v6241 = vadd.f32 %v4521, %v5866
        %v6242 = vadd.f32 %v4522, %v5868
        %v6243 = vadd.f32 %v4523, %v5870
        %v6244 = vadd.f32 %v4524, %v5872
        %v6245 = vadd.f32 %v4525, %v5874
        %v6246 = vadd.f32 %v4526, %v5876
        %v6247 = vadd.f32 %v4527, %v5878
        %v6248 = vadd.f32 %v4528, %v5880
        %v6249 = vadd.f32 %v4529, %v5882
        %v6250 = vadd.f32 %v4530, %v5884
        %v6251 = vadd.f32 %v4531, %v5886
        %v6252 = vadd.f32 %v4532, %v5888
        %v6253 = vadd.f32 %v4533, %v5890
        %v6254 = vadd.f32 %v4534, %v5892
        %v6255 = vadd.f32 %v4535, %v5894
        %v6256 = vadd.f32 %v4536, %v5896
        %v6257 = vadd.f32 %v4537, %v5898
        %v6258 = vadd.f32 %v4538, %v5900
        %v6259 = vadd.f32 %v4539, %v5902
        %v6260 = vadd.f32 %v4540, %v5904
        %v6261 = vadd.f32 %v4541, %v5906
        %v6262 = vadd.f32 %v4542, %v5908
        %v6263 = vadd.f32 %v4543, %v5910
        %v6264 = vadd.f32 %v4544, %v5912
        %v6265 = vadd.f32 %v4545, %v5914
        %v6266 = vadd.f32 %v4546, %v5916
        %v6267 = vadd.f32 %v4547, %v5918
        %v6268 = vadd.f32 %v4548, %v5920
        %v6269 = vadd.f32 %v4549, %v5922
        %v6270 = vadd.f32 %v4550, %v5924
        %v6271 = vadd.f32 %v4551, %v5926
        %v6272 = vadd.f32 %v4552, %v5928
        %vm6273 = vcmask 64512
        %6274 = vst.msk [vmem:[%s227] sm:$0xff] %vm6273, %v6101
        %6275 = vst.msk [vmem:[%s227 + $0x8] sm:$0xff] %vm6273, %v6102
        %6276 = vst.msk [vmem:[%s227 + $0x10] sm:$0xff] %vm6273, %v6103
        %6277 = vst.msk [vmem:[%s227 + $0x18] sm:$0xff] %vm6273, %v6104
        %6278 = vst.msk [vmem:[%s227 + $0x20] sm:$0xff] %vm6273, %v6105
        %6279 = vst.msk [vmem:[%s227 + $0x28] sm:$0xff] %vm6273, %v6106
        %6280 = vst.msk [vmem:[%s227 + $0x30] sm:$0xff] %vm6273, %v6107
        %6281 = vst.msk [vmem:[%s227 + $0x38] sm:$0xff] %vm6273, %v6108
        %6282 = vst.msk [vmem:[%s227 + $0x40] sm:$0xff] %vm6273, %v6109
        %6283 = vst.msk [vmem:[%s227 + $0x48] sm:$0xff] %vm6273, %v6110
        %6284 = vst.msk [vmem:[%s227 + $0x50] sm:$0xff] %vm6273, %v6111
        %6285 = vst.msk [vmem:[%s227 + $0x58] sm:$0xff] %vm6273, %v6112
        %6286 = vst.msk [vmem:[%s227 + $0x60] sm:$0xff] %vm6273, %v6113
        %6287 = vst.msk [vmem:[%s227 + $0x68] sm:$0xff] %vm6273, %v6114
        %6288 = vst.msk [vmem:[%s227 + $0x70] sm:$0xff] %vm6273, %v6115
        %6289 = vst.msk [vmem:[%s227 + $0x78] sm:$0xff] %vm6273, %v6116
        %6290 = vst.msk [vmem:[%s227 + $0x80] sm:$0xff] %vm6273, %v6117
        %6291 = vst.msk [vmem:[%s227 + $0x88] sm:$0xff] %vm6273, %v6118
        %6292 = vst.msk [vmem:[%s227 + $0x90] sm:$0xff] %vm6273, %v6119
        %6293 = vst.msk [vmem:[%s227 + $0x98] sm:$0xff] %vm6273, %v6120
        %6294 = vst.msk [vmem:[%s227 + $0xa0] sm:$0xff] %vm6273, %v6121
        %6295 = vst.msk [vmem:[%s227 + $0xa8] sm:$0xff] %vm6273, %v6122
        %6296 = vst.msk [vmem:[%s227 + $0xb0] sm:$0xff] %vm6273, %v6123
        %6297 = vst.msk [vmem:[%s227 + $0xb8] sm:$0xff] %vm6273, %v6124
        %6298 = vst.msk [vmem:[%s227 + $0xc0] sm:$0xff] %vm6273, %v6125
        %6299 = vst.msk [vmem:[%s227 + $0xc8] sm:$0xff] %vm6273, %v6126
        %6300 = vst.msk [vmem:[%s227 + $0xd0] sm:$0xff] %vm6273, %v6127
        %6301 = vst.msk [vmem:[%s227 + $0xd8] sm:$0xff] %vm6273, %v6128
        %6302 = vst.msk [vmem:[%s227 + $0xe0] sm:$0xff] %vm6273, %v6129
        %6303 = vst.msk [vmem:[%s227 + $0xe8] sm:$0xff] %vm6273, %v6130
        %6304 = vst.msk [vmem:[%s227 + $0xf0] sm:$0xff] %vm6273, %v6131
        %6305 = vst.msk [vmem:[%s227 + $0xf8] sm:$0xff] %vm6273, %v6132
        %6306 = vst.msk [vmem:[%s227 + $0x100] sm:$0xff] %vm6273, %v6133
        %6307 = vst.msk [vmem:[%s227 + $0x108] sm:$0xff] %vm6273, %v6134
        %6308 = vst.msk [vmem:[%s227 + $0x110] sm:$0xff] %vm6273, %v6135
        %6309 = vst.msk [vmem:[%s227 + $0x118] sm:$0xff] %vm6273, %v6136
        %6310 = vst.msk [vmem:[%s227 + $0x120] sm:$0xff] %vm6273, %v6137
        %6311 = vst.msk [vmem:[%s227 + $0x128] sm:$0xff] %vm6273, %v6138
        %6312 = vst.msk [vmem:[%s227 + $0x130] sm:$0xff] %vm6273, %v6139
        %6313 = vst.msk [vmem:[%s227 + $0x138] sm:$0xff] %vm6273, %v6140
        %6314 = vst.msk [vmem:[%s227 + $0x140] sm:$0xff] %vm6273, %v6141
        %6315 = vst.msk [vmem:[%s227 + $0x148] sm:$0xff] %vm6273, %v6142
        %6316 = vst.msk [vmem:[%s227 + $0x150] sm:$0xff] %vm6273, %v6143
        %6317 = vst.msk [vmem:[%s227 + $0x158] sm:$0xff] %vm6273, %v6144
        %6318 = vst.msk [vmem:[%s227 + $0x160] sm:$0xff] %vm6273, %v6145
        %6319 = vst.msk [vmem:[%s227 + $0x168] sm:$0xff] %vm6273, %v6146
        %6320 = vst.msk [vmem:[%s227 + $0x170] sm:$0xff] %vm6273, %v6147
        %6321 = vst.msk [vmem:[%s227 + $0x178] sm:$0xff] %vm6273, %v6148
        %6322 = vst.msk [vmem:[%s227 + $0x180] sm:$0xff] %vm6273, %v6149
        %6323 = vst.msk [vmem:[%s227 + $0x188] sm:$0xff] %vm6273, %v6150
        %6324 = vst.msk [vmem:[%s227 + $0x190] sm:$0xff] %vm6273, %v6151
        %6325 = vst.msk [vmem:[%s227 + $0x198] sm:$0xff] %vm6273, %v6152
        %6326 = vst.msk [vmem:[%s227 + $0x1a0] sm:$0xff] %vm6273, %v6153
        %6327 = vst.msk [vmem:[%s227 + $0x1a8] sm:$0xff] %vm6273, %v6154
        %6328 = vst.msk [vmem:[%s227 + $0x1b0] sm:$0xff] %vm6273, %v6155
        %6329 = vst.msk [vmem:[%s227 + $0x1b8] sm:$0xff] %vm6273, %v6156
        %6330 = vst.msk [vmem:[%s227 + $0x1c0] sm:$0xff] %vm6273, %v6157
        %6331 = vst.msk [vmem:[%s227 + $0x1c8] sm:$0xff] %vm6273, %v6158
        %6332 = vst.msk [vmem:[%s227 + $0x1d0] sm:$0xff] %vm6273, %v6159
        %6333 = vst.msk [vmem:[%s227 + $0x1d8] sm:$0xff] %vm6273, %v6160
        %6334 = vst.msk [vmem:[%s227 + $0x1e0] sm:$0xff] %vm6273, %v6161
        %6335 = vst.msk [vmem:[%s227 + $0x1e8] sm:$0xff] %vm6273, %v6162
        %6336 = vst.msk [vmem:[%s227 + $0x1f0] sm:$0xff] %vm6273, %v6163
        %6337 = vst.msk [vmem:[%s227 + $0x1f8] sm:$0xff] %vm6273, %v6164
        %6338 = vst.msk [vmem:[%s227 + $0x200] sm:$0xff] %vm6273, %v6165
        %6339 = vst.msk [vmem:[%s227 + $0x208] sm:$0xff] %vm6273, %v6166
        %6340 = vst.msk [vmem:[%s227 + $0x210] sm:$0xff] %vm6273, %v6167
        %6341 = vst.msk [vmem:[%s227 + $0x218] sm:$0xff] %vm6273, %v6168
        %6342 = vst.msk [vmem:[%s227 + $0x220] sm:$0xff] %vm6273, %v6169
        %6343 = vst.msk [vmem:[%s227 + $0x228] sm:$0xff] %vm6273, %v6170
        %6344 = vst.msk [vmem:[%s227 + $0x230] sm:$0xff] %vm6273, %v6171
        %6345 = vst.msk [vmem:[%s227 + $0x238] sm:$0xff] %vm6273, %v6172
        %6346 = vst.msk [vmem:[%s227 + $0x240] sm:$0xff] %vm6273, %v6173
        %6347 = vst.msk [vmem:[%s227 + $0x248] sm:$0xff] %vm6273, %v6174
        %6348 = vst.msk [vmem:[%s227 + $0x250] sm:$0xff] %vm6273, %v6175
        %6349 = vst.msk [vmem:[%s227 + $0x258] sm:$0xff] %vm6273, %v6176
        %6350 = vst.msk [vmem:[%s227 + $0x260] sm:$0xff] %vm6273, %v6177
        %6351 = vst.msk [vmem:[%s227 + $0x268] sm:$0xff] %vm6273, %v6178
        %6352 = vst.msk [vmem:[%s227 + $0x270] sm:$0xff] %vm6273, %v6179
        %6353 = vst.msk [vmem:[%s227 + $0x278] sm:$0xff] %vm6273, %v6180
        %6354 = vst.msk [vmem:[%s227 + $0x280] sm:$0xff] %vm6273, %v6181
        %6355 = vst.msk [vmem:[%s227 + $0x288] sm:$0xff] %vm6273, %v6182
        %6356 = vst.msk [vmem:[%s227 + $0x290] sm:$0xff] %vm6273, %v6183
        %6357 = vst.msk [vmem:[%s227 + $0x298] sm:$0xff] %vm6273, %v6184
        %6358 = vst.msk [vmem:[%s227 + $0x2a0] sm:$0xff] %vm6273, %v6185
        %6359 = vst.msk [vmem:[%s227 + $0x2a8] sm:$0xff] %vm6273, %v6186
        %6360 = vst.msk [vmem:[%s227 + $0x2b0] sm:$0xff] %vm6273, %v6187
        %6361 = vst.msk [vmem:[%s227 + $0x2b8] sm:$0xff] %vm6273, %v6188
        %6362 = vst.msk [vmem:[%s227 + $0x2c0] sm:$0xff] %vm6273, %v6189
        %6363 = vst.msk [vmem:[%s227 + $0x2c8] sm:$0xff] %vm6273, %v6190
        %6364 = vst.msk [vmem:[%s227 + $0x2d0] sm:$0xff] %vm6273, %v6191
        %6365 = vst.msk [vmem:[%s227 + $0x2d8] sm:$0xff] %vm6273, %v6192
        %6366 = vst.msk [vmem:[%s227 + $0x2e0] sm:$0xff] %vm6273, %v6193
        %6367 = vst.msk [vmem:[%s227 + $0x2e8] sm:$0xff] %vm6273, %v6194
        %6368 = vst.msk [vmem:[%s227 + $0x2f0] sm:$0xff] %vm6273, %v6195
        %6369 = vst.msk [vmem:[%s227 + $0x2f8] sm:$0xff] %vm6273, %v6196
        %6370 = vst.msk [vmem:[%s227 + $0x300] sm:$0xff] %vm6273, %v6197
        %6371 = vst.msk [vmem:[%s227 + $0x308] sm:$0xff] %vm6273, %v6198
        %6372 = vst.msk [vmem:[%s227 + $0x310] sm:$0xff] %vm6273, %v6199
        %6373 = vst.msk [vmem:[%s227 + $0x318] sm:$0xff] %vm6273, %v6200
        %6374 = vst.msk [vmem:[%s227 + $0x320] sm:$0xff] %vm6273, %v6201
        %6375 = vst.msk [vmem:[%s227 + $0x328] sm:$0xff] %vm6273, %v6202
        %6376 = vst.msk [vmem:[%s227 + $0x330] sm:$0xff] %vm6273, %v6203
        %6377 = vst.msk [vmem:[%s227 + $0x338] sm:$0xff] %vm6273, %v6204
        %6378 = vst.msk [vmem:[%s227 + $0x340] sm:$0xff] %vm6273, %v6205
        %6379 = vst.msk [vmem:[%s227 + $0x348] sm:$0xff] %vm6273, %v6206
        %6380 = vst.msk [vmem:[%s227 + $0x350] sm:$0xff] %vm6273, %v6207
        %6381 = vst.msk [vmem:[%s227 + $0x358] sm:$0xff] %vm6273, %v6208
        %6382 = vst.msk [vmem:[%s227 + $0x360] sm:$0xff] %vm6273, %v6209
        %6383 = vst.msk [vmem:[%s227 + $0x368] sm:$0xff] %vm6273, %v6210
        %6384 = vst.msk [vmem:[%s227 + $0x370] sm:$0xff] %vm6273, %v6211
        %6385 = vst.msk [vmem:[%s227 + $0x378] sm:$0xff] %vm6273, %v6212
        %6386 = vst.msk [vmem:[%s227 + $0x380] sm:$0xff] %vm6273, %v6213
        %6387 = vst.msk [vmem:[%s227 + $0x388] sm:$0xff] %vm6273, %v6214
        %6388 = vst.msk [vmem:[%s227 + $0x390] sm:$0xff] %vm6273, %v6215
        %6389 = vst.msk [vmem:[%s227 + $0x398] sm:$0xff] %vm6273, %v6216
        %6390 = vst.msk [vmem:[%s227 + $0x3a0] sm:$0xff] %vm6273, %v6217
        %6391 = vst.msk [vmem:[%s227 + $0x3a8] sm:$0xff] %vm6273, %v6218
        %6392 = vst.msk [vmem:[%s227 + $0x3b0] sm:$0xff] %vm6273, %v6219
        %6393 = vst.msk [vmem:[%s227 + $0x3b8] sm:$0xff] %vm6273, %v6220
        %6394 = vst.msk [vmem:[%s227 + $0x3c0] sm:$0xff] %vm6273, %v6221
        %6395 = vst.msk [vmem:[%s227 + $0x3c8] sm:$0xff] %vm6273, %v6222
        %6396 = vst.msk [vmem:[%s227 + $0x3d0] sm:$0xff] %vm6273, %v6223
        %6397 = vst.msk [vmem:[%s227 + $0x3d8] sm:$0xff] %vm6273, %v6224
        %6398 = vst.msk [vmem:[%s227 + $0x3e0] sm:$0xff] %vm6273, %v6225
        %6399 = vst.msk [vmem:[%s227 + $0x3e8] sm:$0xff] %vm6273, %v6226
        %6400 = vst.msk [vmem:[%s227 + $0x3f0] sm:$0xff] %vm6273, %v6227
        %6401 = vst.msk [vmem:[%s227 + $0x3f8] sm:$0xff] %vm6273, %v6228
        %6402 = vst.msk [vmem:[%s227 + $0x400] sm:$0xff] %vm6273, %v6229
        %6403 = vst.msk [vmem:[%s227 + $0x408] sm:$0xff] %vm6273, %v6230
        %6404 = vst.msk [vmem:[%s227 + $0x410] sm:$0xff] %vm6273, %v6231
        %6405 = vst.msk [vmem:[%s227 + $0x418] sm:$0xff] %vm6273, %v6232
        %6406 = vst.msk [vmem:[%s227 + $0x420] sm:$0xff] %vm6273, %v6233
        %6407 = vst.msk [vmem:[%s227 + $0x428] sm:$0xff] %vm6273, %v6234
        %6408 = vst.msk [vmem:[%s227 + $0x430] sm:$0xff] %vm6273, %v6235
        %6409 = vst.msk [vmem:[%s227 + $0x438] sm:$0xff] %vm6273, %v6236
        %6410 = vst.msk [vmem:[%s227 + $0x440] sm:$0xff] %vm6273, %v6237
        %6411 = vst.msk [vmem:[%s227 + $0x448] sm:$0xff] %vm6273, %v6238
        %6412 = vst.msk [vmem:[%s227 + $0x450] sm:$0xff] %vm6273, %v6239
        %6413 = vst.msk [vmem:[%s227 + $0x458] sm:$0xff] %vm6273, %v6240
        %6414 = vst.msk [vmem:[%s227 + $0x460] sm:$0xff] %vm6273, %v6241
        %6415 = vst.msk [vmem:[%s227 + $0x468] sm:$0xff] %vm6273, %v6242
        %6416 = vst.msk [vmem:[%s227 + $0x470] sm:$0xff] %vm6273, %v6243
        %6417 = vst.msk [vmem:[%s227 + $0x478] sm:$0xff] %vm6273, %v6244
        %6418 = vst.msk [vmem:[%s227 + $0x480] sm:$0xff] %vm6273, %v6245
        %6419 = vst.msk [vmem:[%s227 + $0x488] sm:$0xff] %vm6273, %v6246
        %6420 = vst.msk [vmem:[%s227 + $0x490] sm:$0xff] %vm6273, %v6247
        %6421 = vst.msk [vmem:[%s227 + $0x498] sm:$0xff] %vm6273, %v6248
        %6422 = vst.msk [vmem:[%s227 + $0x4a0] sm:$0xff] %vm6273, %v6249
        %6423 = vst.msk [vmem:[%s227 + $0x4a8] sm:$0xff] %vm6273, %v6250
        %6424 = vst.msk [vmem:[%s227 + $0x4b0] sm:$0xff] %vm6273, %v6251
        %6425 = vst.msk [vmem:[%s227 + $0x4b8] sm:$0xff] %vm6273, %v6252
        %6426 = vst.msk [vmem:[%s227 + $0x4c0] sm:$0xff] %vm6273, %v6253
        %6427 = vst.msk [vmem:[%s227 + $0x4c8] sm:$0xff] %vm6273, %v6254
        %6428 = vst.msk [vmem:[%s227 + $0x4d0] sm:$0xff] %vm6273, %v6255
        %6429 = vst.msk [vmem:[%s227 + $0x4d8] sm:$0xff] %vm6273, %v6256
        %6430 = vst.msk [vmem:[%s227 + $0x4e0] sm:$0xff] %vm6273, %v6257
        %6431 = vst.msk [vmem:[%s227 + $0x4e8] sm:$0xff] %vm6273, %v6258
        %6432 = vst.msk [vmem:[%s227 + $0x4f0] sm:$0xff] %vm6273, %v6259
        %6433 = vst.msk [vmem:[%s227 + $0x4f8] sm:$0xff] %vm6273, %v6260
        %6434 = vst.msk [vmem:[%s227 + $0x500] sm:$0xff] %vm6273, %v6261
        %6435 = vst.msk [vmem:[%s227 + $0x508] sm:$0xff] %vm6273, %v6262
        %6436 = vst.msk [vmem:[%s227 + $0x510] sm:$0xff] %vm6273, %v6263
        %6437 = vst.msk [vmem:[%s227 + $0x518] sm:$0xff] %vm6273, %v6264
        %6438 = vst.msk [vmem:[%s227 + $0x520] sm:$0xff] %vm6273, %v6265
        %6439 = vst.msk [vmem:[%s227 + $0x528] sm:$0xff] %vm6273, %v6266
        %6440 = vst.msk [vmem:[%s227 + $0x530] sm:$0xff] %vm6273, %v6267
        %6441 = vst.msk [vmem:[%s227 + $0x538] sm:$0xff] %vm6273, %v6268
        %6442 = vst.msk [vmem:[%s227 + $0x540] sm:$0xff] %vm6273, %v6269
        %6443 = vst.msk [vmem:[%s227 + $0x548] sm:$0xff] %vm6273, %v6270
        %6444 = vst.msk [vmem:[%s227 + $0x550] sm:$0xff] %vm6273, %v6271
        %6445 = vst.msk [vmem:[%s227 + $0x558] sm:$0xff] %vm6273, %v6272
        %s6446 = sand.u32 %s117, 1
        %s6447 = sand.u32 %s117, 1
        %s6448 = smul.addr %s6447, 1376
        %s6449 = scalar_lea.vmem [#allocation2], %s6448
        // Predicated region
        $region37: #{conv3d_rt_att.1} parent=35 // pred_check
          %p6450 = pneg %p127
        $region38: #{conv3d_rt_att.1} parent=35 // pred_check_branch
          %6452 = sbr.rel (%p6450) target = $region40
        $region39: #{conv3d_rt_att.1} parent=35 // pred_region
          %s6453 = smul.u32 172, %s15
          %s6454 = ssub.s32 686, %s6453
          %p6455 = scmp.lt.s32.totalorder %s6454, 172
          %s6456 = scalar_select %p6455, %s6454, 172
          %s6457 = smul.u32 8, %s6456
          %p6458 = scmp.ne.s32.totalorder 0, %s6457
          %s6459 = smul.addr %s6453, 8
          %s6460 = scalar_lea.vmem %s4, %s6459
          // Predicated region
          $region41: #{conv3d_rt_att.1} parent=39 // pred_check
            %p6461 = pneg %p6458
          $region42: #{conv3d_rt_att.1} parent=39 // pred_check_branch
            %6463 = sbr.rel (%p6461) target = $region44
          $region43: #{conv3d_rt_att.1} parent=39 // pred_region
            // Predicated region
            $region45: #{conv3d_rt_att.1} parent=43 // pred_check
              _
            $region46: #{conv3d_rt_att.1} parent=43 // pred_check_branch
              %6465 = sbr.rel (0) target = $region48
            $region47: #{conv3d_rt_att.1} parent=43 // pred_region
              // Predicated region
              $region67: #{conv3d_rt_att.1} parent=47 // pred_check
                _
              $region68: #{conv3d_rt_att.1} parent=47 // pred_check_branch
                %6577 = sbr.rel (0) target = $region70
              $region69: #{conv3d_rt_att.1} parent=47 // pred_region
                %s6578 = sshrl.u32 %s6456, 5
                // While loop
                $region71: #{conv3d_rt_att.1} parent=69 // loop_pre_header
                  _
                $region72: #{conv3d_rt_att.1} parent=69 // loop_header
                  %s6580 = sphi 0, %s6582
                  %p6581 = scmp.ge.s32.totalorder %s6580, %s6578
                  %s6585 = sphi 0, %s6654
                  %s6586 = sphi %s6449, %s6657
                  %s6587 = sphi %s6460, %s6658
                $region73: #{conv3d_rt_att.1} parent=69 // loop_header_branch
                  %6584 = sbr.rel (%p6581) target = $region77
                $region74: #{conv3d_rt_att.1} parent=69 // loop_body
                  %v6588 = vld [vmem:[%s6586] sm:$0xff]
                  %6589 = vst [vmem:[%s6587] sm:$0xff] %v6588
                  %v6590 = vld [vmem:[%s6586 + $0x8] sm:$0xff]
                  %6591 = vst [vmem:[%s6587 + $0x8] sm:$0xff] %v6590
                  %v6592 = vld [vmem:[%s6586 + $0x10] sm:$0xff]
                  %6593 = vst [vmem:[%s6587 + $0x10] sm:$0xff] %v6592
                  %v6594 = vld [vmem:[%s6586 + $0x18] sm:$0xff]
                  %6595 = vst [vmem:[%s6587 + $0x18] sm:$0xff] %v6594
                  %v6596 = vld [vmem:[%s6586 + $0x20] sm:$0xff]
                  %6597 = vst [vmem:[%s6587 + $0x20] sm:$0xff] %v6596
                  %v6598 = vld [vmem:[%s6586 + $0x28] sm:$0xff]
                  %6599 = vst [vmem:[%s6587 + $0x28] sm:$0xff] %v6598
                  %v6600 = vld [vmem:[%s6586 + $0x30] sm:$0xff]
                  %6601 = vst [vmem:[%s6587 + $0x30] sm:$0xff] %v6600
                  %v6602 = vld [vmem:[%s6586 + $0x38] sm:$0xff]
                  %6603 = vst [vmem:[%s6587 + $0x38] sm:$0xff] %v6602
                  %v6604 = vld [vmem:[%s6586 + $0x40] sm:$0xff]
                  %6605 = vst [vmem:[%s6587 + $0x40] sm:$0xff] %v6604
                  %v6606 = vld [vmem:[%s6586 + $0x48] sm:$0xff]
                  %6607 = vst [vmem:[%s6587 + $0x48] sm:$0xff] %v6606
                  %v6608 = vld [vmem:[%s6586 + $0x50] sm:$0xff]
                  %6609 = vst [vmem:[%s6587 + $0x50] sm:$0xff] %v6608
                  %v6610 = vld [vmem:[%s6586 + $0x58] sm:$0xff]
                  %6611 = vst [vmem:[%s6587 + $0x58] sm:$0xff] %v6610
                  %v6612 = vld [vmem:[%s6586 + $0x60] sm:$0xff]
                  %6613 = vst [vmem:[%s6587 + $0x60] sm:$0xff] %v6612
                  %v6614 = vld [vmem:[%s6586 + $0x68] sm:$0xff]
                  %6615 = vst [vmem:[%s6587 + $0x68] sm:$0xff] %v6614
                  %v6616 = vld [vmem:[%s6586 + $0x70] sm:$0xff]
                  %6617 = vst [vmem:[%s6587 + $0x70] sm:$0xff] %v6616
                  %v6618 = vld [vmem:[%s6586 + $0x78] sm:$0xff]
                  %6619 = vst [vmem:[%s6587 + $0x78] sm:$0xff] %v6618
                  %v6620 = vld [vmem:[%s6586 + $0x80] sm:$0xff]
                  %6621 = vst [vmem:[%s6587 + $0x80] sm:$0xff] %v6620
                  %v6622 = vld [vmem:[%s6586 + $0x88] sm:$0xff]
                  %6623 = vst [vmem:[%s6587 + $0x88] sm:$0xff] %v6622
                  %v6624 = vld [vmem:[%s6586 + $0x90] sm:$0xff]
                  %6625 = vst [vmem:[%s6587 + $0x90] sm:$0xff] %v6624
                  %v6626 = vld [vmem:[%s6586 + $0x98] sm:$0xff]
                  %6627 = vst [vmem:[%s6587 + $0x98] sm:$0xff] %v6626
                  %v6628 = vld [vmem:[%s6586 + $0xa0] sm:$0xff]
                  %6629 = vst [vmem:[%s6587 + $0xa0] sm:$0xff] %v6628
                  %v6630 = vld [vmem:[%s6586 + $0xa8] sm:$0xff]
                  %6631 = vst [vmem:[%s6587 + $0xa8] sm:$0xff] %v6630
                  %v6632 = vld [vmem:[%s6586 + $0xb0] sm:$0xff]
                  %6633 = vst [vmem:[%s6587 + $0xb0] sm:$0xff] %v6632
                  %v6634 = vld [vmem:[%s6586 + $0xb8] sm:$0xff]
                  %6635 = vst [vmem:[%s6587 + $0xb8] sm:$0xff] %v6634
                  %v6636 = vld [vmem:[%s6586 + $0xc0] sm:$0xff]
                  %6637 = vst [vmem:[%s6587 + $0xc0] sm:$0xff] %v6636
                  %v6638 = vld [vmem:[%s6586 + $0xc8] sm:$0xff]
                  %6639 = vst [vmem:[%s6587 + $0xc8] sm:$0xff] %v6638
                  %v6640 = vld [vmem:[%s6586 + $0xd0] sm:$0xff]
                  %6641 = vst [vmem:[%s6587 + $0xd0] sm:$0xff] %v6640
                  %v6642 = vld [vmem:[%s6586 + $0xd8] sm:$0xff]
                  %6643 = vst [vmem:[%s6587 + $0xd8] sm:$0xff] %v6642
                  %v6644 = vld [vmem:[%s6586 + $0xe0] sm:$0xff]
                  %6645 = vst [vmem:[%s6587 + $0xe0] sm:$0xff] %v6644
                  %v6646 = vld [vmem:[%s6586 + $0xe8] sm:$0xff]
                  %6647 = vst [vmem:[%s6587 + $0xe8] sm:$0xff] %v6646
                  %v6648 = vld [vmem:[%s6586 + $0xf0] sm:$0xff]
                  %6649 = vst [vmem:[%s6587 + $0xf0] sm:$0xff] %v6648
                  %v6650 = vld [vmem:[%s6586 + $0xf8] sm:$0xff]
                  %6651 = vst [vmem:[%s6587 + $0xf8] sm:$0xff] %v6650
                  %s6652 = sadd.s32 1, %s6585
                  %p6653 = scmp.ge.s32.totalorder %s6652, %s6578
                  %s6654 = scalar_select %p6653, 0, %s6652
                  %s6655 = smul.u32 %s6654, 256
                  %s6656 = smul.u32 %s6654, 256
                  %s6657 = scalar_lea.vmem %s6449, %s6655 [#allocation2]
                  %s6658 = scalar_lea.vmem %s6460, %s6656
                $region75: #{conv3d_rt_att.1} parent=69 // loop_footer
                  %s6582 = sadd.s32 %s6580, 1
                $region76: #{conv3d_rt_att.1} parent=69 // loop_footer_branch
                  %6579 = sbr.rel target = $region72
                $region77: #{conv3d_rt_att.1} parent=69 // loop_exit
                  _
                %s6659 = sshrl.u32 %s6456, 5
                %s6660 = sand.u32 %s6456, 31
                %s6661 = smul.u32 %s6659, 32
                %s6662 = smul.u32 8, %s6661
                %s6663 = scalar_lea.vmem %s6449, %s6662 [#allocation2]
                %s6664 = smul.u32 8, %s6661
                %s6665 = scalar_lea.vmem %s6460, %s6664
                // While loop
                $region78: #{conv3d_rt_att.1} parent=69 // loop_pre_header
                  _
                $region79: #{conv3d_rt_att.1} parent=69 // loop_header
                  %s6667 = sphi 0, %s6669
                  %p6668 = scmp.ge.s32.totalorder %s6667, %s6660
                  %s6672 = sphi 0, %s6679
                  %s6673 = sphi %s6663, %s6682
                  %s6674 = sphi %s6665, %s6683
                $region80: #{conv3d_rt_att.1} parent=69 // loop_header_branch
                  %6671 = sbr.rel (%p6668) target = $region84
                $region81: #{conv3d_rt_att.1} parent=69 // loop_body
                  %v6675 = vld [vmem:[%s6673] sm:$0xff]
                  %6676 = vst [vmem:[%s6674] sm:$0xff] %v6675
                  %s6677 = sadd.s32 1, %s6672
                  %p6678 = scmp.ge.s32.totalorder %s6677, %s6660
                  %s6679 = scalar_select %p6678, 0, %s6677
                  %s6680 = smul.u32 %s6679, 8
                  %s6681 = smul.u32 %s6679, 8
                  %s6682 = scalar_lea.vmem %s6663, %s6680 [#allocation2]
                  %s6683 = scalar_lea.vmem %s6665, %s6681
                $region82: #{conv3d_rt_att.1} parent=69 // loop_footer
                  %s6669 = sadd.s32 %s6667, 1
                $region83: #{conv3d_rt_att.1} parent=69 // loop_footer_branch
                  %6666 = sbr.rel target = $region79
                $region84: #{conv3d_rt_att.1} parent=69 // loop_exit
                  _
              $region70: #{conv3d_rt_att.1} parent=47 // pred_fallthru
                _
              // Predicated region
              $region85: #{conv3d_rt_att.1} parent=47 // pred_check
                _
              $region86: #{conv3d_rt_att.1} parent=47 // pred_check_branch
                %6685 = sbr.rel target = $region88
              $region87: #{conv3d_rt_att.1} parent=47 // pred_region
                _
              $region88: #{conv3d_rt_att.1} parent=47 // pred_fallthru
                _
            $region48: #{conv3d_rt_att.1} parent=43 // pred_fallthru
              _
            // Predicated region
            $region49: #{conv3d_rt_att.1} parent=43 // pred_check
              _
            $region50: #{conv3d_rt_att.1} parent=43 // pred_check_branch
              %6467 = sbr.rel target = $region52
            $region51: #{conv3d_rt_att.1} parent=43 // pred_region
              %s6469 = ssub.s32 256, 1
              %s6470 = sshrl.u32 %s6456, 5
              // While loop
              $region53: #{conv3d_rt_att.1} parent=51 // loop_pre_header
                _
              $region54: #{conv3d_rt_att.1} parent=51 // loop_header
                %s6472 = sphi 0, %s6474
                %p6473 = scmp.ge.s32.totalorder %s6472, %s6470
                %s6477 = sphi 0, %s6546
                %s6478 = sphi %s6449, %s6549
                %s6479 = sphi %s6460, %s6550
              $region55: #{conv3d_rt_att.1} parent=51 // loop_header_branch
                %6476 = sbr.rel (%p6473) target = $region59
              $region56: #{conv3d_rt_att.1} parent=51 // loop_body
                %v6480 = vld [vmem:[%s6478] sm:%s6469]
                %6481 = vst [vmem:[%s6479] sm:%s6469] %v6480
                %v6482 = vld [vmem:[%s6478 + $0x8] sm:%s6469]
                %6483 = vst [vmem:[%s6479 + $0x8] sm:%s6469] %v6482
                %v6484 = vld [vmem:[%s6478 + $0x10] sm:%s6469]
                %6485 = vst [vmem:[%s6479 + $0x10] sm:%s6469] %v6484
                %v6486 = vld [vmem:[%s6478 + $0x18] sm:%s6469]
                %6487 = vst [vmem:[%s6479 + $0x18] sm:%s6469] %v6486
                %v6488 = vld [vmem:[%s6478 + $0x20] sm:%s6469]
                %6489 = vst [vmem:[%s6479 + $0x20] sm:%s6469] %v6488
                %v6490 = vld [vmem:[%s6478 + $0x28] sm:%s6469]
                %6491 = vst [vmem:[%s6479 + $0x28] sm:%s6469] %v6490
                %v6492 = vld [vmem:[%s6478 + $0x30] sm:%s6469]
                %6493 = vst [vmem:[%s6479 + $0x30] sm:%s6469] %v6492
                %v6494 = vld [vmem:[%s6478 + $0x38] sm:%s6469]
                %6495 = vst [vmem:[%s6479 + $0x38] sm:%s6469] %v6494
                %v6496 = vld [vmem:[%s6478 + $0x40] sm:%s6469]
                %6497 = vst [vmem:[%s6479 + $0x40] sm:%s6469] %v6496
                %v6498 = vld [vmem:[%s6478 + $0x48] sm:%s6469]
                %6499 = vst [vmem:[%s6479 + $0x48] sm:%s6469] %v6498
                %v6500 = vld [vmem:[%s6478 + $0x50] sm:%s6469]
                %6501 = vst [vmem:[%s6479 + $0x50] sm:%s6469] %v6500
                %v6502 = vld [vmem:[%s6478 + $0x58] sm:%s6469]
                %6503 = vst [vmem:[%s6479 + $0x58] sm:%s6469] %v6502
                %v6504 = vld [vmem:[%s6478 + $0x60] sm:%s6469]
                %6505 = vst [vmem:[%s6479 + $0x60] sm:%s6469] %v6504
                %v6506 = vld [vmem:[%s6478 + $0x68] sm:%s6469]
                %6507 = vst [vmem:[%s6479 + $0x68] sm:%s6469] %v6506
                %v6508 = vld [vmem:[%s6478 + $0x70] sm:%s6469]
                %6509 = vst [vmem:[%s6479 + $0x70] sm:%s6469] %v6508
                %v6510 = vld [vmem:[%s6478 + $0x78] sm:%s6469]
                %6511 = vst [vmem:[%s6479 + $0x78] sm:%s6469] %v6510
                %v6512 = vld [vmem:[%s6478 + $0x80] sm:%s6469]
                %6513 = vst [vmem:[%s6479 + $0x80] sm:%s6469] %v6512
                %v6514 = vld [vmem:[%s6478 + $0x88] sm:%s6469]
                %6515 = vst [vmem:[%s6479 + $0x88] sm:%s6469] %v6514
                %v6516 = vld [vmem:[%s6478 + $0x90] sm:%s6469]
                %6517 = vst [vmem:[%s6479 + $0x90] sm:%s6469] %v6516
                %v6518 = vld [vmem:[%s6478 + $0x98] sm:%s6469]
                %6519 = vst [vmem:[%s6479 + $0x98] sm:%s6469] %v6518
                %v6520 = vld [vmem:[%s6478 + $0xa0] sm:%s6469]
                %6521 = vst [vmem:[%s6479 + $0xa0] sm:%s6469] %v6520
                %v6522 = vld [vmem:[%s6478 + $0xa8] sm:%s6469]
                %6523 = vst [vmem:[%s6479 + $0xa8] sm:%s6469] %v6522
                %v6524 = vld [vmem:[%s6478 + $0xb0] sm:%s6469]
                %6525 = vst [vmem:[%s6479 + $0xb0] sm:%s6469] %v6524
                %v6526 = vld [vmem:[%s6478 + $0xb8] sm:%s6469]
                %6527 = vst [vmem:[%s6479 + $0xb8] sm:%s6469] %v6526
                %v6528 = vld [vmem:[%s6478 + $0xc0] sm:%s6469]
                %6529 = vst [vmem:[%s6479 + $0xc0] sm:%s6469] %v6528
                %v6530 = vld [vmem:[%s6478 + $0xc8] sm:%s6469]
                %6531 = vst [vmem:[%s6479 + $0xc8] sm:%s6469] %v6530
                %v6532 = vld [vmem:[%s6478 + $0xd0] sm:%s6469]
                %6533 = vst [vmem:[%s6479 + $0xd0] sm:%s6469] %v6532
                %v6534 = vld [vmem:[%s6478 + $0xd8] sm:%s6469]
                %6535 = vst [vmem:[%s6479 + $0xd8] sm:%s6469] %v6534
                %v6536 = vld [vmem:[%s6478 + $0xe0] sm:%s6469]
                %6537 = vst [vmem:[%s6479 + $0xe0] sm:%s6469] %v6536
                %v6538 = vld [vmem:[%s6478 + $0xe8] sm:%s6469]
                %6539 = vst [vmem:[%s6479 + $0xe8] sm:%s6469] %v6538
                %v6540 = vld [vmem:[%s6478 + $0xf0] sm:%s6469]
                %6541 = vst [vmem:[%s6479 + $0xf0] sm:%s6469] %v6540
                %v6542 = vld [vmem:[%s6478 + $0xf8] sm:%s6469]
                %6543 = vst [vmem:[%s6479 + $0xf8] sm:%s6469] %v6542
                %s6544 = sadd.s32 1, %s6477
                %p6545 = scmp.ge.s32.totalorder %s6544, %s6470
                %s6546 = scalar_select %p6545, 0, %s6544
                %s6547 = smul.u32 %s6546, 256
                %s6548 = smul.u32 %s6546, 256
                %s6549 = scalar_lea.vmem %s6449, %s6547 [#allocation2]
                %s6550 = scalar_lea.vmem %s6460, %s6548
              $region57: #{conv3d_rt_att.1} parent=51 // loop_footer
                %s6474 = sadd.s32 %s6472, 1
              $region58: #{conv3d_rt_att.1} parent=51 // loop_footer_branch
                %6471 = sbr.rel target = $region54
              $region59: #{conv3d_rt_att.1} parent=51 // loop_exit
                _
              %s6551 = sshrl.u32 %s6456, 5
              %s6552 = sand.u32 %s6456, 31
              %s6553 = smul.u32 %s6551, 32
              %s6554 = smul.u32 8, %s6553
              %s6555 = scalar_lea.vmem %s6449, %s6554 [#allocation2]
              %s6556 = smul.u32 8, %s6553
              %s6557 = scalar_lea.vmem %s6460, %s6556
              // While loop
              $region60: #{conv3d_rt_att.1} parent=51 // loop_pre_header
                _
              $region61: #{conv3d_rt_att.1} parent=51 // loop_header
                %s6559 = sphi 0, %s6561
                %p6560 = scmp.ge.s32.totalorder %s6559, %s6552
                %s6564 = sphi 0, %s6571
                %s6565 = sphi %s6555, %s6574
                %s6566 = sphi %s6557, %s6575
              $region62: #{conv3d_rt_att.1} parent=51 // loop_header_branch
                %6563 = sbr.rel (%p6560) target = $region66
              $region63: #{conv3d_rt_att.1} parent=51 // loop_body
                %v6567 = vld [vmem:[%s6565] sm:%s6469]
                %6568 = vst [vmem:[%s6566] sm:%s6469] %v6567
                %s6569 = sadd.s32 1, %s6564
                %p6570 = scmp.ge.s32.totalorder %s6569, %s6552
                %s6571 = scalar_select %p6570, 0, %s6569
                %s6572 = smul.u32 %s6571, 8
                %s6573 = smul.u32 %s6571, 8
                %s6574 = scalar_lea.vmem %s6555, %s6572 [#allocation2]
                %s6575 = scalar_lea.vmem %s6557, %s6573
              $region64: #{conv3d_rt_att.1} parent=51 // loop_footer
                %s6561 = sadd.s32 %s6559, 1
              $region65: #{conv3d_rt_att.1} parent=51 // loop_footer_branch
                %6558 = sbr.rel target = $region61
              $region66: #{conv3d_rt_att.1} parent=51 // loop_exit
                _
            $region52: #{conv3d_rt_att.1} parent=43 // pred_fallthru
              _
          $region44: #{conv3d_rt_att.1} parent=39 // pred_fallthru
            _
          %6686 = vnop
        $region40: #{conv3d_rt_att.1} parent=35 // pred_fallthru
          _
      $region36: #{conv3d_rt_att.1} parent=5 // pred_fallthru
        _
      %p6687 = scmp.le.s32.totalorder 2, %s10
      // Predicated region
      $region89: #{conv3d_rt_att.1} parent=5 // pred_check
        %p6688 = pneg %p6687
      $region90: #{conv3d_rt_att.1} parent=5 // pred_check_branch
        %6690 = sbr.rel (%p6688) target = $region92
      $region91: #{conv3d_rt_att.1} parent=5 // pred_region
        %s6691 = ssub.s32 %s10, 2
        // Predicated region
        $region93: #{conv3d_rt_att.1} parent=91 // pred_check
          %p6692 = pneg %p133
        $region94: #{conv3d_rt_att.1} parent=91 // pred_check_branch
          %6694 = sbr.rel (%p6692) target = $region96
        $region95: #{conv3d_rt_att.1} parent=91 // pred_region
          %s6695 = sand.u32 %s118, 1
          %s6696 = sand.u32 %s118, 1
          %s6697 = smul.addr %s6696, 1376
          %s6698 = scalar_lea.vmem [#allocation2], %s6697
        $region96: #{conv3d_rt_att.1} parent=91 // pred_fallthru
          _
      $region92: #{conv3d_rt_att.1} parent=5 // pred_fallthru
        _
    $region6: #{conv3d_rt_att.1} parent=1 // loop_footer
      %s14 = sadd.s32 1, %s10
    $region7: #{conv3d_rt_att.1} parent=1 // loop_footer_branch
      %9 = sbr.rel target = $region3
    $region8: #{conv3d_rt_att.1} parent=1 // loop_exit
      _

</llo_original>
